<compile_context>
chip_gen: v7x
topology: tpu7x:2x2x1
jax: 0.10.0
libtpu: 0.0.40
codegen_flags: <defaults>
</compile_context>

<pallas_src>
import functools
import math

import jax
import jax.numpy as jnp
from jax.experimental import pallas as pl
from jax.experimental.pallas import tpu as pltpu


_MATMUL_DTYPE = jnp.bfloat16          # bf16 operands, f32 accumulation
_VMEM_LIMIT = 32 * 1024 * 1024        # safe on v5e/v6e (128 MiB) and v7x (64 MiB)


def _cparams():
    return pltpu.CompilerParams(
        dimension_semantics=("parallel",),
        vmem_limit_bytes=_VMEM_LIMIT,
    )


def _row_tile(m, max_rows=512):
    """Largest row-block <= max_rows that divides m and is a multiple of 8."""
    if m <= max_rows:
        return m
    t = (max_rows // 8) * 8
    while t >= 8:
        if m % t == 0:
            return t
        t -= 8
    return m  # fall back to a single full block (always legal)


# ----------------------------- Pallas kernels --------------------------------

def _linear_kernel(x_ref, w_ref, b_ref, o_ref, *, activation):
    x = x_ref[...].astype(_MATMUL_DTYPE)
    w = w_ref[...].astype(_MATMUL_DTYPE)
    y = jnp.dot(x, w, preferred_element_type=jnp.float32) + b_ref[...]
    if activation == "relu":
        y = jnp.maximum(y, 0.0)
    o_ref[...] = y.astype(o_ref.dtype)


def linear(x, w, b, activation=None):
    """x: [..., K] -> [..., N];  w: [K, N], b: [N]. Rows tiled on a parallel axis."""
    orig = x.shape
    K = orig[-1]
    N = w.shape[1]
    x2 = x.reshape(-1, K)
    M = x2.shape[0]
    tm = _row_tile(M)
    out = pl.pallas_call(
        functools.partial(_linear_kernel, activation=activation),
        grid=(M // tm,),
        out_shape=jax.ShapeDtypeStruct((M, N), x.dtype),
        in_specs=[
            pl.BlockSpec((tm, K), lambda i: (i, 0)),
            pl.BlockSpec((K, N), lambda i: (0, 0)),
            pl.BlockSpec((1, N), lambda i: (0, 0)),
        ],
        out_specs=pl.BlockSpec((tm, N), lambda i: (i, 0)),
        compiler_params=_cparams(),
    )(x2, w, b.reshape(1, N))
    return out.reshape(orig[:-1] + (N,))


def _mha_kernel(q_ref, k_ref, v_ref, m_ref, o_ref, *maybe_attn,
                head_dim, return_attn):
    # q: (1,H,Lq,Dh)  k,v: (1,H,Lk,Dh)  mask: (1,Mq,Lk) with 1=keep, 0=mask
    q = q_ref[0].astype(_MATMUL_DTYPE)
    k = k_ref[0].astype(_MATMUL_DTYPE)
    v = v_ref[0].astype(_MATMUL_DTYPE)
    mask = m_ref[0]                                   # (Mq, Lk); Mq is Lq or 1

    energy = jnp.einsum("hqd,hkd->hqk", q, k,
                        preferred_element_type=jnp.float32)
    energy = energy * jnp.float32(1.0 / math.sqrt(head_dim))
    energy = jnp.where(mask[None, :, :] < 0.5, jnp.float32(-1e10), energy)

    m_max = jnp.max(energy, axis=-1, keepdims=True)
    p = jnp.exp(energy - m_max)
    denom = jnp.sum(p, axis=-1, keepdims=True)
    if return_attn:
        attn = p / denom                              # exact (this one is returned)
    else:
        attn = p * pl.reciprocal(denom, approx=True)  # EUP path, never written back

    ctx = jnp.einsum("hqk,hkd->hqd", attn.astype(_MATMUL_DTYPE), v,
                     preferred_element_type=jnp.float32)
    o_ref[0] = ctx.astype(o_ref.dtype)
    if return_attn:
        maybe_attn[0][0] = attn.astype(maybe_attn[0].dtype)


def mha_core(q, k, v, mask, head_dim, return_attn):
    """q: [B,H,Lq,Dh], k/v: [B,H,Lk,Dh], mask: [Bm,Mq,Lk] float (1 keep / 0 mask)."""
    B, H, Lq, Dh = q.shape
    Lk = k.shape[2]
    Bm, Mq, _ = mask.shape
    mask_index = (lambda b: (b, 0, 0)) if Bm == B else (lambda b: (0, 0, 0))

    out_shapes = [jax.ShapeDtypeStruct((B, H, Lq, Dh), q.dtype)]
    out_specs = [pl.BlockSpec((1, H, Lq, Dh), lambda b: (b, 0, 0, 0))]
    if return_attn:
        out_shapes.append(jax.ShapeDtypeStruct((B, H, Lq, Lk), jnp.float32))
        out_specs.append(pl.BlockSpec((1, H, Lq, Lk), lambda b: (b, 0, 0, 0)))

    res = pl.pallas_call(
        functools.partial(_mha_kernel, head_dim=head_dim, return_attn=return_attn),
        grid=(B,),
        out_shape=tuple(out_shapes) if return_attn else out_shapes[0],
        in_specs=[
            pl.BlockSpec((1, H, Lq, Dh), lambda b: (b, 0, 0, 0)),
            pl.BlockSpec((1, H, Lk, Dh), lambda b: (b, 0, 0, 0)),
            pl.BlockSpec((1, H, Lk, Dh), lambda b: (b, 0, 0, 0)),
            pl.BlockSpec((1, Mq, Lk), mask_index),
        ],
        out_specs=tuple(out_specs) if return_attn else out_specs[0],
        compiler_params=_cparams(),
    )(q, k, v, mask)
    if return_attn:
        return res[0], res[1]
    return res, None


def _proj_add_ln_kernel(x_ref, w_ref, b_ref, r_ref, g_ref, bb_ref, o_ref):
    # fused: y = x @ W + b ; z = y + residual ; LayerNorm(z) * g + beta
    x = x_ref[...].astype(_MATMUL_DTYPE)
    w = w_ref[...].astype(_MATMUL_DTYPE)
    y = jnp.dot(x, w, preferred_element_type=jnp.float32) + b_ref[...]
    z = y + r_ref[...].astype(jnp.float32)
    mean = jnp.mean(z, axis=-1, keepdims=True)
    var = jnp.mean(jnp.square(z - mean), axis=-1, keepdims=True)
    zn = (z - mean) * jax.lax.rsqrt(var + 1e-5)
    o_ref[...] = (zn * g_ref[...] + bb_ref[...]).astype(o_ref.dtype)


def proj_add_layer_norm(x, w, b, residual, gamma, beta):
    B, L, K = x.shape
    N = w.shape[1]
    M = B * L
    tm = _row_tile(M)
    out = pl.pallas_call(
        _proj_add_ln_kernel,
        grid=(M // tm,),
        out_shape=jax.ShapeDtypeStruct((M, N), x.dtype),
        in_specs=[
            pl.BlockSpec((tm, K), lambda i: (i, 0)),
            pl.BlockSpec((K, N), lambda i: (0, 0)),
            pl.BlockSpec((1, N), lambda i: (0, 0)),
            pl.BlockSpec((tm, N), lambda i: (i, 0)),
            pl.BlockSpec((1, N), lambda i: (0, 0)),
            pl.BlockSpec((1, N), lambda i: (0, 0)),
        ],
        out_specs=pl.BlockSpec((tm, N), lambda i: (i, 0)),
        compiler_params=_cparams(),
    )(x.reshape(M, K), w, b.reshape(1, N),
      residual.reshape(M, N), gamma.reshape(1, N), beta.reshape(1, N))
    return out.reshape(B, L, N)


def _ffn_add_ln_kernel(x_ref, w1_ref, b1_ref, w2_ref, b2_ref, g_ref, bb_ref, o_ref):
    # fused: relu(x @ W1 + b1) @ W2 + b2 ; + residual x ; LayerNorm
    x = x_ref[...]
    h = jnp.dot(x.astype(_MATMUL_DTYPE), w1_ref[...].astype(_MATMUL_DTYPE),
                preferred_element_type=jnp.float32) + b1_ref[...]
    h = jnp.maximum(h, 0.0)
    y = jnp.dot(h.astype(_MATMUL_DTYPE), w2_ref[...].astype(_MATMUL_DTYPE),
                preferred_element_type=jnp.float32) + b2_ref[...]
    z = y + x.astype(jnp.float32)
    mean = jnp.mean(z, axis=-1, keepdims=True)
    var = jnp.mean(jnp.square(z - mean), axis=-1, keepdims=True)
    zn = (z - mean) * jax.lax.rsqrt(var + 1e-5)
    o_ref[...] = (zn * g_ref[...] + bb_ref[...]).astype(o_ref.dtype)


def ffn_add_layer_norm(x, w1, b1, w2, b2, gamma, beta):
    B, L, D = x.shape
    P = w1.shape[1]
    M = B * L
    tm = _row_tile(M)
    out = pl.pallas_call(
        _ffn_add_ln_kernel,
        grid=(M // tm,),
        out_shape=jax.ShapeDtypeStruct((M, D), x.dtype),
        in_specs=[
            pl.BlockSpec((tm, D), lambda i: (i, 0)),
            pl.BlockSpec((D, P), lambda i: (0, 0)),
            pl.BlockSpec((1, P), lambda i: (0, 0)),
            pl.BlockSpec((P, D), lambda i: (0, 0)),
            pl.BlockSpec((1, D), lambda i: (0, 0)),
            pl.BlockSpec((1, D), lambda i: (0, 0)),
            pl.BlockSpec((1, D), lambda i: (0, 0)),
        ],
        out_specs=pl.BlockSpec((tm, D), lambda i: (i, 0)),
        compiler_params=_cparams(),
    )(x.reshape(M, D), w1, b1.reshape(1, P), w2, b2.reshape(1, D),
      gamma.reshape(1, D), beta.reshape(1, D))
    return out.reshape(B, L, D)


def _out_logsoftmax_kernel(x_ref, w_ref, b_ref, o_ref):
    logits = jnp.dot(x_ref[...].astype(_MATMUL_DTYPE),
                     w_ref[...].astype(_MATMUL_DTYPE),
                     preferred_element_type=jnp.float32) + b_ref[...]
    m = jnp.max(logits, axis=-1, keepdims=True)
    s = logits - m
    lse = jnp.log(jnp.sum(jnp.exp(s), axis=-1, keepdims=True))
    o_ref[...] = (s - lse).astype(o_ref.dtype)


def out_logsoftmax(x, w, b):
    B, L, D = x.shape
    V = w.shape[1]
    M = B * L
    tm = _row_tile(M)
    out = pl.pallas_call(
        _out_logsoftmax_kernel,
        grid=(M // tm,),
        out_shape=jax.ShapeDtypeStruct((M, V), x.dtype),
        in_specs=[
            pl.BlockSpec((tm, D), lambda i: (i, 0)),
            pl.BlockSpec((D, V), lambda i: (0, 0)),
            pl.BlockSpec((1, V), lambda i: (0, 0)),
        ],
        out_specs=pl.BlockSpec((tm, V), lambda i: (i, 0)),
        compiler_params=_cparams(),
    )(x.reshape(M, D), w, b.reshape(1, V))
    return out.reshape(B, L, V)


def _embed_pe_kernel(e_ref, pe_ref, o_ref, *, scale):
    o_ref[0] = (e_ref[0] * jnp.float32(scale) + pe_ref[...]).astype(o_ref.dtype)


def embed_scale_pe(emb, pe, scale):
    """emb: [B, L, D]; pe: [L, D] (read once, not broadcast to batch in HBM)."""
    B, L, D = emb.shape
    return pl.pallas_call(
        functools.partial(_embed_pe_kernel, scale=scale),
        grid=(B,),
        out_shape=jax.ShapeDtypeStruct((B, L, D), emb.dtype),
        in_specs=[
            pl.BlockSpec((1, L, D), lambda b: (b, 0, 0)),
            pl.BlockSpec((L, D), lambda b: (0, 0)),
        ],
        out_specs=pl.BlockSpec((1, L, D), lambda b: (b, 0, 0)),
        compiler_params=_cparams(),
    )(emb, pe)


# ------------------------------ parameters -----------------------------------

def sinusoidal_pe(max_len, d_model):
    pos = jnp.arange(max_len, dtype=jnp.float32)[:, None]
    div = jnp.exp(jnp.arange(0, d_model, 2, dtype=jnp.float32)
                  * (-math.log(10000.0) / d_model))
    pe = jnp.zeros((max_len, d_model), jnp.float32)
    pe = pe.at[:, 0::2].set(jnp.sin(pos * div))
    pe = pe.at[:, 1::2].set(jnp.cos(pos * div))
    return pe


def _dense_init(key, k_in, k_out):
    kw, kb = jax.random.split(key)
    w = jax.random.normal(kw, (k_in, k_out), jnp.float32) * 0.02
    b = jax.random.normal(kb, (k_out,), jnp.float32) * 0.02
    return w, b


def init_decoder_params(key, output_dim, hid_dim, n_layers, n_heads, pf_dim,
                        max_length=100):
    keys = jax.random.split(key, 2 + n_layers)
    params = {
        "tok_emb": jax.random.normal(keys[0], (output_dim, hid_dim), jnp.float32) * 0.02,
        "pe": sinusoidal_pe(max_length, hid_dim),
        "layers": [],
    }
    fcw, fcb = _dense_init(keys[1], hid_dim, output_dim)
    params["fc_out_w"], params["fc_out_b"] = fcw, fcb

    for li in range(n_layers):
        lk = jax.random.split(keys[2 + li], 4)

        # self-attention: fused QKV weight
        ks = jax.random.split(lk[0], 4)
        wq, bq = _dense_init(ks[0], hid_dim, hid_dim)
        wk, bk = _dense_init(ks[1], hid_dim, hid_dim)
        wv, bv = _dense_init(ks[2], hid_dim, hid_dim)
        wo, bo = _dense_init(ks[3], hid_dim, hid_dim)
        self_attn = dict(
            w_qkv=jnp.concatenate([wq, wk, wv], axis=1),
            b_qkv=jnp.concatenate([bq, bk, bv], axis=0),
            wo=wo, bo=bo,
        )

        # cross-attention: Q separate (from trg), fused KV (from enc_src)
        ke = jax.random.split(lk[1], 4)
        wq2, bq2 = _dense_init(ke[0], hid_dim, hid_dim)
        wk2, bk2 = _dense_init(ke[1], hid_dim, hid_dim)
        wv2, bv2 = _dense_init(ke[2], hid_dim, hid_dim)
        wo2, bo2 = _dense_init(ke[3], hid_dim, hid_dim)
        enc_attn = dict(
            wq=wq2, bq=bq2,
            w_kv=jnp.concatenate([wk2, wv2], axis=1),
            b_kv=jnp.concatenate([bk2, bv2], axis=0),
            wo=wo2, bo=bo2,
        )

        ff_w1, ff_b1 = _dense_init(lk[2], hid_dim, pf_dim)
        ff_w2, ff_b2 = _dense_init(lk[3], pf_dim, hid_dim)
        layer = dict(
            self_attn=self_attn, enc_attn=enc_attn,
            ff_w1=ff_w1, ff_b1=ff_b1, ff_w2=ff_w2, ff_b2=ff_b2,
            ln1_g=jnp.ones((hid_dim,), jnp.float32), ln1_b=jnp.zeros((hid_dim,), jnp.float32),
            ln2_g=jnp.ones((hid_dim,), jnp.float32), ln2_b=jnp.zeros((hid_dim,), jnp.float32),
            ln3_g=jnp.ones((hid_dim,), jnp.float32), ln3_b=jnp.zeros((hid_dim,), jnp.float32),
        )
        params["layers"].append(layer)
    return params


# ------------------------------ forward pass ----------------------------------

def _split_heads(t, n_heads):
    B, L, D = t.shape
    return t.reshape(B, L, n_heads, D // n_heads).transpose(0, 2, 1, 3)


def _merge_heads(t):
    B, H, L, Dh = t.shape
    return t.transpose(0, 2, 1, 3).reshape(B, L, H * Dh)


def decoder_forward(params, trg, enc_src, trg_mask, src_mask, n_heads):
    """
    trg:      [B, Lt]   int32 token ids
    enc_src:  [B, Ls, D]
    trg_mask: [B, 1, Lt, Lt]  (1 keep / 0 mask)
    src_mask: [B, 1, 1,  Ls]
    returns (log_softmax(logits) [B, Lt, V], last-layer cross-attention [B, H, Lt, Ls])
    """
    B, Lt = trg.shape
    D = params["tok_emb"].shape[1]
    H = n_heads
    Dh = D // H

    # embedding gather kept as XLA glue (table generally won't fit VMEM)
    tok = jnp.take(params["tok_emb"], trg, axis=0)
    x = embed_scale_pe(tok, params["pe"][:Lt], math.sqrt(D))   # * sqrt(hid) + PE
    # dropout(p) in eval mode == identity

    # masks kept un-broadcast (kernel broadcasts over Lq internally for src_mask)
    self_mask = trg_mask[:, 0].astype(jnp.float32)   # [B, Lt, Lt]
    cross_mask = src_mask[:, 0].astype(jnp.float32)  # [B, 1, Ls]

    attention = None
    n_layers = len(params["layers"])
    for li, layer in enumerate(params["layers"]):
        # -------- self attention (fused QKV, no attn-prob writeback) --------
        sa = layer["self_attn"]
        qkv = linear(x, sa["w_qkv"], sa["b_qkv"])               # [B, Lt, 3D]
        q, k, v = jnp.split(qkv, 3, axis=-1)
        q, k, v = (_split_heads(q, H), _split_heads(k, H), _split_heads(v, H))
        ctx, _ = mha_core(q, k, v, self_mask, Dh, return_attn=False)
        ctx = _merge_heads(ctx)
        x = proj_add_layer_norm(ctx, sa["wo"], sa["bo"], x,
                                layer["ln1_g"], layer["ln1_b"])

        # -------- cross attention (fused KV; attn probs only for last layer) --------
        ea = layer["enc_attn"]
        q = linear(x, ea["wq"], ea["bq"])                       # [B, Lt, D]
        kv = linear(enc_src, ea["w_kv"], ea["b_kv"])            # [B, Ls, 2D]
        k, v = jnp.split(kv, 2, axis=-1)
        q, k, v = (_split_heads(q, H), _split_heads(k, H), _split_heads(v, H))
        want_attn = (li == n_layers - 1)
        ctx, attn = mha_core(q, k, v, cross_mask, Dh, return_attn=want_attn)
        if want_attn:
            attention = attn
        ctx = _merge_heads(ctx)
        x = proj_add_layer_norm(ctx, ea["wo"], ea["bo"], x,
                                layer["ln2_g"], layer["ln2_b"])

        # -------- positionwise feed-forward + residual + LN (fully fused) --------
        x = ffn_add_layer_norm(x, layer["ff_w1"], layer["ff_b1"],
                               layer["ff_w2"], layer["ff_b2"],
                               layer["ln3_g"], layer["ln3_b"])

    # fc_out + log_softmax fused
    return out_logsoftmax(x, params["fc_out_w"], params["fc_out_b"]), attention


# ---------------------------------- main --------------------------------------

if __name__ == "__main__":
    # small synthetic configuration
    output_dim = 50     # vocab
    hid_dim = 32
    n_layers = 2
    n_heads = 4
    pf_dim = 64
    max_length = 100
    batch, trg_len, src_len = 2, 8, 10

    key = jax.random.PRNGKey(0)
    kp, kt, ke = jax.random.split(key, 3)

    params = init_decoder_params(kp, output_dim, hid_dim, n_layers, n_heads,
                                 pf_dim, max_length=max_length)

    trg = jax.random.randint(kt, (batch, trg_len), 0, output_dim, dtype=jnp.int32)
    enc_src = jax.random.normal(ke, (batch, src_len, hid_dim), jnp.float32)

    # causal target mask [B,1,Lt,Lt]; full source mask [B,1,1,Ls]
    causal = jnp.tril(jnp.ones((trg_len, trg_len), jnp.float32))
    trg_mask = jnp.broadcast_to(causal, (batch, 1, trg_len, trg_len))
    src_mask = jnp.ones((batch, 1, 1, src_len), jnp.float32)

    fwd = jax.jit(functools.partial(decoder_forward, n_heads=n_heads))
    log_probs, attention = fwd(params, trg, enc_src, trg_mask, src_mask)
    jax.block_until_ready((log_probs, attention))

    assert log_probs.shape == (batch, trg_len, output_dim)
    assert attention.shape == (batch, n_heads, trg_len, src_len)
    # log_softmax sanity: rows sum to ~1 in prob space
    assert jnp.allclose(jnp.sum(jnp.exp(log_probs), axis=-1), 1.0, atol=1e-3)
    # attention sanity: softmax rows sum to ~1
    assert jnp.allclose(jnp.sum(attention, axis=-1), 1.0, atol=1e-3)

    print("KERNEL_OK")
</pallas_src>

<mosaic_0001>
module attributes {stable_mosaic.version = 11 : i64} {
  func.func @_embed_pe_kernel(%arg0: i32, %arg1: memref<1x8x32xf32, #tpu.memory_space<vmem>>, %arg2: memref<8x32xf32, #tpu.memory_space<vmem>>, %arg3: memref<1x8x32xf32, #tpu.memory_space<vmem>>) attributes {dimension_semantics = [#tpu.dimension_semantics<parallel>], iteration_bounds = array<i64: 2>, scalar_prefetch = 0 : i64, scratch_operands = 0 : i64, tpu.core_type = #tpu.core_type<tc>, window_params = [{transform_indices = @transform_0, window_bounds = array<i64: 1, 8, 32>}, {pipeline_mode = #tpu.pipeline_mode<synchronous>, transform_indices = @transform_1, window_bounds = array<i64: 8, 32>}, {transform_indices = @transform_2, window_bounds = array<i64: 1, 8, 32>}]} {
    %c0 = arith.constant 0 : index
    %c0_0 = arith.constant 0 : index
    %c0_1 = arith.constant 0 : index
    %0 = vector.load %arg1[%c0, %c0_0, %c0_1] : memref<1x8x32xf32, #tpu.memory_space<vmem>>, vector<1x8x32xf32>
    %1 = vector.shape_cast %0 : vector<1x8x32xf32> to vector<8x32xf32>
    %cst = arith.constant 5.65685415 : f32
    %2 = vector.broadcast %cst : f32 to vector<8x32xf32>
    %3 = arith.mulf %1, %2 : vector<8x32xf32>
    %c0_2 = arith.constant 0 : index
    %c0_3 = arith.constant 0 : index
    %4 = vector.load %arg2[%c0_2, %c0_3] : memref<8x32xf32, #tpu.memory_space<vmem>>, vector<8x32xf32>
    %5 = arith.addf %3, %4 : vector<8x32xf32>
    %c0_4 = arith.constant 0 : index
    %c0_5 = arith.constant 0 : index
    %c0_6 = arith.constant 0 : index
    %6 = vector.load %arg3[%c0_4, %c0_5, %c0_6] : memref<1x8x32xf32, #tpu.memory_space<vmem>>, vector<1x8x32xf32>
    %7 = vector.shape_cast %6 : vector<1x8x32xf32> to vector<8x32xf32>
    %8 = vector.shape_cast %5 : vector<8x32xf32> to vector<1x8x32xf32>
    tpu.vector_store %arg3[%c0_4, %c0_5, %c0_6], %8 {strides = array<i32>} : memref<1x8x32xf32, #tpu.memory_space<vmem>>, vector<1x8x32xf32>,
    return
  }
  func.func @transform_0(%arg0: i32) -> (i32, i32, i32) {
    %c0_i32 = arith.constant 0 : i32
    %c0_i32_0 = arith.constant 0 : i32
    %c0_i32_1 = arith.constant 0 : i32
    return %arg0, %c0_i32, %c0_i32_0 : i32, i32, i32
  }
  func.func @transform_1(%arg0: i32) -> (i32, i32) {
    %c0_i32 = arith.constant 0 : i32
    %c0_i32_0 = arith.constant 0 : i32
    %c0_i32_1 = arith.constant 0 : i32
    return %c0_i32, %c0_i32_0 : i32, i32
  }
  func.func @transform_2(%arg0: i32) -> (i32, i32, i32) {
    %c0_i32 = arith.constant 0 : i32
    %c0_i32_0 = arith.constant 0 : i32
    %c0_i32_1 = arith.constant 0 : i32
    return %arg0, %c0_i32, %c0_i32_0 : i32, i32, i32
  }
}

module attributes {stable_mosaic.version = 11 : i64} {
  func.func @_linear_kernel(%arg0: i32, %arg1: memref<16x32xf32, #tpu.memory_space<vmem>>, %arg2: memref<32x96xf32, #tpu.memory_space<vmem>>, %arg3: memref<1x96xf32, #tpu.memory_space<vmem>>, %arg4: memref<16x96xf32, #tpu.memory_space<vmem>>) attributes {dimension_semantics = [#tpu.dimension_semantics<parallel>], iteration_bounds = array<i64: 1>, scalar_prefetch = 0 : i64, scratch_operands = 0 : i64, tpu.core_type = #tpu.core_type<tc>, window_params = [{transform_indices = @transform_0, window_bounds = array<i64: 16, 32>}, {pipeline_mode = #tpu.pipeline_mode<synchronous>, transform_indices = @transform_1, window_bounds = array<i64: 32, 96>}, {pipeline_mode = #tpu.pipeline_mode<synchronous>, transform_indices = @transform_2, window_bounds = array<i64: 1, 96>}, {transform_indices = @transform_3, window_bounds = array<i64: 16, 96>}]} {
    %c0 = arith.constant 0 : index
    %c0_0 = arith.constant 0 : index
    %0 = vector.load %arg1[%c0, %c0_0] : memref<16x32xf32, #tpu.memory_space<vmem>>, vector<16x32xf32>
    %1 = arith.truncf %0 : vector<16x32xf32> to vector<16x32xbf16>
    %c0_1 = arith.constant 0 : index
    %c0_2 = arith.constant 0 : index
    %2 = vector.load %arg2[%c0_1, %c0_2] : memref<32x96xf32, #tpu.memory_space<vmem>>, vector<32x96xf32>
    %3 = arith.truncf %2 : vector<32x96xf32> to vector<32x96xbf16>
    %cst = arith.constant dense<0.000000e+00> : vector<16x96xf32>
    %4 = tpu.matmul %1, %3, %cst {dimension_numbers = #tpu.dot_dimension_numbers<[1], [0], [0], [1], [0, 0, 1, 1], [], []>} : vector<16x32xbf16>, vector<32x96xbf16>, vector<16x96xf32> -> vector<16x96xf32>
    %c0_3 = arith.constant 0 : index
    %c0_4 = arith.constant 0 : index
    %5 = vector.load %arg3[%c0_3, %c0_4] : memref<1x96xf32, #tpu.memory_space<vmem>>, vector<1x96xf32>
    %6 = vector.broadcast %5 : vector<1x96xf32> to vector<16x96xf32>
    %7 = arith.addf %4, %6 : vector<16x96xf32>
    %c0_5 = arith.constant 0 : index
    %c0_6 = arith.constant 0 : index
    %8 = vector.load %arg4[%c0_5, %c0_6] : memref<16x96xf32, #tpu.memory_space<vmem>>, vector<16x96xf32>
    tpu.vector_store %arg4[%c0_5, %c0_6], %7 {strides = array<i32>} : memref<16x96xf32, #tpu.memory_space<vmem>>, vector<16x96xf32>,
    return
  }
  func.func @transform_0(%arg0: i32) -> (i32, i32) {
    %c0_i32 = arith.constant 0 : i32
    %c0_i32_0 = arith.constant 0 : i32
    return %arg0, %c0_i32 : i32, i32
  }
  func.func @transform_1(%arg0: i32) -> (i32, i32) {
    %c0_i32 = arith.constant 0 : i32
    %c0_i32_0 = arith.constant 0 : i32
    %c0_i32_1 = arith.constant 0 : i32
    return %c0_i32, %c0_i32_0 : i32, i32
  }
  func.func @transform_2(%arg0: i32) -> (i32, i32) {
    %c0_i32 = arith.constant 0 : i32
    %c0_i32_0 = arith.constant 0 : i32
    %c0_i32_1 = arith.constant 0 : i32
    return %c0_i32, %c0_i32_0 : i32, i32
  }
  func.func @transform_3(%arg0: i32) -> (i32, i32) {
    %c0_i32 = arith.constant 0 : i32
    %c0_i32_0 = arith.constant 0 : i32
    return %arg0, %c0_i32 : i32, i32
  }
}

module attributes {stable_mosaic.version = 11 : i64} {
  func.func @_mha_kernel(%arg0: i32, %arg1: memref<1x4x8x8xf32, #tpu.memory_space<vmem>>, %arg2: memref<1x4x8x8xf32, #tpu.memory_space<vmem>>, %arg3: memref<1x4x8x8xf32, #tpu.memory_space<vmem>>, %arg4: memref<1x8x8xf32, #tpu.memory_space<vmem>>, %arg5: memref<1x4x8x8xf32, #tpu.memory_space<vmem>>) attributes {dimension_semantics = [#tpu.dimension_semantics<parallel>], iteration_bounds = array<i64: 2>, scalar_prefetch = 0 : i64, scratch_operands = 0 : i64, tpu.core_type = #tpu.core_type<tc>, window_params = [{transform_indices = @transform_0, window_bounds = array<i64: 1, 4, 8, 8>}, {transform_indices = @transform_1, window_bounds = array<i64: 1, 4, 8, 8>}, {transform_indices = @transform_2, window_bounds = array<i64: 1, 4, 8, 8>}, {transform_indices = @transform_3, window_bounds = array<i64: 1, 8, 8>}, {transform_indices = @transform_4, window_bounds = array<i64: 1, 4, 8, 8>}]} {
    %c0 = arith.constant 0 : index
    %c0_0 = arith.constant 0 : index
    %c0_1 = arith.constant 0 : index
    %c0_2 = arith.constant 0 : index
    %0 = vector.load %arg1[%c0, %c0_0, %c0_1, %c0_2] : memref<1x4x8x8xf32, #tpu.memory_space<vmem>>, vector<1x4x8x8xf32>
    %1 = vector.shape_cast %0 : vector<1x4x8x8xf32> to vector<4x8x8xf32>
    %2 = arith.truncf %1 : vector<4x8x8xf32> to vector<4x8x8xbf16>
    %c0_3 = arith.constant 0 : index
    %c0_4 = arith.constant 0 : index
    %c0_5 = arith.constant 0 : index
    %c0_6 = arith.constant 0 : index
    %3 = vector.load %arg2[%c0_3, %c0_4, %c0_5, %c0_6] : memref<1x4x8x8xf32, #tpu.memory_space<vmem>>, vector<1x4x8x8xf32>
    %4 = vector.shape_cast %3 : vector<1x4x8x8xf32> to vector<4x8x8xf32>
    %5 = arith.truncf %4 : vector<4x8x8xf32> to vector<4x8x8xbf16>
    %c0_7 = arith.constant 0 : index
    %c0_8 = arith.constant 0 : index
    %c0_9 = arith.constant 0 : index
    %c0_10 = arith.constant 0 : index
    %6 = vector.load %arg3[%c0_7, %c0_8, %c0_9, %c0_10] : memref<1x4x8x8xf32, #tpu.memory_space<vmem>>, vector<1x4x8x8xf32>
    %7 = vector.shape_cast %6 : vector<1x4x8x8xf32> to vector<4x8x8xf32>
    %8 = arith.truncf %7 : vector<4x8x8xf32> to vector<4x8x8xbf16>
    %c0_11 = arith.constant 0 : index
    %c0_12 = arith.constant 0 : index
    %c0_13 = arith.constant 0 : index
    %9 = vector.load %arg4[%c0_11, %c0_12, %c0_13] : memref<1x8x8xf32, #tpu.memory_space<vmem>>, vector<1x8x8xf32>
    %10 = vector.shape_cast %9 : vector<1x8x8xf32> to vector<8x8xf32>
    "tpu.trace_start"() <{level = 10 : i32, message = "hqd,hkd->hqk"}> : () -> ()
    %cst = arith.constant dense<0.000000e+00> : vector<4x8x8xf32>
    %11 = tpu.matmul %2, %5, %cst {dimension_numbers = #tpu.dot_dimension_numbers<[2], [2], [1], [1], [0, 0, 0, 1, 1, 1], [0], [0]>} : vector<4x8x8xbf16>, vector<4x8x8xbf16>, vector<4x8x8xf32> -> vector<4x8x8xf32>
    "tpu.trace_stop"() : () -> ()
    %cst_14 = arith.constant 0.353553385 : f32
    %12 = vector.broadcast %cst_14 : f32 to vector<4x8x8xf32>
    %13 = arith.mulf %11, %12 : vector<4x8x8xf32>
    %14 = vector.shape_cast %10 : vector<8x8xf32> to vector<1x8x8xf32>
    %cst_15 = arith.constant 5.000000e-01 : f32
    %15 = vector.broadcast %cst_15 : f32 to vector<1x8x8xf32>
    %16 = arith.cmpf olt, %14, %15 : vector<1x8x8xf32>
    %cst_16 = arith.constant -1.000000e+10 : f32
    %17 = vector.shape_cast %16 : vector<1x8x8xi1> to vector<1x8x8xi1>
    %18 = vector.broadcast %17 : vector<1x8x8xi1> to vector<4x8x8xi1>
    %19 = vector.broadcast %cst_16 : f32 to vector<4x8x8xf32>
    %20 = arith.select %18, %19, %13 : vector<4x8x8xi1>, vector<4x8x8xf32>
    %cst_17 = arith.constant dense<0xFF800000> : vector<4x8xf32>
    %21 = vector.multi_reduction <maximumf>, %20, %cst_17 [2] : vector<4x8x8xf32> to vector<4x8xf32>
    %22 = vector.shape_cast %21 : vector<4x8xf32> to vector<4x8x1xf32>
    %23 = vector.broadcast %22 : vector<4x8x1xf32> to vector<4x8x8xf32>
    %24 = arith.subf %20, %23 : vector<4x8x8xf32>
    %25 = math.exp %24 : vector<4x8x8xf32>
    %cst_18 = arith.constant dense<0.000000e+00> : vector<4x8xf32>
    %26 = vector.multi_reduction <add>, %25, %cst_18 [2] : vector<4x8x8xf32> to vector<4x8xf32>
    %27 = vector.shape_cast %26 : vector<4x8xf32> to vector<4x8x1xf32>
    %28 = tpu.reciprocal %27 {approx = true} : vector<4x8x1xf32> -> vector<4x8x1xf32>
    %29 = vector.broadcast %28 : vector<4x8x1xf32> to vector<4x8x8xf32>
    %30 = arith.mulf %25, %29 : vector<4x8x8xf32>
    %31 = arith.truncf %30 : vector<4x8x8xf32> to vector<4x8x8xbf16>
    "tpu.trace_start"() <{level = 10 : i32, message = "hqk,hkd->hqd"}> : () -> ()
    %cst_19 = arith.constant dense<0.000000e+00> : vector<4x8x8xf32>
    %32 = tpu.matmul %31, %8, %cst_19 {dimension_numbers = #tpu.dot_dimension_numbers<[2], [1], [1], [2], [0, 0, 0, 1, 1, 2], [0], [0]>} : vector<4x8x8xbf16>, vector<4x8x8xbf16>, vector<4x8x8xf32> -> vector<4x8x8xf32>
    "tpu.trace_stop"() : () -> ()
    %c0_20 = arith.constant 0 : index
    %c0_21 = arith.constant 0 : index
    %c0_22 = arith.constant 0 : index
    %c0_23 = arith.constant 0 : index
    %33 = vector.load %arg5[%c0_20, %c0_21, %c0_22, %c0_23] : memref<1x4x8x8xf32, #tpu.memory_space<vmem>>, vector<1x4x8x8xf32>
    %34 = vector.shape_cast %33 : vector<1x4x8x8xf32> to vector<4x8x8xf32>
    %35 = vector.shape_cast %32 : vector<4x8x8xf32> to vector<1x4x8x8xf32>
    tpu.vector_store %arg5[%c0_20, %c0_21, %c0_22, %c0_23], %35 {strides = array<i32>} : memref<1x4x8x8xf32, #tpu.memory_space<vmem>>, vector<1x4x8x8xf32>,
    return
  }
  func.func @transform_0(%arg0: i32) -> (i32, i32, i32, i32) {
    %c0_i32 = arith.constant 0 : i32
    %c0_i32_0 = arith.constant 0 : i32
    %c0_i32_1 = arith.constant 0 : i32
    %c0_i32_2 = arith.constant 0 : i32
    return %arg0, %c0_i32, %c0_i32_0, %c0_i32_1 : i32, i32, i32, i32
  }
  func.func @transform_1(%arg0: i32) -> (i32, i32, i32, i32) {
    %c0_i32 = arith.constant 0 : i32
    %c0_i32_0 = arith.constant 0 : i32
    %c0_i32_1 = arith.constant 0 : i32
    %c0_i32_2 = arith.constant 0 : i32
    return %arg0, %c0_i32, %c0_i32_0, %c0_i32_1 : i32, i32, i32, i32
  }
  func.func @transform_2(%arg0: i32) -> (i32, i32, i32, i32) {
    %c0_i32 = arith.constant 0 : i32
    %c0_i32_0 = arith.constant 0 : i32
    %c0_i32_1 = arith.constant 0 : i32
    %c0_i32_2 = arith.constant 0 : i32
    return %arg0, %c0_i32, %c0_i32_0, %c0_i32_1 : i32, i32, i32, i32
  }
  func.func @transform_3(%arg0: i32) -> (i32, i32, i32) {
    %c0_i32 = arith.constant 0 : i32
    %c0_i32_0 = arith.constant 0 : i32
    %c0_i32_1 = arith.constant 0 : i32
    return %arg0, %c0_i32, %c0_i32_0 : i32, i32, i32
  }
  func.func @transform_4(%arg0: i32) -> (i32, i32, i32, i32) {
    %c0_i32 = arith.constant 0 : i32
    %c0_i32_0 = arith.constant 0 : i32
    %c0_i32_1 = arith.constant 0 : i32
    %c0_i32_2 = arith.constant 0 : i32
    return %arg0, %c0_i32, %c0_i32_0, %c0_i32_1 : i32, i32, i32, i32
  }
}

module attributes {stable_mosaic.version = 11 : i64} {
  func.func @_proj_add_ln_kernel(%arg0: i32, %arg1: memref<16x32xf32, #tpu.memory_space<vmem>>, %arg2: memref<32x32xf32, #tpu.memory_space<vmem>>, %arg3: memref<1x32xf32, #tpu.memory_space<vmem>>, %arg4: memref<16x32xf32, #tpu.memory_space<vmem>>, %arg5: memref<1x32xf32, #tpu.memory_space<vmem>>, %arg6: memref<1x32xf32, #tpu.memory_space<vmem>>, %arg7: memref<16x32xf32, #tpu.memory_space<vmem>>) attributes {dimension_semantics = [#tpu.dimension_semantics<parallel>], iteration_bounds = array<i64: 1>, scalar_prefetch = 0 : i64, scratch_operands = 0 : i64, tpu.core_type = #tpu.core_type<tc>, window_params = [{transform_indices = @transform_0, window_bounds = array<i64: 16, 32>}, {pipeline_mode = #tpu.pipeline_mode<synchronous>, transform_indices = @transform_1, window_bounds = array<i64: 32, 32>}, {pipeline_mode = #tpu.pipeline_mode<synchronous>, transform_indices = @transform_2, window_bounds = array<i64: 1, 32>}, {transform_indices = @transform_3, window_bounds = array<i64: 16, 32>}, {pipeline_mode = #tpu.pipeline_mode<synchronous>, transform_indices = @transform_4, window_bounds = array<i64: 1, 32>}, {pipeline_mode = #tpu.pipeline_mode<synchronous>, transform_indices = @transform_5, window_bounds = array<i64: 1, 32>}, {transform_indices = @transform_6, window_bounds = array<i64: 16, 32>}]} {
    %c0 = arith.constant 0 : index
    %c0_0 = arith.constant 0 : index
    %0 = vector.load %arg1[%c0, %c0_0] : memref<16x32xf32, #tpu.memory_space<vmem>>, vector<16x32xf32>
    %1 = arith.truncf %0 : vector<16x32xf32> to vector<16x32xbf16>
    %c0_1 = arith.constant 0 : index
    %c0_2 = arith.constant 0 : index
    %2 = vector.load %arg2[%c0_1, %c0_2] : memref<32x32xf32, #tpu.memory_space<vmem>>, vector<32x32xf32>
    %3 = arith.truncf %2 : vector<32x32xf32> to vector<32x32xbf16>
    %cst = arith.constant dense<0.000000e+00> : vector<16x32xf32>
    %4 = tpu.matmul %1, %3, %cst {dimension_numbers = #tpu.dot_dimension_numbers<[1], [0], [0], [1], [0, 0, 1, 1], [], []>} : vector<16x32xbf16>, vector<32x32xbf16>, vector<16x32xf32> -> vector<16x32xf32>
    %c0_3 = arith.constant 0 : index
    %c0_4 = arith.constant 0 : index
    %5 = vector.load %arg3[%c0_3, %c0_4] : memref<1x32xf32, #tpu.memory_space<vmem>>, vector<1x32xf32>
    %6 = vector.broadcast %5 : vector<1x32xf32> to vector<16x32xf32>
    %7 = arith.addf %4, %6 : vector<16x32xf32>
    %c0_5 = arith.constant 0 : index
    %c0_6 = arith.constant 0 : index
    %8 = vector.load %arg4[%c0_5, %c0_6] : memref<16x32xf32, #tpu.memory_space<vmem>>, vector<16x32xf32>
    %9 = arith.addf %7, %8 : vector<16x32xf32>
    %cst_7 = arith.constant dense<0.000000e+00> : vector<16xf32>
    %10 = vector.multi_reduction <add>, %9, %cst_7 [1] : vector<16x32xf32> to vector<16xf32>
    %11 = vector.shape_cast %10 : vector<16xf32> to vector<16x1xf32>
    %cst_8 = arith.constant 3.200000e+01 : f32
    %12 = vector.broadcast %cst_8 : f32 to vector<16x1xf32>
    %13 = arith.divf %11, %12 : vector<16x1xf32>
    %14 = vector.broadcast %13 : vector<16x1xf32> to vector<16x32xf32>
    %15 = arith.subf %9, %14 : vector<16x32xf32>
    %16 = arith.mulf %15, %15 : vector<16x32xf32>
    %cst_9 = arith.constant dense<0.000000e+00> : vector<16xf32>
    %17 = vector.multi_reduction <add>, %16, %cst_9 [1] : vector<16x32xf32> to vector<16xf32>
    %18 = vector.shape_cast %17 : vector<16xf32> to vector<16x1xf32>
    %cst_10 = arith.constant 3.200000e+01 : f32
    %19 = vector.broadcast %cst_10 : f32 to vector<16x1xf32>
    %20 = arith.divf %18, %19 : vector<16x1xf32>
    %21 = vector.broadcast %13 : vector<16x1xf32> to vector<16x32xf32>
    %22 = arith.subf %9, %21 : vector<16x32xf32>
    %cst_11 = arith.constant 9.99999974E-6 : f32
    %23 = vector.broadcast %cst_11 : f32 to vector<16x1xf32>
    %24 = arith.addf %20, %23 : vector<16x1xf32>
    %25 = math.rsqrt %24 : vector<16x1xf32>
    %26 = vector.broadcast %25 : vector<16x1xf32> to vector<16x32xf32>
    %27 = arith.mulf %22, %26 : vector<16x32xf32>
    %c0_12 = arith.constant 0 : index
    %c0_13 = arith.constant 0 : index
    %28 = vector.load %arg5[%c0_12, %c0_13] : memref<1x32xf32, #tpu.memory_space<vmem>>, vector<1x32xf32>
    %29 = vector.broadcast %28 : vector<1x32xf32> to vector<16x32xf32>
    %30 = arith.mulf %27, %29 : vector<16x32xf32>
    %c0_14 = arith.constant 0 : index
    %c0_15 = arith.constant 0 : index
    %31 = vector.load %arg6[%c0_14, %c0_15] : memref<1x32xf32, #tpu.memory_space<vmem>>, vector<1x32xf32>
    %32 = vector.broadcast %31 : vector<1x32xf32> to vector<16x32xf32>
    %33 = arith.addf %30, %32 : vector<16x32xf32>
    %c0_16 = arith.constant 0 : index
    %c0_17 = arith.constant 0 : index
    %34 = vector.load %arg7[%c0_16, %c0_17] : memref<16x32xf32, #tpu.memory_space<vmem>>, vector<16x32xf32>
    tpu.vector_store %arg7[%c0_16, %c0_17], %33 {strides = array<i32>} : memref<16x32xf32, #tpu.memory_space<vmem>>, vector<16x32xf32>,
    return
  }
  func.func @transform_0(%arg0: i32) -> (i32, i32) {
    %c0_i32 = arith.constant 0 : i32
    %c0_i32_0 = arith.constant 0 : i32
    return %arg0, %c0_i32 : i32, i32
  }
  func.func @transform_1(%arg0: i32) -> (i32, i32) {
    %c0_i32 = arith.constant 0 : i32
    %c0_i32_0 = arith.constant 0 : i32
    %c0_i32_1 = arith.constant 0 : i32
    return %c0_i32, %c0_i32_0 : i32, i32
  }
  func.func @transform_2(%arg0: i32) -> (i32, i32) {
    %c0_i32 = arith.constant 0 : i32
    %c0_i32_0 = arith.constant 0 : i32
    %c0_i32_1 = arith.constant 0 : i32
    return %c0_i32, %c0_i32_0 : i32, i32
  }
  func.func @transform_3(%arg0: i32) -> (i32, i32) {
    %c0_i32 = arith.constant 0 : i32
    %c0_i32_0 = arith.constant 0 : i32
    return %arg0, %c0_i32 : i32, i32
  }
  func.func @transform_4(%arg0: i32) -> (i32, i32) {
    %c0_i32 = arith.constant 0 : i32
    %c0_i32_0 = arith.constant 0 : i32
    %c0_i32_1 = arith.constant 0 : i32
    return %c0_i32, %c0_i32_0 : i32, i32
  }
  func.func @transform_5(%arg0: i32) -> (i32, i32) {
    %c0_i32 = arith.constant 0 : i32
    %c0_i32_0 = arith.constant 0 : i32
    %c0_i32_1 = arith.constant 0 : i32
    return %c0_i32, %c0_i32_0 : i32, i32
  }
  func.func @transform_6(%arg0: i32) -> (i32, i32) {
    %c0_i32 = arith.constant 0 : i32
    %c0_i32_0 = arith.constant 0 : i32
    return %arg0, %c0_i32 : i32, i32
  }
}

module attributes {stable_mosaic.version = 11 : i64} {
  func.func @_linear_kernel(%arg0: i32, %arg1: memref<16x32xf32, #tpu.memory_space<vmem>>, %arg2: memref<32x32xf32, #tpu.memory_space<vmem>>, %arg3: memref<1x32xf32, #tpu.memory_space<vmem>>, %arg4: memref<16x32xf32, #tpu.memory_space<vmem>>) attributes {dimension_semantics = [#tpu.dimension_semantics<parallel>], iteration_bounds = array<i64: 1>, scalar_prefetch = 0 : i64, scratch_operands = 0 : i64, tpu.core_type = #tpu.core_type<tc>, window_params = [{transform_indices = @transform_0, window_bounds = array<i64: 16, 32>}, {pipeline_mode = #tpu.pipeline_mode<synchronous>, transform_indices = @transform_1, window_bounds = array<i64: 32, 32>}, {pipeline_mode = #tpu.pipeline_mode<synchronous>, transform_indices = @transform_2, window_bounds = array<i64: 1, 32>}, {transform_indices = @transform_3, window_bounds = array<i64: 16, 32>}]} {
    %c0 = arith.constant 0 : index
    %c0_0 = arith.constant 0 : index
    %0 = vector.load %arg1[%c0, %c0_0] : memref<16x32xf32, #tpu.memory_space<vmem>>, vector<16x32xf32>
    %1 = arith.truncf %0 : vector<16x32xf32> to vector<16x32xbf16>
    %c0_1 = arith.constant 0 : index
    %c0_2 = arith.constant 0 : index
    %2 = vector.load %arg2[%c0_1, %c0_2] : memref<32x32xf32, #tpu.memory_space<vmem>>, vector<32x32xf32>
    %3 = arith.truncf %2 : vector<32x32xf32> to vector<32x32xbf16>
    %cst = arith.constant dense<0.000000e+00> : vector<16x32xf32>
    %4 = tpu.matmul %1, %3, %cst {dimension_numbers = #tpu.dot_dimension_numbers<[1], [0], [0], [1], [0, 0, 1, 1], [], []>} : vector<16x32xbf16>, vector<32x32xbf16>, vector<16x32xf32> -> vector<16x32xf32>
    %c0_3 = arith.constant 0 : index
    %c0_4 = arith.constant 0 : index
    %5 = vector.load %arg3[%c0_3, %c0_4] : memref<1x32xf32, #tpu.memory_space<vmem>>, vector<1x32xf32>
    %6 = vector.broadcast %5 : vector<1x32xf32> to vector<16x32xf32>
    %7 = arith.addf %4, %6 : vector<16x32xf32>
    %c0_5 = arith.constant 0 : index
    %c0_6 = arith.constant 0 : index
    %8 = vector.load %arg4[%c0_5, %c0_6] : memref<16x32xf32, #tpu.memory_space<vmem>>, vector<16x32xf32>
    tpu.vector_store %arg4[%c0_5, %c0_6], %7 {strides = array<i32>} : memref<16x32xf32, #tpu.memory_space<vmem>>, vector<16x32xf32>,
    return
  }
  func.func @transform_0(%arg0: i32) -> (i32, i32) {
    %c0_i32 = arith.constant 0 : i32
    %c0_i32_0 = arith.constant 0 : i32
    return %arg0, %c0_i32 : i32, i32
  }
  func.func @transform_1(%arg0: i32) -> (i32, i32) {
    %c0_i32 = arith.constant 0 : i32
    %c0_i32_0 = arith.constant 0 : i32
    %c0_i32_1 = arith.constant 0 : i32
    return %c0_i32, %c0_i32_0 : i32, i32
  }
  func.func @transform_2(%arg0: i32) -> (i32, i32) {
    %c0_i32 = arith.constant 0 : i32
    %c0_i32_0 = arith.constant 0 : i32
    %c0_i32_1 = arith.constant 0 : i32
    return %c0_i32, %c0_i32_0 : i32, i32
  }
  func.func @transform_3(%arg0: i32) -> (i32, i32) {
    %c0_i32 = arith.constant 0 : i32
    %c0_i32_0 = arith.constant 0 : i32
    return %arg0, %c0_i32 : i32, i32
  }
}

module attributes {stable_mosaic.version = 11 : i64} {
  func.func @_linear_kernel(%arg0: i32, %arg1: memref<20x32xf32, #tpu.memory_space<vmem>>, %arg2: memref<32x64xf32, #tpu.memory_space<vmem>>, %arg3: memref<1x64xf32, #tpu.memory_space<vmem>>, %arg4: memref<20x64xf32, #tpu.memory_space<vmem>>) attributes {dimension_semantics = [#tpu.dimension_semantics<parallel>], iteration_bounds = array<i64: 1>, scalar_prefetch = 0 : i64, scratch_operands = 0 : i64, tpu.core_type = #tpu.core_type<tc>, window_params = [{transform_indices = @transform_0, window_bounds = array<i64: 20, 32>}, {pipeline_mode = #tpu.pipeline_mode<synchronous>, transform_indices = @transform_1, window_bounds = array<i64: 32, 64>}, {pipeline_mode = #tpu.pipeline_mode<synchronous>, transform_indices = @transform_2, window_bounds = array<i64: 1, 64>}, {transform_indices = @transform_3, window_bounds = array<i64: 20, 64>}]} {
    %c0 = arith.constant 0 : index
    %c0_0 = arith.constant 0 : index
    %0 = vector.load %arg1[%c0, %c0_0] : memref<20x32xf32, #tpu.memory_space<vmem>>, vector<20x32xf32>
    %1 = arith.truncf %0 : vector<20x32xf32> to vector<20x32xbf16>
    %c0_1 = arith.constant 0 : index
    %c0_2 = arith.constant 0 : index
    %2 = vector.load %arg2[%c0_1, %c0_2] : memref<32x64xf32, #tpu.memory_space<vmem>>, vector<32x64xf32>
    %3 = arith.truncf %2 : vector<32x64xf32> to vector<32x64xbf16>
    %cst = arith.constant dense<0.000000e+00> : vector<20x64xf32>
    %4 = tpu.matmul %1, %3, %cst {dimension_numbers = #tpu.dot_dimension_numbers<[1], [0], [0], [1], [0, 0, 1, 1], [], []>} : vector<20x32xbf16>, vector<32x64xbf16>, vector<20x64xf32> -> vector<20x64xf32>
    %c0_3 = arith.constant 0 : index
    %c0_4 = arith.constant 0 : index
    %5 = vector.load %arg3[%c0_3, %c0_4] : memref<1x64xf32, #tpu.memory_space<vmem>>, vector<1x64xf32>
    %6 = vector.broadcast %5 : vector<1x64xf32> to vector<20x64xf32>
    %7 = arith.addf %4, %6 : vector<20x64xf32>
    %c0_5 = arith.constant 0 : index
    %c0_6 = arith.constant 0 : index
    %8 = vector.load %arg4[%c0_5, %c0_6] : memref<20x64xf32, #tpu.memory_space<vmem>>, vector<20x64xf32>
    tpu.vector_store %arg4[%c0_5, %c0_6], %7 {strides = array<i32>} : memref<20x64xf32, #tpu.memory_space<vmem>>, vector<20x64xf32>,
    return
  }
  func.func @transform_0(%arg0: i32) -> (i32, i32) {
    %c0_i32 = arith.constant 0 : i32
    %c0_i32_0 = arith.constant 0 : i32
    return %arg0, %c0_i32 : i32, i32
  }
  func.func @transform_1(%arg0: i32) -> (i32, i32) {
    %c0_i32 = arith.constant 0 : i32
    %c0_i32_0 = arith.constant 0 : i32
    %c0_i32_1 = arith.constant 0 : i32
    return %c0_i32, %c0_i32_0 : i32, i32
  }
  func.func @transform_2(%arg0: i32) -> (i32, i32) {
    %c0_i32 = arith.constant 0 : i32
    %c0_i32_0 = arith.constant 0 : i32
    %c0_i32_1 = arith.constant 0 : i32
    return %c0_i32, %c0_i32_0 : i32, i32
  }
  func.func @transform_3(%arg0: i32) -> (i32, i32) {
    %c0_i32 = arith.constant 0 : i32
    %c0_i32_0 = arith.constant 0 : i32
    return %arg0, %c0_i32 : i32, i32
  }
}

module attributes {stable_mosaic.version = 11 : i64} {
  func.func @_mha_kernel(%arg0: i32, %arg1: memref<1x4x8x8xf32, #tpu.memory_space<vmem>>, %arg2: memref<1x4x10x8xf32, #tpu.memory_space<vmem>>, %arg3: memref<1x4x10x8xf32, #tpu.memory_space<vmem>>, %arg4: memref<1x1x10xf32, #tpu.memory_space<vmem>>, %arg5: memref<1x4x8x8xf32, #tpu.memory_space<vmem>>) attributes {dimension_semantics = [#tpu.dimension_semantics<parallel>], iteration_bounds = array<i64: 2>, scalar_prefetch = 0 : i64, scratch_operands = 0 : i64, tpu.core_type = #tpu.core_type<tc>, window_params = [{transform_indices = @transform_0, window_bounds = array<i64: 1, 4, 8, 8>}, {transform_indices = @transform_1, window_bounds = array<i64: 1, 4, 10, 8>}, {transform_indices = @transform_2, window_bounds = array<i64: 1, 4, 10, 8>}, {transform_indices = @transform_3, window_bounds = array<i64: 1, 1, 10>}, {transform_indices = @transform_4, window_bounds = array<i64: 1, 4, 8, 8>}]} {
    %c0 = arith.constant 0 : index
    %c0_0 = arith.constant 0 : index
    %c0_1 = arith.constant 0 : index
    %c0_2 = arith.constant 0 : index
    %0 = vector.load %arg1[%c0, %c0_0, %c0_1, %c0_2] : memref<1x4x8x8xf32, #tpu.memory_space<vmem>>, vector<1x4x8x8xf32>
    %1 = vector.shape_cast %0 : vector<1x4x8x8xf32> to vector<4x8x8xf32>
    %2 = arith.truncf %1 : vector<4x8x8xf32> to vector<4x8x8xbf16>
    %c0_3 = arith.constant 0 : index
    %c0_4 = arith.constant 0 : index
    %c0_5 = arith.constant 0 : index
    %c0_6 = arith.constant 0 : index
    %3 = vector.load %arg2[%c0_3, %c0_4, %c0_5, %c0_6] : memref<1x4x10x8xf32, #tpu.memory_space<vmem>>, vector<1x4x10x8xf32>
    %4 = vector.shape_cast %3 : vector<1x4x10x8xf32> to vector<4x10x8xf32>
    %5 = arith.truncf %4 : vector<4x10x8xf32> to vector<4x10x8xbf16>
    %c0_7 = arith.constant 0 : index
    %c0_8 = arith.constant 0 : index
    %c0_9 = arith.constant 0 : index
    %c0_10 = arith.constant 0 : index
    %6 = vector.load %arg3[%c0_7, %c0_8, %c0_9, %c0_10] : memref<1x4x10x8xf32, #tpu.memory_space<vmem>>, vector<1x4x10x8xf32>
    %7 = vector.shape_cast %6 : vector<1x4x10x8xf32> to vector<4x10x8xf32>
    %8 = arith.truncf %7 : vector<4x10x8xf32> to vector<4x10x8xbf16>
    %c0_11 = arith.constant 0 : index
    %c0_12 = arith.constant 0 : index
    %c0_13 = arith.constant 0 : index
    %9 = vector.load %arg4[%c0_11, %c0_12, %c0_13] : memref<1x1x10xf32, #tpu.memory_space<vmem>>, vector<1x1x10xf32>
    %10 = vector.shape_cast %9 : vector<1x1x10xf32> to vector<1x10xf32>
    "tpu.trace_start"() <{level = 10 : i32, message = "hqd,hkd->hqk"}> : () -> ()
    %cst = arith.constant dense<0.000000e+00> : vector<4x8x10xf32>
    %11 = tpu.matmul %2, %5, %cst {dimension_numbers = #tpu.dot_dimension_numbers<[2], [2], [1], [1], [0, 0, 0, 1, 1, 1], [0], [0]>} : vector<4x8x8xbf16>, vector<4x10x8xbf16>, vector<4x8x10xf32> -> vector<4x8x10xf32>
    "tpu.trace_stop"() : () -> ()
    %cst_14 = arith.constant 0.353553385 : f32
    %12 = vector.broadcast %cst_14 : f32 to vector<4x8x10xf32>
    %13 = arith.mulf %11, %12 : vector<4x8x10xf32>
    %14 = vector.shape_cast %10 : vector<1x10xf32> to vector<1x1x10xf32>
    %cst_15 = arith.constant 5.000000e-01 : f32
    %15 = vector.broadcast %cst_15 : f32 to vector<1x1x10xf32>
    %16 = arith.cmpf olt, %14, %15 : vector<1x1x10xf32>
    %cst_16 = arith.constant -1.000000e+10 : f32
    %17 = vector.shape_cast %16 : vector<1x1x10xi1> to vector<1x1x10xi1>
    %18 = vector.broadcast %17 : vector<1x1x10xi1> to vector<4x8x10xi1>
    %19 = vector.broadcast %cst_16 : f32 to vector<4x8x10xf32>
    %20 = arith.select %18, %19, %13 : vector<4x8x10xi1>, vector<4x8x10xf32>
    %cst_17 = arith.constant dense<0xFF800000> : vector<4x8xf32>
    %21 = vector.multi_reduction <maximumf>, %20, %cst_17 [2] : vector<4x8x10xf32> to vector<4x8xf32>
    %22 = vector.shape_cast %21 : vector<4x8xf32> to vector<4x8x1xf32>
    %23 = vector.broadcast %22 : vector<4x8x1xf32> to vector<4x8x10xf32>
    %24 = arith.subf %20, %23 : vector<4x8x10xf32>
    %25 = math.exp %24 : vector<4x8x10xf32>
    %cst_18 = arith.constant dense<0.000000e+00> : vector<4x8xf32>
    %26 = vector.multi_reduction <add>, %25, %cst_18 [2] : vector<4x8x10xf32> to vector<4x8xf32>
    %27 = vector.shape_cast %26 : vector<4x8xf32> to vector<4x8x1xf32>
    %28 = tpu.reciprocal %27 {approx = true} : vector<4x8x1xf32> -> vector<4x8x1xf32>
    %29 = vector.broadcast %28 : vector<4x8x1xf32> to vector<4x8x10xf32>
    %30 = arith.mulf %25, %29 : vector<4x8x10xf32>
    %31 = arith.truncf %30 : vector<4x8x10xf32> to vector<4x8x10xbf16>
    "tpu.trace_start"() <{level = 10 : i32, message = "hqk,hkd->hqd"}> : () -> ()
    %cst_19 = arith.constant dense<0.000000e+00> : vector<4x8x8xf32>
    %32 = tpu.matmul %31, %8, %cst_19 {dimension_numbers = #tpu.dot_dimension_numbers<[2], [1], [1], [2], [0, 0, 0, 1, 1, 2], [0], [0]>} : vector<4x8x10xbf16>, vector<4x10x8xbf16>, vector<4x8x8xf32> -> vector<4x8x8xf32>
    "tpu.trace_stop"() : () -> ()
    %c0_20 = arith.constant 0 : index
    %c0_21 = arith.constant 0 : index
    %c0_22 = arith.constant 0 : index
    %c0_23 = arith.constant 0 : index
    %33 = vector.load %arg5[%c0_20, %c0_21, %c0_22, %c0_23] : memref<1x4x8x8xf32, #tpu.memory_space<vmem>>, vector<1x4x8x8xf32>
    %34 = vector.shape_cast %33 : vector<1x4x8x8xf32> to vector<4x8x8xf32>
    %35 = vector.shape_cast %32 : vector<4x8x8xf32> to vector<1x4x8x8xf32>
    tpu.vector_store %arg5[%c0_20, %c0_21, %c0_22, %c0_23], %35 {strides = array<i32>} : memref<1x4x8x8xf32, #tpu.memory_space<vmem>>, vector<1x4x8x8xf32>,
    return
  }
  func.func @transform_0(%arg0: i32) -> (i32, i32, i32, i32) {
    %c0_i32 = arith.constant 0 : i32
    %c0_i32_0 = arith.constant 0 : i32
    %c0_i32_1 = arith.constant 0 : i32
    %c0_i32_2 = arith.constant 0 : i32
    return %arg0, %c0_i32, %c0_i32_0, %c0_i32_1 : i32, i32, i32, i32
  }
  func.func @transform_1(%arg0: i32) -> (i32, i32, i32, i32) {
    %c0_i32 = arith.constant 0 : i32
    %c0_i32_0 = arith.constant 0 : i32
    %c0_i32_1 = arith.constant 0 : i32
    %c0_i32_2 = arith.constant 0 : i32
    return %arg0, %c0_i32, %c0_i32_0, %c0_i32_1 : i32, i32, i32, i32
  }
  func.func @transform_2(%arg0: i32) -> (i32, i32, i32, i32) {
    %c0_i32 = arith.constant 0 : i32
    %c0_i32_0 = arith.constant 0 : i32
    %c0_i32_1 = arith.constant 0 : i32
    %c0_i32_2 = arith.constant 0 : i32
    return %arg0, %c0_i32, %c0_i32_0, %c0_i32_1 : i32, i32, i32, i32
  }
  func.func @transform_3(%arg0: i32) -> (i32, i32, i32) {
    %c0_i32 = arith.constant 0 : i32
    %c0_i32_0 = arith.constant 0 : i32
    %c0_i32_1 = arith.constant 0 : i32
    return %arg0, %c0_i32, %c0_i32_0 : i32, i32, i32
  }
  func.func @transform_4(%arg0: i32) -> (i32, i32, i32, i32) {
    %c0_i32 = arith.constant 0 : i32
    %c0_i32_0 = arith.constant 0 : i32
    %c0_i32_1 = arith.constant 0 : i32
    %c0_i32_2 = arith.constant 0 : i32
    return %arg0, %c0_i32, %c0_i32_0, %c0_i32_1 : i32, i32, i32, i32
  }
}

module attributes {stable_mosaic.version = 11 : i64} {
  func.func @_ffn_add_ln_kernel(%arg0: i32, %arg1: memref<16x32xf32, #tpu.memory_space<vmem>>, %arg2: memref<32x64xf32, #tpu.memory_space<vmem>>, %arg3: memref<1x64xf32, #tpu.memory_space<vmem>>, %arg4: memref<64x32xf32, #tpu.memory_space<vmem>>, %arg5: memref<1x32xf32, #tpu.memory_space<vmem>>, %arg6: memref<1x32xf32, #tpu.memory_space<vmem>>, %arg7: memref<1x32xf32, #tpu.memory_space<vmem>>, %arg8: memref<16x32xf32, #tpu.memory_space<vmem>>) attributes {dimension_semantics = [#tpu.dimension_semantics<parallel>], iteration_bounds = array<i64: 1>, scalar_prefetch = 0 : i64, scratch_operands = 0 : i64, tpu.core_type = #tpu.core_type<tc>, window_params = [{transform_indices = @transform_0, window_bounds = array<i64: 16, 32>}, {pipeline_mode = #tpu.pipeline_mode<synchronous>, transform_indices = @transform_1, window_bounds = array<i64: 32, 64>}, {pipeline_mode = #tpu.pipeline_mode<synchronous>, transform_indices = @transform_2, window_bounds = array<i64: 1, 64>}, {pipeline_mode = #tpu.pipeline_mode<synchronous>, transform_indices = @transform_3, window_bounds = array<i64: 64, 32>}, {pipeline_mode = #tpu.pipeline_mode<synchronous>, transform_indices = @transform_4, window_bounds = array<i64: 1, 32>}, {pipeline_mode = #tpu.pipeline_mode<synchronous>, transform_indices = @transform_5, window_bounds = array<i64: 1, 32>}, {pipeline_mode = #tpu.pipeline_mode<synchronous>, transform_indices = @transform_6, window_bounds = array<i64: 1, 32>}, {transform_indices = @transform_7, window_bounds = array<i64: 16, 32>}]} {
    %c0 = arith.constant 0 : index
    %c0_0 = arith.constant 0 : index
    %0 = vector.load %arg1[%c0, %c0_0] : memref<16x32xf32, #tpu.memory_space<vmem>>, vector<16x32xf32>
    %1 = arith.truncf %0 : vector<16x32xf32> to vector<16x32xbf16>
    %c0_1 = arith.constant 0 : index
    %c0_2 = arith.constant 0 : index
    %2 = vector.load %arg2[%c0_1, %c0_2] : memref<32x64xf32, #tpu.memory_space<vmem>>, vector<32x64xf32>
    %3 = arith.truncf %2 : vector<32x64xf32> to vector<32x64xbf16>
    %cst = arith.constant dense<0.000000e+00> : vector<16x64xf32>
    %4 = tpu.matmul %1, %3, %cst {dimension_numbers = #tpu.dot_dimension_numbers<[1], [0], [0], [1], [0, 0, 1, 1], [], []>} : vector<16x32xbf16>, vector<32x64xbf16>, vector<16x64xf32> -> vector<16x64xf32>
    %c0_3 = arith.constant 0 : index
    %c0_4 = arith.constant 0 : index
    %5 = vector.load %arg3[%c0_3, %c0_4] : memref<1x64xf32, #tpu.memory_space<vmem>>, vector<1x64xf32>
    %6 = vector.broadcast %5 : vector<1x64xf32> to vector<16x64xf32>
    %7 = arith.addf %4, %6 : vector<16x64xf32>
    %cst_5 = arith.constant 0.000000e+00 : f32
    %8 = vector.broadcast %cst_5 : f32 to vector<16x64xf32>
    %9 = arith.maximumf %7, %8 : vector<16x64xf32>
    %10 = arith.truncf %9 : vector<16x64xf32> to vector<16x64xbf16>
    %c0_6 = arith.constant 0 : index
    %c0_7 = arith.constant 0 : index
    %11 = vector.load %arg4[%c0_6, %c0_7] : memref<64x32xf32, #tpu.memory_space<vmem>>, vector<64x32xf32>
    %12 = arith.truncf %11 : vector<64x32xf32> to vector<64x32xbf16>
    %cst_8 = arith.constant dense<0.000000e+00> : vector<16x32xf32>
    %13 = tpu.matmul %10, %12, %cst_8 {dimension_numbers = #tpu.dot_dimension_numbers<[1], [0], [0], [1], [0, 0, 1, 1], [], []>} : vector<16x64xbf16>, vector<64x32xbf16>, vector<16x32xf32> -> vector<16x32xf32>
    %c0_9 = arith.constant 0 : index
    %c0_10 = arith.constant 0 : index
    %14 = vector.load %arg5[%c0_9, %c0_10] : memref<1x32xf32, #tpu.memory_space<vmem>>, vector<1x32xf32>
    %15 = vector.broadcast %14 : vector<1x32xf32> to vector<16x32xf32>
    %16 = arith.addf %13, %15 : vector<16x32xf32>
    %17 = arith.addf %16, %0 : vector<16x32xf32>
    %cst_11 = arith.constant dense<0.000000e+00> : vector<16xf32>
    %18 = vector.multi_reduction <add>, %17, %cst_11 [1] : vector<16x32xf32> to vector<16xf32>
    %19 = vector.shape_cast %18 : vector<16xf32> to vector<16x1xf32>
    %cst_12 = arith.constant 3.200000e+01 : f32
    %20 = vector.broadcast %cst_12 : f32 to vector<16x1xf32>
    %21 = arith.divf %19, %20 : vector<16x1xf32>
    %22 = vector.broadcast %21 : vector<16x1xf32> to vector<16x32xf32>
    %23 = arith.subf %17, %22 : vector<16x32xf32>
    %24 = arith.mulf %23, %23 : vector<16x32xf32>
    %cst_13 = arith.constant dense<0.000000e+00> : vector<16xf32>
    %25 = vector.multi_reduction <add>, %24, %cst_13 [1] : vector<16x32xf32> to vector<16xf32>
    %26 = vector.shape_cast %25 : vector<16xf32> to vector<16x1xf32>
    %cst_14 = arith.constant 3.200000e+01 : f32
    %27 = vector.broadcast %cst_14 : f32 to vector<16x1xf32>
    %28 = arith.divf %26, %27 : vector<16x1xf32>
    %29 = vector.broadcast %21 : vector<16x1xf32> to vector<16x32xf32>
    %30 = arith.subf %17, %29 : vector<16x32xf32>
    %cst_15 = arith.constant 9.99999974E-6 : f32
    %31 = vector.broadcast %cst_15 : f32 to vector<16x1xf32>
    %32 = arith.addf %28, %31 : vector<16x1xf32>
    %33 = math.rsqrt %32 : vector<16x1xf32>
    %34 = vector.broadcast %33 : vector<16x1xf32> to vector<16x32xf32>
    %35 = arith.mulf %30, %34 : vector<16x32xf32>
    %c0_16 = arith.constant 0 : index
    %c0_17 = arith.constant 0 : index
    %36 = vector.load %arg6[%c0_16, %c0_17] : memref<1x32xf32, #tpu.memory_space<vmem>>, vector<1x32xf32>
    %37 = vector.broadcast %36 : vector<1x32xf32> to vector<16x32xf32>
    %38 = arith.mulf %35, %37 : vector<16x32xf32>
    %c0_18 = arith.constant 0 : index
    %c0_19 = arith.constant 0 : index
    %39 = vector.load %arg7[%c0_18, %c0_19] : memref<1x32xf32, #tpu.memory_space<vmem>>, vector<1x32xf32>
    %40 = vector.broadcast %39 : vector<1x32xf32> to vector<16x32xf32>
    %41 = arith.addf %38, %40 : vector<16x32xf32>
    %c0_20 = arith.constant 0 : index
    %c0_21 = arith.constant 0 : index
    %42 = vector.load %arg8[%c0_20, %c0_21] : memref<16x32xf32, #tpu.memory_space<vmem>>, vector<16x32xf32>
    tpu.vector_store %arg8[%c0_20, %c0_21], %41 {strides = array<i32>} : memref<16x32xf32, #tpu.memory_space<vmem>>, vector<16x32xf32>,
    return
  }
  func.func @transform_0(%arg0: i32) -> (i32, i32) {
    %c0_i32 = arith.constant 0 : i32
    %c0_i32_0 = arith.constant 0 : i32
    return %arg0, %c0_i32 : i32, i32
  }
  func.func @transform_1(%arg0: i32) -> (i32, i32) {
    %c0_i32 = arith.constant 0 : i32
    %c0_i32_0 = arith.constant 0 : i32
    %c0_i32_1 = arith.constant 0 : i32
    return %c0_i32, %c0_i32_0 : i32, i32
  }
  func.func @transform_2(%arg0: i32) -> (i32, i32) {
    %c0_i32 = arith.constant 0 : i32
    %c0_i32_0 = arith.constant 0 : i32
    %c0_i32_1 = arith.constant 0 : i32
    return %c0_i32, %c0_i32_0 : i32, i32
  }
  func.func @transform_3(%arg0: i32) -> (i32, i32) {
    %c0_i32 = arith.constant 0 : i32
    %c0_i32_0 = arith.constant 0 : i32
    %c0_i32_1 = arith.constant 0 : i32
    return %c0_i32, %c0_i32_0 : i32, i32
  }
  func.func @transform_4(%arg0: i32) -> (i32, i32) {
    %c0_i32 = arith.constant 0 : i32
    %c0_i32_0 = arith.constant 0 : i32
    %c0_i32_1 = arith.constant 0 : i32
    return %c0_i32, %c0_i32_0 : i32, i32
  }
  func.func @transform_5(%arg0: i32) -> (i32, i32) {
    %c0_i32 = arith.constant 0 : i32
    %c0_i32_0 = arith.constant 0 : i32
    %c0_i32_1 = arith.constant 0 : i32
    return %c0_i32, %c0_i32_0 : i32, i32
  }
  func.func @transform_6(%arg0: i32) -> (i32, i32) {
    %c0_i32 = arith.constant 0 : i32
    %c0_i32_0 = arith.constant 0 : i32
    %c0_i32_1 = arith.constant 0 : i32
    return %c0_i32, %c0_i32_0 : i32, i32
  }
  func.func @transform_7(%arg0: i32) -> (i32, i32) {
    %c0_i32 = arith.constant 0 : i32
    %c0_i32_0 = arith.constant 0 : i32
    return %arg0, %c0_i32 : i32, i32
  }
}

module attributes {stable_mosaic.version = 11 : i64} {
  func.func @_out_logsoftmax_kernel(%arg0: i32, %arg1: memref<16x32xf32, #tpu.memory_space<vmem>>, %arg2: memref<32x50xf32, #tpu.memory_space<vmem>>, %arg3: memref<1x50xf32, #tpu.memory_space<vmem>>, %arg4: memref<16x50xf32, #tpu.memory_space<vmem>>) attributes {dimension_semantics = [#tpu.dimension_semantics<parallel>], iteration_bounds = array<i64: 1>, scalar_prefetch = 0 : i64, scratch_operands = 0 : i64, tpu.core_type = #tpu.core_type<tc>, window_params = [{transform_indices = @transform_0, window_bounds = array<i64: 16, 32>}, {pipeline_mode = #tpu.pipeline_mode<synchronous>, transform_indices = @transform_1, window_bounds = array<i64: 32, 50>}, {pipeline_mode = #tpu.pipeline_mode<synchronous>, transform_indices = @transform_2, window_bounds = array<i64: 1, 50>}, {transform_indices = @transform_3, window_bounds = array<i64: 16, 50>}]} {
    %c0 = arith.constant 0 : index
    %c0_0 = arith.constant 0 : index
    %0 = vector.load %arg1[%c0, %c0_0] : memref<16x32xf32, #tpu.memory_space<vmem>>, vector<16x32xf32>
    %1 = arith.truncf %0 : vector<16x32xf32> to vector<16x32xbf16>
    %c0_1 = arith.constant 0 : index
    %c0_2 = arith.constant 0 : index
    %2 = vector.load %arg2[%c0_1, %c0_2] : memref<32x50xf32, #tpu.memory_space<vmem>>, vector<32x50xf32>
    %3 = arith.truncf %2 : vector<32x50xf32> to vector<32x50xbf16>
    %cst = arith.constant dense<0.000000e+00> : vector<16x50xf32>
    %4 = tpu.matmul %1, %3, %cst {dimension_numbers = #tpu.dot_dimension_numbers<[1], [0], [0], [1], [0, 0, 1, 1], [], []>} : vector<16x32xbf16>, vector<32x50xbf16>, vector<16x50xf32> -> vector<16x50xf32>
    %c0_3 = arith.constant 0 : index
    %c0_4 = arith.constant 0 : index
    %5 = vector.load %arg3[%c0_3, %c0_4] : memref<1x50xf32, #tpu.memory_space<vmem>>, vector<1x50xf32>
    %6 = vector.broadcast %5 : vector<1x50xf32> to vector<16x50xf32>
    %7 = arith.addf %4, %6 : vector<16x50xf32>
    %cst_5 = arith.constant dense<0xFF800000> : vector<16xf32>
    %8 = vector.multi_reduction <maximumf>, %7, %cst_5 [1] : vector<16x50xf32> to vector<16xf32>
    %9 = vector.shape_cast %8 : vector<16xf32> to vector<16x1xf32>
    %10 = vector.broadcast %9 : vector<16x1xf32> to vector<16x50xf32>
    %11 = arith.subf %7, %10 : vector<16x50xf32>
    %12 = math.exp %11 : vector<16x50xf32>
    %cst_6 = arith.constant dense<0.000000e+00> : vector<16xf32>
    %13 = vector.multi_reduction <add>, %12, %cst_6 [1] : vector<16x50xf32> to vector<16xf32>
    %14 = vector.shape_cast %13 : vector<16xf32> to vector<16x1xf32>
    %15 = math.log %14 : vector<16x1xf32>
    %16 = vector.broadcast %15 : vector<16x1xf32> to vector<16x50xf32>
    %17 = arith.subf %11, %16 : vector<16x50xf32>
    %c0_7 = arith.constant 0 : index
    %c0_8 = arith.constant 0 : index
    %18 = vector.load %arg4[%c0_7, %c0_8] : memref<16x50xf32, #tpu.memory_space<vmem>>, vector<16x50xf32>
    tpu.vector_store %arg4[%c0_7, %c0_8], %17 {strides = array<i32>} : memref<16x50xf32, #tpu.memory_space<vmem>>, vector<16x50xf32>,
    return
  }
  func.func @transform_0(%arg0: i32) -> (i32, i32) {
    %c0_i32 = arith.constant 0 : i32
    %c0_i32_0 = arith.constant 0 : i32
    return %arg0, %c0_i32 : i32, i32
  }
  func.func @transform_1(%arg0: i32) -> (i32, i32) {
    %c0_i32 = arith.constant 0 : i32
    %c0_i32_0 = arith.constant 0 : i32
    %c0_i32_1 = arith.constant 0 : i32
    return %c0_i32, %c0_i32_0 : i32, i32
  }
  func.func @transform_2(%arg0: i32) -> (i32, i32) {
    %c0_i32 = arith.constant 0 : i32
    %c0_i32_0 = arith.constant 0 : i32
    %c0_i32_1 = arith.constant 0 : i32
    return %c0_i32, %c0_i32_0 : i32, i32
  }
  func.func @transform_3(%arg0: i32) -> (i32, i32) {
    %c0_i32 = arith.constant 0 : i32
    %c0_i32_0 = arith.constant 0 : i32
    return %arg0, %c0_i32 : i32, i32
  }
}

module attributes {stable_mosaic.version = 11 : i64} {
  func.func @_mha_kernel(%arg0: i32, %arg1: memref<1x4x8x8xf32, #tpu.memory_space<vmem>>, %arg2: memref<1x4x10x8xf32, #tpu.memory_space<vmem>>, %arg3: memref<1x4x10x8xf32, #tpu.memory_space<vmem>>, %arg4: memref<1x1x10xf32, #tpu.memory_space<vmem>>, %arg5: memref<1x4x8x8xf32, #tpu.memory_space<vmem>>, %arg6: memref<1x4x8x10xf32, #tpu.memory_space<vmem>>) attributes {dimension_semantics = [#tpu.dimension_semantics<parallel>], iteration_bounds = array<i64: 2>, scalar_prefetch = 0 : i64, scratch_operands = 0 : i64, tpu.core_type = #tpu.core_type<tc>, window_params = [{transform_indices = @transform_0, window_bounds = array<i64: 1, 4, 8, 8>}, {transform_indices = @transform_1, window_bounds = array<i64: 1, 4, 10, 8>}, {transform_indices = @transform_2, window_bounds = array<i64: 1, 4, 10, 8>}, {transform_indices = @transform_3, window_bounds = array<i64: 1, 1, 10>}, {transform_indices = @transform_4, window_bounds = array<i64: 1, 4, 8, 8>}, {transform_indices = @transform_5, window_bounds = array<i64: 1, 4, 8, 10>}]} {
    %c0 = arith.constant 0 : index
    %c0_0 = arith.constant 0 : index
    %c0_1 = arith.constant 0 : index
    %c0_2 = arith.constant 0 : index
    %0 = vector.load %arg1[%c0, %c0_0, %c0_1, %c0_2] : memref<1x4x8x8xf32, #tpu.memory_space<vmem>>, vector<1x4x8x8xf32>
    %1 = vector.shape_cast %0 : vector<1x4x8x8xf32> to vector<4x8x8xf32>
    %2 = arith.truncf %1 : vector<4x8x8xf32> to vector<4x8x8xbf16>
    %c0_3 = arith.constant 0 : index
    %c0_4 = arith.constant 0 : index
    %c0_5 = arith.constant 0 : index
    %c0_6 = arith.constant 0 : index
    %3 = vector.load %arg2[%c0_3, %c0_4, %c0_5, %c0_6] : memref<1x4x10x8xf32, #tpu.memory_space<vmem>>, vector<1x4x10x8xf32>
    %4 = vector.shape_cast %3 : vector<1x4x10x8xf32> to vector<4x10x8xf32>
    %5 = arith.truncf %4 : vector<4x10x8xf32> to vector<4x10x8xbf16>
    %c0_7 = arith.constant 0 : index
    %c0_8 = arith.constant 0 : index
    %c0_9 = arith.constant 0 : index
    %c0_10 = arith.constant 0 : index
    %6 = vector.load %arg3[%c0_7, %c0_8, %c0_9, %c0_10] : memref<1x4x10x8xf32, #tpu.memory_space<vmem>>, vector<1x4x10x8xf32>
    %7 = vector.shape_cast %6 : vector<1x4x10x8xf32> to vector<4x10x8xf32>
    %8 = arith.truncf %7 : vector<4x10x8xf32> to vector<4x10x8xbf16>
    %c0_11 = arith.constant 0 : index
    %c0_12 = arith.constant 0 : index
    %c0_13 = arith.constant 0 : index
    %9 = vector.load %arg4[%c0_11, %c0_12, %c0_13] : memref<1x1x10xf32, #tpu.memory_space<vmem>>, vector<1x1x10xf32>
    %10 = vector.shape_cast %9 : vector<1x1x10xf32> to vector<1x10xf32>
    "tpu.trace_start"() <{level = 10 : i32, message = "hqd,hkd->hqk"}> : () -> ()
    %cst = arith.constant dense<0.000000e+00> : vector<4x8x10xf32>
    %11 = tpu.matmul %2, %5, %cst {dimension_numbers = #tpu.dot_dimension_numbers<[2], [2], [1], [1], [0, 0, 0, 1, 1, 1], [0], [0]>} : vector<4x8x8xbf16>, vector<4x10x8xbf16>, vector<4x8x10xf32> -> vector<4x8x10xf32>
    "tpu.trace_stop"() : () -> ()
    %cst_14 = arith.constant 0.353553385 : f32
    %12 = vector.broadcast %cst_14 : f32 to vector<4x8x10xf32>
    %13 = arith.mulf %11, %12 : vector<4x8x10xf32>
    %14 = vector.shape_cast %10 : vector<1x10xf32> to vector<1x1x10xf32>
    %cst_15 = arith.constant 5.000000e-01 : f32
    %15 = vector.broadcast %cst_15 : f32 to vector<1x1x10xf32>
    %16 = arith.cmpf olt, %14, %15 : vector<1x1x10xf32>
    %cst_16 = arith.constant -1.000000e+10 : f32
    %17 = vector.shape_cast %16 : vector<1x1x10xi1> to vector<1x1x10xi1>
    %18 = vector.broadcast %17 : vector<1x1x10xi1> to vector<4x8x10xi1>
    %19 = vector.broadcast %cst_16 : f32 to vector<4x8x10xf32>
    %20 = arith.select %18, %19, %13 : vector<4x8x10xi1>, vector<4x8x10xf32>
    %cst_17 = arith.constant dense<0xFF800000> : vector<4x8xf32>
    %21 = vector.multi_reduction <maximumf>, %20, %cst_17 [2] : vector<4x8x10xf32> to vector<4x8xf32>
    %22 = vector.shape_cast %21 : vector<4x8xf32> to vector<4x8x1xf32>
    %23 = vector.broadcast %22 : vector<4x8x1xf32> to vector<4x8x10xf32>
    %24 = arith.subf %20, %23 : vector<4x8x10xf32>
    %25 = math.exp %24 : vector<4x8x10xf32>
    %cst_18 = arith.constant dense<0.000000e+00> : vector<4x8xf32>
    %26 = vector.multi_reduction <add>, %25, %cst_18 [2] : vector<4x8x10xf32> to vector<4x8xf32>
    %27 = vector.shape_cast %26 : vector<4x8xf32> to vector<4x8x1xf32>
    %28 = vector.broadcast %27 : vector<4x8x1xf32> to vector<4x8x10xf32>
    %29 = arith.divf %25, %28 : vector<4x8x10xf32>
    %30 = arith.truncf %29 : vector<4x8x10xf32> to vector<4x8x10xbf16>
    "tpu.trace_start"() <{level = 10 : i32, message = "hqk,hkd->hqd"}> : () -> ()
    %cst_19 = arith.constant dense<0.000000e+00> : vector<4x8x8xf32>
    %31 = tpu.matmul %30, %8, %cst_19 {dimension_numbers = #tpu.dot_dimension_numbers<[2], [1], [1], [2], [0, 0, 0, 1, 1, 2], [0], [0]>} : vector<4x8x10xbf16>, vector<4x10x8xbf16>, vector<4x8x8xf32> -> vector<4x8x8xf32>
    "tpu.trace_stop"() : () -> ()
    %c0_20 = arith.constant 0 : index
    %c0_21 = arith.constant 0 : index
    %c0_22 = arith.constant 0 : index
    %c0_23 = arith.constant 0 : index
    %32 = vector.load %arg5[%c0_20, %c0_21, %c0_22, %c0_23] : memref<1x4x8x8xf32, #tpu.memory_space<vmem>>, vector<1x4x8x8xf32>
    %33 = vector.shape_cast %32 : vector<1x4x8x8xf32> to vector<4x8x8xf32>
    %34 = vector.shape_cast %31 : vector<4x8x8xf32> to vector<1x4x8x8xf32>
    tpu.vector_store %arg5[%c0_20, %c0_21, %c0_22, %c0_23], %34 {strides = array<i32>} : memref<1x4x8x8xf32, #tpu.memory_space<vmem>>, vector<1x4x8x8xf32>,
    %c0_24 = arith.constant 0 : index
    %c0_25 = arith.constant 0 : index
    %c0_26 = arith.constant 0 : index
    %c0_27 = arith.constant 0 : index
    %35 = vector.load %arg6[%c0_24, %c0_25, %c0_26, %c0_27] : memref<1x4x8x10xf32, #tpu.memory_space<vmem>>, vector<1x4x8x10xf32>
    %36 = vector.shape_cast %35 : vector<1x4x8x10xf32> to vector<4x8x10xf32>
    %37 = vector.shape_cast %29 : vector<4x8x10xf32> to vector<1x4x8x10xf32>
    tpu.vector_store %arg6[%c0_24, %c0_25, %c0_26, %c0_27], %37 {strides = array<i32>} : memref<1x4x8x10xf32, #tpu.memory_space<vmem>>, vector<1x4x8x10xf32>,
    return
  }
  func.func @transform_0(%arg0: i32) -> (i32, i32, i32, i32) {
    %c0_i32 = arith.constant 0 : i32
    %c0_i32_0 = arith.constant 0 : i32
    %c0_i32_1 = arith.constant 0 : i32
    %c0_i32_2 = arith.constant 0 : i32
    return %arg0, %c0_i32, %c0_i32_0, %c0_i32_1 : i32, i32, i32, i32
  }
  func.func @transform_1(%arg0: i32) -> (i32, i32, i32, i32) {
    %c0_i32 = arith.constant 0 : i32
    %c0_i32_0 = arith.constant 0 : i32
    %c0_i32_1 = arith.constant 0 : i32
    %c0_i32_2 = arith.constant 0 : i32
    return %arg0, %c0_i32, %c0_i32_0, %c0_i32_1 : i32, i32, i32, i32
  }
  func.func @transform_2(%arg0: i32) -> (i32, i32, i32, i32) {
    %c0_i32 = arith.constant 0 : i32
    %c0_i32_0 = arith.constant 0 : i32
    %c0_i32_1 = arith.constant 0 : i32
    %c0_i32_2 = arith.constant 0 : i32
    return %arg0, %c0_i32, %c0_i32_0, %c0_i32_1 : i32, i32, i32, i32
  }
  func.func @transform_3(%arg0: i32) -> (i32, i32, i32) {
    %c0_i32 = arith.constant 0 : i32
    %c0_i32_0 = arith.constant 0 : i32
    %c0_i32_1 = arith.constant 0 : i32
    return %arg0, %c0_i32, %c0_i32_0 : i32, i32, i32
  }
  func.func @transform_4(%arg0: i32) -> (i32, i32, i32, i32) {
    %c0_i32 = arith.constant 0 : i32
    %c0_i32_0 = arith.constant 0 : i32
    %c0_i32_1 = arith.constant 0 : i32
    %c0_i32_2 = arith.constant 0 : i32
    return %arg0, %c0_i32, %c0_i32_0, %c0_i32_1 : i32, i32, i32, i32
  }
  func.func @transform_5(%arg0: i32) -> (i32, i32, i32, i32) {
    %c0_i32 = arith.constant 0 : i32
    %c0_i32_0 = arith.constant 0 : i32
    %c0_i32_1 = arith.constant 0 : i32
    %c0_i32_2 = arith.constant 0 : i32
    return %arg0, %c0_i32, %c0_i32_0, %c0_i32_1 : i32, i32, i32, i32
  }
}

</mosaic_0001>

<llo_original>
// kernel: decoder_forward.19
$region0: #{decoder_forward.19}
  #allocation0 [shape = 'u32[]', space=smem, size = 0x4, offset = 0x4, fixed_abs, tag = 'smem constant byte address 0x4 - core index']
  #allocation1 [shape = 'u32[144,128]{1,0:T(1,128)}', space=vmem, size = 0x12000, scoped, tag = 'internal scratch']
  %s0 = inlined_call_operand.vmem [shape: f32[16,32], index: 0, kind: input, shape index: {}]
  %s1 = inlined_call_operand.vmem [shape: f32[32,96], index: 1, kind: input, shape index: {}]
  %s2 = inlined_call_operand.vmem [shape: f32[1,96], index: 2, kind: input, shape index: {}]
  %s3 = inlined_call_operand.vmem [shape: f32[16,96], index: 3, kind: output, shape index: {}]
  %s4 = sld [smem:[#allocation0]]
  $region22: #{decoder_forward.19} parent=0
    _
  %s6 = ssub.s32 1, %s4
  %s7 = scalar_select 0, %s6, %s4
  // Predicated region
  $region2: #{decoder_forward.19} parent=0 // pred_check
    _
  $region3: #{decoder_forward.19} parent=0 // pred_check_branch
    %9 = sbr.rel (0) target = $region5
  $region4: #{decoder_forward.19} parent=0 // pred_region
    _
  $region5: #{decoder_forward.19} parent=0 // pred_fallthru
    _
  // Predicated region
  $region6: #{decoder_forward.19} parent=0 // pred_check
    _
  $region7: #{decoder_forward.19} parent=0 // pred_check_branch
    %11 = sbr.rel (0) target = $region9
  $region8: #{decoder_forward.19} parent=0 // pred_region
    _
  $region9: #{decoder_forward.19} parent=0 // pred_fallthru
    _
  // Predicated region
  $region10: #{decoder_forward.19} parent=0 // pred_check
    _
  $region11: #{decoder_forward.19} parent=0 // pred_check_branch
    %13 = sbr.rel (0) target = $region13
  $region12: #{decoder_forward.19} parent=0 // pred_region
    _
  $region13: #{decoder_forward.19} parent=0 // pred_fallthru
    _
  %v15 = vld [vmem:[%s0] sm:$0xff]
  %v16 = vld [vmem:[%s0 + $0x8] sm:$0xff]
  %v17 = vpack.c.bf16 %v16, %v15
  %v18 = vld [vmem:[%s1] sm:$0xff]
  %v19 = vld [vmem:[%s1 + $0x8] sm:$0xff]
  %v20 = vld [vmem:[%s1 + $0x10] sm:$0xff]
  %v21 = vld [vmem:[%s1 + $0x18] sm:$0xff]
  %v22 = vpack.c.bf16 %v19, %v18
  %v23 = vpack.c.bf16 %v21, %v20
  %v24 = vld [vmem:[%s2] sm:$0x1]
  %v26 = vlaneseq
  %v27 = vshrl.u32 %v26, 7
  %v28 = vsub.s32 0, %v27
  %v29 = vrot.slane %v24, %v28
  %vm31 = vcmask 261120
  %v33 = vsel %vm31, %v17, 0
  %35 = vmatprep.subr.bf16.mxu0 0
  %36 = vmatpush1.bf16.msra.mxu0 %v22
  %37 = vmatprep.subr.bf16.mxu0 0
  %38 = vmatpush1.bf16.msra.mxu0 %v23
  %39 = vmatprep.subr.bf16.mxu0 0
  %40 = vmatpush1.bf16.msra.mxu0 0
  %41 = vmatprep.subr.bf16.mxu0 0
  %42 = vmatpush1.bf16.msra.mxu0 0
  %43 = vmatprep.subr.bf16.mxu0 0
  %44 = vmatpush1.bf16.msra.mxu0 0
  %45 = vmatprep.subr.bf16.mxu0 0
  %46 = vmatpush1.bf16.msra.mxu0 0
  %47 = vmatprep.subr.bf16.mxu0 0
  %48 = vmatpush1.bf16.msra.mxu0 0
  %49 = vmatprep.subr.bf16.mxu0 0
  %50 = vmatpush1.bf16.msra.mxu0 0
  %51 = vmatprep.subr.bf16.mxu0 0
  %52 = vmatpush1.bf16.msra.mxu0 0
  %53 = vmatprep.subr.bf16.mxu0 0
  %54 = vmatpush1.bf16.msra.mxu0 0
  %55 = vmatprep.subr.bf16.mxu0 0
  %56 = vmatpush1.bf16.msra.mxu0 0
  %57 = vmatprep.subr.bf16.mxu0 0
  %58 = vmatpush1.bf16.msra.mxu0 0
  %59 = vmatprep.subr.bf16.mxu0 0
  %60 = vmatpush1.bf16.msra.mxu0 0
  %61 = vmatprep.subr.bf16.mxu0 0
  %62 = vmatpush1.bf16.msra.mxu0 0
  %63 = vmatprep.subr.bf16.mxu0 0
  %64 = vmatpush1.bf16.msra.mxu0 0
  %65 = vmatprep.subr.bf16.mxu0 0
  %66 = vmatpush1.bf16.msra.mxu0 0
  %67 = vmatprep.mubr.bf16.mxu0 0
  %68 = vmatmul.mubr.bf16.gmra.mrb[0].mxu0 %v33
  %v69 = vpop.f32.mrb[0].mxu0
  %v70 = vadd.f32 %v29, %v69
  %v71 = vpop.f32.mrb[0].mxu0
  %v72 = vpop.f32.mrb[0].mxu0
  %v73 = vadd.f32 %v29, %v72
  %v74 = vpop.f32.mrb[0].mxu0
  %75 = vdwg.mxu0
  %vm76 = vcmask 785408
  %77 = vst.msk [vmem:[%s3] sm:$0xff] %vm76, %v70
  %78 = vst.msk [vmem:[%s3 + $0x8] sm:$0xff] %vm76, %v73
  // Predicated region
  $region14: #{decoder_forward.19} parent=0 // pred_check
    _
  $region15: #{decoder_forward.19} parent=0 // pred_check_branch
    %80 = sbr.rel (0) target = $region17
  $region16: #{decoder_forward.19} parent=0 // pred_region
    _
  $region17: #{decoder_forward.19} parent=0 // pred_fallthru
    _
  // Predicated region
  $region18: #{decoder_forward.19} parent=0 // pred_check
    _
  $region19: #{decoder_forward.19} parent=0 // pred_check_branch
    %82 = sbr.rel (0) target = $region21
  $region20: #{decoder_forward.19} parent=0 // pred_region
    _
  $region21: #{decoder_forward.19} parent=0 // pred_fallthru
    _

// kernel: decoder_forward.18
$region0: #{decoder_forward.18}
  #allocation0 [shape = 'u32[]', space=smem, size = 0x4, offset = 0x4, fixed_abs, tag = 'smem constant byte address 0x4 - core index']
  #allocation1 [shape = 'u32[144,128]{1,0:T(1,128)}', space=vmem, size = 0x12000, scoped, tag = 'internal scratch']
  %s0 = inlined_call_operand.vmem [shape: f32[2,8,32], index: 0, kind: input, shape index: {}]
  %s1 = inlined_call_operand.vmem [shape: f32[8,32], index: 1, kind: input, shape index: {}]
  %s2 = inlined_call_operand.vmem [shape: f32[2,8,32], index: 2, kind: output, shape index: {}]
  %s3 = sld [smem:[#allocation0]]
  $region41: #{decoder_forward.18} parent=0
    _
  %s5 = ssub.s32 1, %s3
  %s6 = scalar_select 0, %s5, %s3
  loop: start=0, step=1, limit=4
  $region2: #{decoder_forward.18} parent=0 // loop_pre_header
    _
  $region3: #{decoder_forward.18} parent=0 // loop_header
    %s8 = sphi 0, %s12
    %p9 = scmp.ge.s32.totalorder %s8, 4
    %s18 = sphi 0, %s20
    %s21 = sphi 0, %s18
    %s22 = sphi 0, %s21
    %s38 = sphi 0, %s22
    %s42 = sphi 0, %s42
    %s44 = sphi 0, %s42
    %s45 = sphi 0, %s44
    %s59 = sphi 0, %s45
    %s65 = sphi 0, %s67
    %s68 = sphi 0, %s65
    %s69 = sphi 0, %s68
    %s85 = sphi 0, %s69
  $region4: #{decoder_forward.18} parent=0 // loop_header_branch
    %11 = sbr.rel (%p9) target = $region8
  $region5: #{decoder_forward.18} parent=0 // loop_body
    %s13 = ssub.s32 %s8, 1
    %s14 = ssub.s32 %s8, 2
    %s15 = sadd.s32 %s8, 1
    %s16 = ssub.s32 %s8, %s15
    %p17 = scmp.eq.s32.totalorder %s16, 0
    %s19 = sadd.s32 %s18, 1
    %s20 = scalar_select %p17, %s18, %s19
    %p23 = pneg %p17
    %p24 = scmp.eq.s32.totalorder %s8, 1
    %p25 = por %p23, %p24
    %p26 = scmp.ne.s32.totalorder %s18, %s21
    %p27 = scmp.eq.s32.totalorder %s8, 0
    %p28 = por %p26, %p27
    %p29 = scmp.ne.s32.totalorder %s18, %s21
    %p30 = scmp.eq.s32.totalorder %s13, 1
    %p31 = por %p29, %p30
    %p32 = scmp.ne.s32.totalorder %s21, %s22
    %p33 = scmp.eq.s32.totalorder %s13, 0
    %p34 = por %p32, %p33
    %p35 = scmp.ne.s32.totalorder %s21, %s22
    %p36 = scmp.eq.s32.totalorder %s14, 1
    %p37 = por %p35, %p36
    %p39 = scmp.ne.s32.totalorder %s22, %s38
    %p40 = scmp.eq.s32.totalorder %s14, 0
    %p41 = por %p39, %p40
    %s43 = sadd.s32 %s42, 1
    %p46 = scmp.eq.s32.totalorder %s8, 1
    %p47 = scmp.ne.s32.totalorder %s42, %s44
    %p48 = scmp.eq.s32.totalorder %s8, 0
    %p49 = por %p47, %p48
    %p50 = scmp.ne.s32.totalorder %s42, %s44
    %p51 = scmp.eq.s32.totalorder %s13, 1
    %p52 = por %p50, %p51
    %p53 = scmp.ne.s32.totalorder %s44, %s45
    %p54 = scmp.eq.s32.totalorder %s13, 0
    %p55 = por %p53, %p54
    %p56 = scmp.ne.s32.totalorder %s44, %s45
    %p57 = scmp.eq.s32.totalorder %s14, 1
    %p58 = por %p56, %p57
    %p60 = scmp.ne.s32.totalorder %s45, %s59
    %p61 = scmp.eq.s32.totalorder %s14, 0
    %p62 = por %p60, %p61
    %s63 = ssub.s32 %s8, %s15
    %p64 = scmp.eq.s32.totalorder %s63, 0
    %s66 = sadd.s32 %s65, 1
    %s67 = scalar_select %p64, %s65, %s66
    %p70 = pneg %p64
    %p71 = scmp.eq.s32.totalorder %s8, 1
    %p72 = por %p70, %p71
    %p73 = scmp.ne.s32.totalorder %s65, %s68
    %p74 = scmp.eq.s32.totalorder %s8, 0
    %p75 = por %p73, %p74
    %p76 = scmp.ne.s32.totalorder %s65, %s68
    %p77 = scmp.eq.s32.totalorder %s13, 1
    %p78 = por %p76, %p77
    %p79 = scmp.ne.s32.totalorder %s68, %s69
    %p80 = scmp.eq.s32.totalorder %s13, 0
    %p81 = por %p79, %p80
    %p82 = scmp.ne.s32.totalorder %s68, %s69
    %p83 = scmp.eq.s32.totalorder %s14, 1
    %p84 = por %p82, %p83
    %p86 = scmp.ne.s32.totalorder %s69, %s85
    %p87 = scmp.eq.s32.totalorder %s14, 0
    %p88 = por %p86, %p87
    %p89 = scmp.le.s32.totalorder 1, %s8
    %p90 = scmp.lt.s32.totalorder %s8, 3
    %p91 = pnand %p89, %p90
    %p92 = pneg %p91
    // Predicated region
    $region9: #{decoder_forward.18} parent=5 // pred_check
      _
    $region10: #{decoder_forward.18} parent=5 // pred_check_branch
      %94 = sbr.rel (%p91) target = $region12
    $region11: #{decoder_forward.18} parent=5 // pred_region
      %s95 = ssub.s32 %s8, 1
      // Predicated region
      $region13: #{decoder_forward.18} parent=11 // pred_check
        %p96 = pneg %p55
      $region14: #{decoder_forward.18} parent=11 // pred_check_branch
        %98 = sbr.rel (%p96) target = $region16
      $region15: #{decoder_forward.18} parent=11 // pred_region
        _
      $region16: #{decoder_forward.18} parent=11 // pred_fallthru
        _
    $region12: #{decoder_forward.18} parent=5 // pred_fallthru
      _
    %p99 = scmp.lt.s32.totalorder %s8, 2
    // Predicated region
    $region17: #{decoder_forward.18} parent=5 // pred_check
      %p100 = pneg %p99
    $region18: #{decoder_forward.18} parent=5 // pred_check_branch
      %102 = sbr.rel (%p100) target = $region20
    $region19: #{decoder_forward.18} parent=5 // pred_region
      // Predicated region
      $region21: #{decoder_forward.18} parent=19 // pred_check
        %p103 = pneg %p28
      $region22: #{decoder_forward.18} parent=19 // pred_check_branch
        %105 = sbr.rel (%p103) target = $region24
      $region23: #{decoder_forward.18} parent=19 // pred_region
        %p106 = scmp.lt.s32.totalorder %s8, 1
        %s107 = scalar_select %p106, %s8, 1
        %s108 = smul.addr %s107, 8
        %s109 = scalar_lea.vmem %s0, %s108
      $region24: #{decoder_forward.18} parent=19 // pred_fallthru
        _
    $region20: #{decoder_forward.18} parent=5 // pred_fallthru
      _
    %p110 = scmp.le.s32.totalorder 1, %s8
    %p111 = scmp.lt.s32.totalorder %s8, 3
    %p112 = pnand %p110, %p111
    %p113 = pneg %p112
    // Predicated region
    $region25: #{decoder_forward.18} parent=5 // pred_check
      _
    $region26: #{decoder_forward.18} parent=5 // pred_check_branch
      %115 = sbr.rel (%p112) target = $region28
    $region27: #{decoder_forward.18} parent=5 // pred_region
      %s116 = ssub.s32 %s8, 1
      %p117 = scmp.lt.s32.totalorder %s13, 1
      %s118 = scalar_select %p117, %s13, 1
      %s119 = smul.addr %s118, 8
      %s120 = scalar_lea.vmem %s0, %s119
      %p121 = pneg %p34
      %p122 = pneg %p31
      %p123 = pneg %p55
      %p124 = pneg %p52
      %p125 = pneg %p81
      %p126 = pneg %p78
      %p127 = scmp.lt.s32.totalorder %s13, 1
      %s128 = scalar_select %p127, %s13, 1
      %s129 = smul.addr %s128, 8
      %s130 = scalar_lea.vmem %s2, %s129
      %p131 = scmp.lt.s32.totalorder %s13, 1
      %s132 = scalar_select %p131, %s13, 1
      %s133 = smul.addr %s132, 8
      %s134 = scalar_lea.vmem %s0, %s133
      %p135 = scmp.lt.s32.totalorder %s13, 1
      %s136 = scalar_select %p135, %s13, 1
      %s137 = smul.addr %s136, 8
      %s138 = scalar_lea.vmem %s2, %s137
      %v139 = vld [vmem:[%s134] sm:$0xff]
      %v140 = vmul.f32 %v139, 5.656854
      %v141 = vld [vmem:[%s1] sm:$0xff]
      %v142 = vadd.f32 %v140, %v141
      %vm143 = vcmask 261120
      %144 = vst.msk [vmem:[%s138] sm:$0xff] %vm143, %v142
      %p145 = scmp.lt.s32.totalorder %s13, 1
      %s146 = scalar_select %p145, %s13, 1
      %s147 = smul.addr %s146, 8
      %s148 = scalar_lea.vmem %s2, %s147
      // Predicated region
      $region29: #{decoder_forward.18} parent=27 // pred_check
        %p149 = pneg %p78
      $region30: #{decoder_forward.18} parent=27 // pred_check_branch
        %151 = sbr.rel (%p149) target = $region32
      $region31: #{decoder_forward.18} parent=27 // pred_region
        _
      $region32: #{decoder_forward.18} parent=27 // pred_fallthru
        _
    $region28: #{decoder_forward.18} parent=5 // pred_fallthru
      _
    %p152 = scmp.le.s32.totalorder 2, %s8
    // Predicated region
    $region33: #{decoder_forward.18} parent=5 // pred_check
      %p153 = pneg %p152
    $region34: #{decoder_forward.18} parent=5 // pred_check_branch
      %155 = sbr.rel (%p153) target = $region36
    $region35: #{decoder_forward.18} parent=5 // pred_region
      %s156 = ssub.s32 %s8, 2
      // Predicated region
      $region37: #{decoder_forward.18} parent=35 // pred_check
        %p157 = pneg %p84
      $region38: #{decoder_forward.18} parent=35 // pred_check_branch
        %159 = sbr.rel (%p157) target = $region40
      $region39: #{decoder_forward.18} parent=35 // pred_region
        %p160 = scmp.lt.s32.totalorder %s14, 1
        %s161 = scalar_select %p160, %s14, 1
        %s162 = smul.addr %s161, 8
        %s163 = scalar_lea.vmem %s2, %s162
      $region40: #{decoder_forward.18} parent=35 // pred_fallthru
        _
    $region36: #{decoder_forward.18} parent=5 // pred_fallthru
      _
  $region6: #{decoder_forward.18} parent=0 // loop_footer
    %s12 = sadd.s32 1, %s8
  $region7: #{decoder_forward.18} parent=0 // loop_footer_branch
    %7 = sbr.rel target = $region3
  $region8: #{decoder_forward.18} parent=0 // loop_exit
    _

// kernel: decoder_forward.20
$region0: #{decoder_forward.20}
  #allocation0 [shape = 'u32[]', space=smem, size = 0x4, offset = 0x4, fixed_abs, tag = 'smem constant byte address 0x4 - core index']
  #allocation1 [shape = 'u32[144,128]{1,0:T(1,128)}', space=vmem, size = 0x12000, scoped, tag = 'internal scratch']
  %s0 = inlined_call_operand.vmem [shape: f32[2,4,8,8], index: 0, kind: input, shape index: {}]
  %s1 = inlined_call_operand.vmem [shape: f32[2,4,8,8], index: 1, kind: input, shape index: {}]
  %s2 = inlined_call_operand.vmem [shape: f32[2,4,8,8], index: 2, kind: input, shape index: {}]
  %s3 = inlined_call_operand.vmem [shape: f32[2,8,8], index: 3, kind: input, shape index: {}]
  %s4 = inlined_call_operand.vmem [shape: f32[2,4,8,8], index: 4, kind: output, shape index: {}]
  %s5 = sld [smem:[#allocation0]]
  $region49: #{decoder_forward.20} parent=0
    _
  %s7 = ssub.s32 1, %s5
  %s8 = scalar_select 0, %s7, %s5
  loop: start=0, step=1, limit=4
  $region2: #{decoder_forward.20} parent=0 // loop_pre_header
    _
  $region3: #{decoder_forward.20} parent=0 // loop_header
    %s10 = sphi 0, %s14
    %p11 = scmp.ge.s32.totalorder %s10, 4
    %s20 = sphi 0, %s22
    %s23 = sphi 0, %s20
    %s24 = sphi 0, %s23
    %s40 = sphi 0, %s24
    %s46 = sphi 0, %s48
    %s49 = sphi 0, %s46
    %s50 = sphi 0, %s49
    %s66 = sphi 0, %s50
    %s72 = sphi 0, %s74
    %s75 = sphi 0, %s72
    %s76 = sphi 0, %s75
    %s92 = sphi 0, %s76
    %s98 = sphi 0, %s100
    %s101 = sphi 0, %s98
    %s102 = sphi 0, %s101
    %s118 = sphi 0, %s102
    %s124 = sphi 0, %s126
    %s127 = sphi 0, %s124
    %s128 = sphi 0, %s127
    %s144 = sphi 0, %s128
  $region4: #{decoder_forward.20} parent=0 // loop_header_branch
    %13 = sbr.rel (%p11) target = $region8
  $region5: #{decoder_forward.20} parent=0 // loop_body
    %s15 = ssub.s32 %s10, 1
    %s16 = ssub.s32 %s10, 2
    %s17 = sadd.s32 %s10, 1
    %s18 = ssub.s32 %s10, %s17
    %p19 = scmp.eq.s32.totalorder %s18, 0
    %s21 = sadd.s32 %s20, 1
    %s22 = scalar_select %p19, %s20, %s21
    %p25 = pneg %p19
    %p26 = scmp.eq.s32.totalorder %s10, 1
    %p27 = por %p25, %p26
    %p28 = scmp.ne.s32.totalorder %s20, %s23
    %p29 = scmp.eq.s32.totalorder %s10, 0
    %p30 = por %p28, %p29
    %p31 = scmp.ne.s32.totalorder %s20, %s23
    %p32 = scmp.eq.s32.totalorder %s15, 1
    %p33 = por %p31, %p32
    %p34 = scmp.ne.s32.totalorder %s23, %s24
    %p35 = scmp.eq.s32.totalorder %s15, 0
    %p36 = por %p34, %p35
    %p37 = scmp.ne.s32.totalorder %s23, %s24
    %p38 = scmp.eq.s32.totalorder %s16, 1
    %p39 = por %p37, %p38
    %p41 = scmp.ne.s32.totalorder %s24, %s40
    %p42 = scmp.eq.s32.totalorder %s16, 0
    %p43 = por %p41, %p42
    %s44 = ssub.s32 %s10, %s17
    %p45 = scmp.eq.s32.totalorder %s44, 0
    %s47 = sadd.s32 %s46, 1
    %s48 = scalar_select %p45, %s46, %s47
    %p51 = pneg %p45
    %p52 = scmp.eq.s32.totalorder %s10, 1
    %p53 = por %p51, %p52
    %p54 = scmp.ne.s32.totalorder %s46, %s49
    %p55 = scmp.eq.s32.totalorder %s10, 0
    %p56 = por %p54, %p55
    %p57 = scmp.ne.s32.totalorder %s46, %s49
    %p58 = scmp.eq.s32.totalorder %s15, 1
    %p59 = por %p57, %p58
    %p60 = scmp.ne.s32.totalorder %s49, %s50
    %p61 = scmp.eq.s32.totalorder %s15, 0
    %p62 = por %p60, %p61
    %p63 = scmp.ne.s32.totalorder %s49, %s50
    %p64 = scmp.eq.s32.totalorder %s16, 1
    %p65 = por %p63, %p64
    %p67 = scmp.ne.s32.totalorder %s50, %s66
    %p68 = scmp.eq.s32.totalorder %s16, 0
    %p69 = por %p67, %p68
    %s70 = ssub.s32 %s10, %s17
    %p71 = scmp.eq.s32.totalorder %s70, 0
    %s73 = sadd.s32 %s72, 1
    %s74 = scalar_select %p71, %s72, %s73
    %p77 = pneg %p71
    %p78 = scmp.eq.s32.totalorder %s10, 1
    %p79 = por %p77, %p78
    %p80 = scmp.ne.s32.totalorder %s72, %s75
    %p81 = scmp.eq.s32.totalorder %s10, 0
    %p82 = por %p80, %p81
    %p83 = scmp.ne.s32.totalorder %s72, %s75
    %p84 = scmp.eq.s32.totalorder %s15, 1
    %p85 = por %p83, %p84
    %p86 = scmp.ne.s32.totalorder %s75, %s76
    %p87 = scmp.eq.s32.totalorder %s15, 0
    %p88 = por %p86, %p87
    %p89 = scmp.ne.s32.totalorder %s75, %s76
    %p90 = scmp.eq.s32.totalorder %s16, 1
    %p91 = por %p89, %p90
    %p93 = scmp.ne.s32.totalorder %s76, %s92
    %p94 = scmp.eq.s32.totalorder %s16, 0
    %p95 = por %p93, %p94
    %s96 = ssub.s32 %s10, %s17
    %p97 = scmp.eq.s32.totalorder %s96, 0
    %s99 = sadd.s32 %s98, 1
    %s100 = scalar_select %p97, %s98, %s99
    %p103 = pneg %p97
    %p104 = scmp.eq.s32.totalorder %s10, 1
    %p105 = por %p103, %p104
    %p106 = scmp.ne.s32.totalorder %s98, %s101
    %p107 = scmp.eq.s32.totalorder %s10, 0
    %p108 = por %p106, %p107
    %p109 = scmp.ne.s32.totalorder %s98, %s101
    %p110 = scmp.eq.s32.totalorder %s15, 1
    %p111 = por %p109, %p110
    %p112 = scmp.ne.s32.totalorder %s101, %s102
    %p113 = scmp.eq.s32.totalorder %s15, 0
    %p114 = por %p112, %p113
    %p115 = scmp.ne.s32.totalorder %s101, %s102
    %p116 = scmp.eq.s32.totalorder %s16, 1
    %p117 = por %p115, %p116
    %p119 = scmp.ne.s32.totalorder %s102, %s118
    %p120 = scmp.eq.s32.totalorder %s16, 0
    %p121 = por %p119, %p120
    %s122 = ssub.s32 %s10, %s17
    %p123 = scmp.eq.s32.totalorder %s122, 0
    %s125 = sadd.s32 %s124, 1
    %s126 = scalar_select %p123, %s124, %s125
    %p129 = pneg %p123
    %p130 = scmp.eq.s32.totalorder %s10, 1
    %p131 = por %p129, %p130
    %p132 = scmp.ne.s32.totalorder %s124, %s127
    %p133 = scmp.eq.s32.totalorder %s10, 0
    %p134 = por %p132, %p133
    %p135 = scmp.ne.s32.totalorder %s124, %s127
    %p136 = scmp.eq.s32.totalorder %s15, 1
    %p137 = por %p135, %p136
    %p138 = scmp.ne.s32.totalorder %s127, %s128
    %p139 = scmp.eq.s32.totalorder %s15, 0
    %p140 = por %p138, %p139
    %p141 = scmp.ne.s32.totalorder %s127, %s128
    %p142 = scmp.eq.s32.totalorder %s16, 1
    %p143 = por %p141, %p142
    %p145 = scmp.ne.s32.totalorder %s128, %s144
    %p146 = scmp.eq.s32.totalorder %s16, 0
    %p147 = por %p145, %p146
    %p148 = scmp.le.s32.totalorder 1, %s10
    %p149 = scmp.lt.s32.totalorder %s10, 3
    %p150 = pnand %p148, %p149
    %p151 = pneg %p150
    // Predicated region
    $region9: #{decoder_forward.20} parent=5 // pred_check
      _
    $region10: #{decoder_forward.20} parent=5 // pred_check_branch
      %153 = sbr.rel (%p150) target = $region12
    $region11: #{decoder_forward.20} parent=5 // pred_region
      %s154 = ssub.s32 %s10, 1
    $region12: #{decoder_forward.20} parent=5 // pred_fallthru
      _
    %p155 = scmp.lt.s32.totalorder %s10, 2
    // Predicated region
    $region13: #{decoder_forward.20} parent=5 // pred_check
      %p156 = pneg %p155
    $region14: #{decoder_forward.20} parent=5 // pred_check_branch
      %158 = sbr.rel (%p156) target = $region16
    $region15: #{decoder_forward.20} parent=5 // pred_region
      // Predicated region
      $region17: #{decoder_forward.20} parent=15 // pred_check
        %p159 = pneg %p30
      $region18: #{decoder_forward.20} parent=15 // pred_check_branch
        %161 = sbr.rel (%p159) target = $region20
      $region19: #{decoder_forward.20} parent=15 // pred_region
        %p162 = scmp.lt.s32.totalorder %s10, 1
        %s163 = scalar_select %p162, %s10, 1
        %s164 = smul.addr %s163, 4
        %s165 = smul.addr %s164, 8
        %s166 = scalar_lea.vmem %s0, %s165
      $region20: #{decoder_forward.20} parent=15 // pred_fallthru
        _
      // Predicated region
      $region21: #{decoder_forward.20} parent=15 // pred_check
        %p167 = pneg %p56
      $region22: #{decoder_forward.20} parent=15 // pred_check_branch
        %169 = sbr.rel (%p167) target = $region24
      $region23: #{decoder_forward.20} parent=15 // pred_region
        %p170 = scmp.lt.s32.totalorder %s10, 1
        %s171 = scalar_select %p170, %s10, 1
        %s172 = smul.addr %s171, 4
        %s173 = smul.addr %s172, 8
        %s174 = scalar_lea.vmem %s1, %s173
      $region24: #{decoder_forward.20} parent=15 // pred_fallthru
        _
      // Predicated region
      $region25: #{decoder_forward.20} parent=15 // pred_check
        %p175 = pneg %p82
      $region26: #{decoder_forward.20} parent=15 // pred_check_branch
        %177 = sbr.rel (%p175) target = $region28
      $region27: #{decoder_forward.20} parent=15 // pred_region
        %p178 = scmp.lt.s32.totalorder %s10, 1
        %s179 = scalar_select %p178, %s10, 1
        %s180 = smul.addr %s179, 4
        %s181 = smul.addr %s180, 8
        %s182 = scalar_lea.vmem %s2, %s181
      $region28: #{decoder_forward.20} parent=15 // pred_fallthru
        _
      // Predicated region
      $region29: #{decoder_forward.20} parent=15 // pred_check
        %p183 = pneg %p108
      $region30: #{decoder_forward.20} parent=15 // pred_check_branch
        %185 = sbr.rel (%p183) target = $region32
      $region31: #{decoder_forward.20} parent=15 // pred_region
        %p186 = scmp.lt.s32.totalorder %s10, 1
        %s187 = scalar_select %p186, %s10, 1
        %s188 = smul.addr %s187, 8
        %s189 = scalar_lea.vmem %s3, %s188
      $region32: #{decoder_forward.20} parent=15 // pred_fallthru
        _
    $region16: #{decoder_forward.20} parent=5 // pred_fallthru
      _
    %p190 = scmp.le.s32.totalorder 1, %s10
    %p191 = scmp.lt.s32.totalorder %s10, 3
    %p192 = pnand %p190, %p191
    %p193 = pneg %p192
    // Predicated region
    $region33: #{decoder_forward.20} parent=5 // pred_check
      _
    $region34: #{decoder_forward.20} parent=5 // pred_check_branch
      %195 = sbr.rel (%p192) target = $region36
    $region35: #{decoder_forward.20} parent=5 // pred_region
      %s196 = ssub.s32 %s10, 1
      %p197 = scmp.lt.s32.totalorder %s15, 1
      %s198 = scalar_select %p197, %s15, 1
      %s199 = smul.addr %s198, 4
      %s200 = smul.addr %s199, 8
      %s201 = scalar_lea.vmem %s0, %s200
      %p202 = pneg %p36
      %p203 = pneg %p33
      %p204 = scmp.lt.s32.totalorder %s15, 1
      %s205 = scalar_select %p204, %s15, 1
      %s206 = smul.addr %s205, 4
      %s207 = smul.addr %s206, 8
      %s208 = scalar_lea.vmem %s1, %s207
      %p209 = pneg %p62
      %p210 = pneg %p59
      %p211 = scmp.lt.s32.totalorder %s15, 1
      %s212 = scalar_select %p211, %s15, 1
      %s213 = smul.addr %s212, 4
      %s214 = smul.addr %s213, 8
      %s215 = scalar_lea.vmem %s2, %s214
      %p216 = pneg %p88
      %p217 = pneg %p85
      %p218 = scmp.lt.s32.totalorder %s15, 1
      %s219 = scalar_select %p218, %s15, 1
      %s220 = smul.addr %s219, 8
      %s221 = scalar_lea.vmem %s3, %s220
      %p222 = pneg %p114
      %p223 = pneg %p111
      %p224 = pneg %p140
      %p225 = pneg %p137
      %p226 = scmp.lt.s32.totalorder %s15, 1
      %s227 = scalar_select %p226, %s15, 1
      %s228 = smul.addr %s227, 4
      %s229 = smul.addr %s228, 8
      %s230 = scalar_lea.vmem %s4, %s229
      %p231 = scmp.lt.s32.totalorder %s15, 1
      %s232 = scalar_select %p231, %s15, 1
      %s233 = smul.addr %s232, 4
      %s234 = smul.addr %s233, 8
      %s235 = scalar_lea.vmem %s0, %s234
      %p236 = scmp.lt.s32.totalorder %s15, 1
      %s237 = scalar_select %p236, %s15, 1
      %s238 = smul.addr %s237, 4
      %s239 = smul.addr %s238, 8
      %s240 = scalar_lea.vmem %s1, %s239
      %p241 = scmp.lt.s32.totalorder %s15, 1
      %s242 = scalar_select %p241, %s15, 1
      %s243 = smul.addr %s242, 4
      %s244 = smul.addr %s243, 8
      %s245 = scalar_lea.vmem %s2, %s244
      %p246 = scmp.lt.s32.totalorder %s15, 1
      %s247 = scalar_select %p246, %s15, 1
      %s248 = smul.addr %s247, 8
      %s249 = scalar_lea.vmem %s3, %s248
      %p250 = scmp.lt.s32.totalorder %s15, 1
      %s251 = scalar_select %p250, %s15, 1
      %s252 = smul.addr %s251, 4
      %s253 = smul.addr %s252, 8
      %s254 = scalar_lea.vmem %s4, %s253
      %v256 = vld [vmem:[%s235] sm:$0xff]
      %v257 = vld [vmem:[%s235 + $0x8] sm:$0xff]
      %v258 = vld [vmem:[%s235 + $0x10] sm:$0xff]
      %v259 = vld [vmem:[%s235 + $0x18] sm:$0xff]
      %v260 = vpack.c.bf16 %v256, %v256
      %v261 = vpack.c.bf16 %v257, %v257
      %v262 = vpack.c.bf16 %v258, %v258
      %v263 = vpack.c.bf16 %v259, %v259
      %v264 = vld [vmem:[%s240] sm:$0xff]
      %v265 = vld [vmem:[%s240 + $0x8] sm:$0xff]
      %v266 = vld [vmem:[%s240 + $0x10] sm:$0xff]
      %v267 = vld [vmem:[%s240 + $0x18] sm:$0xff]
      %v268 = vpack.c.bf16 %v264, %v264
      %v269 = vpack.c.bf16 %v265, %v265
      %v270 = vpack.c.bf16 %v266, %v266
      %v271 = vpack.c.bf16 %v267, %v267
      %v272 = vld [vmem:[%s245] sm:$0xff]
      %v273 = vld [vmem:[%s245 + $0x8] sm:$0xff]
      %v274 = vld [vmem:[%s245 + $0x10] sm:$0xff]
      %v275 = vld [vmem:[%s245 + $0x18] sm:$0xff]
      %v276 = vpack.c.bf16 %v272, %v272
      %v277 = vpack.c.bf16 %v273, %v273
      %v278 = vpack.c.bf16 %v274, %v274
      %v279 = vpack.c.bf16 %v275, %v275
      %v280 = vld [vmem:[%s249] sm:$0xff]
      %vm281 = vcmask 64512
      %v283 = vsel %vm281, %v260, 0
      %v286 = vsel %vm281, %v268, 0
      %288 = vmatprep.subr.bf16.mxu0 0
      %289 = vmatpush1.bf16.xpose.msra.mxu0 %v286
      %290 = vmatprep.subr.bf16.mxu0 0
      %291 = vmatpush1.bf16.xpose.msra.mxu0 0
      %292 = vmatprep.subr.bf16.mxu0 0
      %293 = vmatpush1.bf16.xpose.msra.mxu0 0
      %294 = vmatprep.subr.bf16.mxu0 0
      %295 = vmatpush1.bf16.xpose.msra.mxu0 0
      %296 = vmatprep.subr.bf16.mxu0 0
      %297 = vmatpush1.bf16.xpose.msra.mxu0 0
      %298 = vmatprep.subr.bf16.mxu0 0
      %299 = vmatpush1.bf16.xpose.msra.mxu0 0
      %300 = vmatprep.subr.bf16.mxu0 0
      %301 = vmatpush1.bf16.xpose.msra.mxu0 0
      %302 = vmatprep.subr.bf16.mxu0 0
      %303 = vmatpush1.bf16.xpose.msra.mxu0 0
      %304 = vmatprep.subr.bf16.mxu0 0
      %305 = vmatpush1.bf16.xpose.msra.mxu0 0
      %306 = vmatprep.subr.bf16.mxu0 0
      %307 = vmatpush1.bf16.xpose.msra.mxu0 0
      %308 = vmatprep.subr.bf16.mxu0 0
      %309 = vmatpush1.bf16.xpose.msra.mxu0 0
      %310 = vmatprep.subr.bf16.mxu0 0
      %311 = vmatpush1.bf16.xpose.msra.mxu0 0
      %312 = vmatprep.subr.bf16.mxu0 0
      %313 = vmatpush1.bf16.xpose.msra.mxu0 0
      %314 = vmatprep.subr.bf16.mxu0 0
      %315 = vmatpush1.bf16.xpose.msra.mxu0 0
      %316 = vmatprep.subr.bf16.mxu0 0
      %317 = vmatpush1.bf16.xpose.msra.mxu0 0
      %318 = vmatprep.subr.bf16.mxu0 0
      %319 = vmatpush1.bf16.xpose.msra.mxu0 0
      %320 = vmatprep.mubr.bf16.mxu0 0
      %321 = vmatmul.mubr.bf16.gmra.mrb[0].mxu0 %v283
      %v322 = vpop.f32.mrb[0].mxu0
      %v323 = vadd.f32 0.0, %v322
      %v324 = vpop.f32.mrb[0].mxu0
      %v325 = vpop.f32.mrb[0].mxu0
      %v326 = vpop.f32.mrb[0].mxu0
      %327 = vdwg.mxu0
      %v329 = vsel %vm281, %v261, 0
      %v332 = vsel %vm281, %v269, 0
      %334 = vmatprep.subr.bf16.mxu0 0
      %335 = vmatpush1.bf16.xpose.msra.mxu0 %v332
      %336 = vmatprep.subr.bf16.mxu0 0
      %337 = vmatpush1.bf16.xpose.msra.mxu0 0
      %338 = vmatprep.subr.bf16.mxu0 0
      %339 = vmatpush1.bf16.xpose.msra.mxu0 0
      %340 = vmatprep.subr.bf16.mxu0 0
      %341 = vmatpush1.bf16.xpose.msra.mxu0 0
      %342 = vmatprep.subr.bf16.mxu0 0
      %343 = vmatpush1.bf16.xpose.msra.mxu0 0
      %344 = vmatprep.subr.bf16.mxu0 0
      %345 = vmatpush1.bf16.xpose.msra.mxu0 0
      %346 = vmatprep.subr.bf16.mxu0 0
      %347 = vmatpush1.bf16.xpose.msra.mxu0 0
      %348 = vmatprep.subr.bf16.mxu0 0
      %349 = vmatpush1.bf16.xpose.msra.mxu0 0
      %350 = vmatprep.subr.bf16.mxu0 0
      %351 = vmatpush1.bf16.xpose.msra.mxu0 0
      %352 = vmatprep.subr.bf16.mxu0 0
      %353 = vmatpush1.bf16.xpose.msra.mxu0 0
      %354 = vmatprep.subr.bf16.mxu0 0
      %355 = vmatpush1.bf16.xpose.msra.mxu0 0
      %356 = vmatprep.subr.bf16.mxu0 0
      %357 = vmatpush1.bf16.xpose.msra.mxu0 0
      %358 = vmatprep.subr.bf16.mxu0 0
      %359 = vmatpush1.bf16.xpose.msra.mxu0 0
      %360 = vmatprep.subr.bf16.mxu0 0
      %361 = vmatpush1.bf16.xpose.msra.mxu0 0
      %362 = vmatprep.subr.bf16.mxu0 0
      %363 = vmatpush1.bf16.xpose.msra.mxu0 0
      %364 = vmatprep.subr.bf16.mxu0 0
      %365 = vmatpush1.bf16.xpose.msra.mxu0 0
      %366 = vmatprep.mubr.bf16.mxu0 0
      %367 = vmatmul.mubr.bf16.gmra.mrb[0].mxu0 %v329
      %v368 = vpop.f32.mrb[0].mxu0
      %v369 = vadd.f32 0.0, %v368
      %v370 = vpop.f32.mrb[0].mxu0
      %v371 = vpop.f32.mrb[0].mxu0
      %v372 = vpop.f32.mrb[0].mxu0
      %373 = vdwg.mxu0
      %v375 = vsel %vm281, %v262, 0
      %v378 = vsel %vm281, %v270, 0
      %380 = vmatprep.subr.bf16.mxu0 0
      %381 = vmatpush1.bf16.xpose.msra.mxu0 %v378
      %382 = vmatprep.subr.bf16.mxu0 0
      %383 = vmatpush1.bf16.xpose.msra.mxu0 0
      %384 = vmatprep.subr.bf16.mxu0 0
      %385 = vmatpush1.bf16.xpose.msra.mxu0 0
      %386 = vmatprep.subr.bf16.mxu0 0
      %387 = vmatpush1.bf16.xpose.msra.mxu0 0
      %388 = vmatprep.subr.bf16.mxu0 0
      %389 = vmatpush1.bf16.xpose.msra.mxu0 0
      %390 = vmatprep.subr.bf16.mxu0 0
      %391 = vmatpush1.bf16.xpose.msra.mxu0 0
      %392 = vmatprep.subr.bf16.mxu0 0
      %393 = vmatpush1.bf16.xpose.msra.mxu0 0
      %394 = vmatprep.subr.bf16.mxu0 0
      %395 = vmatpush1.bf16.xpose.msra.mxu0 0
      %396 = vmatprep.subr.bf16.mxu0 0
      %397 = vmatpush1.bf16.xpose.msra.mxu0 0
      %398 = vmatprep.subr.bf16.mxu0 0
      %399 = vmatpush1.bf16.xpose.msra.mxu0 0
      %400 = vmatprep.subr.bf16.mxu0 0
      %401 = vmatpush1.bf16.xpose.msra.mxu0 0
      %402 = vmatprep.subr.bf16.mxu0 0
      %403 = vmatpush1.bf16.xpose.msra.mxu0 0
      %404 = vmatprep.subr.bf16.mxu0 0
      %405 = vmatpush1.bf16.xpose.msra.mxu0 0
      %406 = vmatprep.subr.bf16.mxu0 0
      %407 = vmatpush1.bf16.xpose.msra.mxu0 0
      %408 = vmatprep.subr.bf16.mxu0 0
      %409 = vmatpush1.bf16.xpose.msra.mxu0 0
      %410 = vmatprep.subr.bf16.mxu0 0
      %411 = vmatpush1.bf16.xpose.msra.mxu0 0
      %412 = vmatprep.mubr.bf16.mxu0 0
      %413 = vmatmul.mubr.bf16.gmra.mrb[0].mxu0 %v375
      %v414 = vpop.f32.mrb[0].mxu0
      %v415 = vadd.f32 0.0, %v414
      %v416 = vpop.f32.mrb[0].mxu0
      %v417 = vpop.f32.mrb[0].mxu0
      %v418 = vpop.f32.mrb[0].mxu0
      %419 = vdwg.mxu0
      %v421 = vsel %vm281, %v263, 0
      %v424 = vsel %vm281, %v271, 0
      %426 = vmatprep.subr.bf16.mxu0 0
      %427 = vmatpush1.bf16.xpose.msra.mxu0 %v424
      %428 = vmatprep.subr.bf16.mxu0 0
      %429 = vmatpush1.bf16.xpose.msra.mxu0 0
      %430 = vmatprep.subr.bf16.mxu0 0
      %431 = vmatpush1.bf16.xpose.msra.mxu0 0
      %432 = vmatprep.subr.bf16.mxu0 0
      %433 = vmatpush1.bf16.xpose.msra.mxu0 0
      %434 = vmatprep.subr.bf16.mxu0 0
      %435 = vmatpush1.bf16.xpose.msra.mxu0 0
      %436 = vmatprep.subr.bf16.mxu0 0
      %437 = vmatpush1.bf16.xpose.msra.mxu0 0
      %438 = vmatprep.subr.bf16.mxu0 0
      %439 = vmatpush1.bf16.xpose.msra.mxu0 0
      %440 = vmatprep.subr.bf16.mxu0 0
      %441 = vmatpush1.bf16.xpose.msra.mxu0 0
      %442 = vmatprep.subr.bf16.mxu0 0
      %443 = vmatpush1.bf16.xpose.msra.mxu0 0
      %444 = vmatprep.subr.bf16.mxu0 0
      %445 = vmatpush1.bf16.xpose.msra.mxu0 0
      %446 = vmatprep.subr.bf16.mxu0 0
      %447 = vmatpush1.bf16.xpose.msra.mxu0 0
      %448 = vmatprep.subr.bf16.mxu0 0
      %449 = vmatpush1.bf16.xpose.msra.mxu0 0
      %450 = vmatprep.subr.bf16.mxu0 0
      %451 = vmatpush1.bf16.xpose.msra.mxu0 0
      %452 = vmatprep.subr.bf16.mxu0 0
      %453 = vmatpush1.bf16.xpose.msra.mxu0 0
      %454 = vmatprep.subr.bf16.mxu0 0
      %455 = vmatpush1.bf16.xpose.msra.mxu0 0
      %456 = vmatprep.subr.bf16.mxu0 0
      %457 = vmatpush1.bf16.xpose.msra.mxu0 0
      %458 = vmatprep.mubr.bf16.mxu0 0
      %459 = vmatmul.mubr.bf16.gmra.mrb[0].mxu0 %v421
      %v460 = vpop.f32.mrb[0].mxu0
      %v461 = vadd.f32 0.0, %v460
      %v462 = vpop.f32.mrb[0].mxu0
      %v463 = vpop.f32.mrb[0].mxu0
      %v464 = vpop.f32.mrb[0].mxu0
      %465 = vdwg.mxu0
      %v466 = vmul.f32 %v323, 0.35355338
      %v467 = vmul.f32 %v369, 0.35355338
      %v468 = vmul.f32 %v415, 0.35355338
      %v469 = vmul.f32 %v461, 0.35355338
      %vm470 = vcmp.lt.f32.partialorder %v280, 0.5
      %v471 = vsel %vm470, 1, 0
      %vm472 = vcmp.eq.s32.totalorder %v471, 1
      %v473 = vsel %vm472, -1e+10, %v466
      %v474 = vsel %vm472, -1e+10, %v467
      %v475 = vsel %vm472, -1e+10, %v468
      %v476 = vsel %vm472, -1e+10, %v469
      %v477 = vsel %vm281, %v473, -inf
      %478 = vmax.xlane.f32.xlu0 %v477
      %v479 = vpop.xlane.xlu0 %478
      %v480 = vsel %vm281, %v474, -inf
      %481 = vmax.xlane.f32.xlu0 %v480
      %v482 = vpop.xlane.xlu0 %481
      %v483 = vsel %vm281, %v475, -inf
      %484 = vmax.xlane.f32.xlu0 %v483
      %v485 = vpop.xlane.xlu0 %484
      %v486 = vsel %vm281, %v476, -inf
      %487 = vmax.xlane.f32.xlu0 %v486
      %v488 = vpop.xlane.xlu0 %487
      %v489 = vsub.f32 %v473, %v479
      %v490 = vsub.f32 %v474, %v482
      %v491 = vsub.f32 %v475, %v485
      %v492 = vsub.f32 %v476, %v488
      %v493 = vmul.f32 %v489, 1.442695
      %v494 = vpow.pop %v493
      %v495 = vmul.f32 %v490, 1.442695
      %v496 = vpow.pop %v495
      %v497 = vmul.f32 %v491, 1.442695
      %v498 = vpow.pop %v497
      %v499 = vmul.f32 %v492, 1.442695
      %v500 = vpow.pop %v499
      %v501 = vsel %vm281, %v494, 0.0
      %502 = vadd.xlane.f32.xlu0 %v501
      %v503 = vpop.xlane.xlu0 %502
      %v504 = vsel %vm281, %v496, 0.0
      %505 = vadd.xlane.f32.xlu0 %v504
      %v506 = vpop.xlane.xlu0 %505
      %v507 = vsel %vm281, %v498, 0.0
      %508 = vadd.xlane.f32.xlu0 %v507
      %v509 = vpop.xlane.xlu0 %508
      %v510 = vsel %vm281, %v500, 0.0
      %511 = vadd.xlane.f32.xlu0 %v510
      %v512 = vpop.xlane.xlu0 %511
      %v513 = vrcp.pop %v503
      %v514 = vrcp.pop %v506
      %v515 = vrcp.pop %v509
      %v516 = vrcp.pop %v512
      %v517 = vmul.f32 %v494, %v513
      %v518 = vmul.f32 %v496, %v514
      %v519 = vmul.f32 %v498, %v515
      %v520 = vmul.f32 %v500, %v516
      %v521 = vpack.c.bf16 %v517, %v517
      %v522 = vpack.c.bf16 %v518, %v518
      %v523 = vpack.c.bf16 %v519, %v519
      %v524 = vpack.c.bf16 %v520, %v520
      %v526 = vsel %vm281, %v521, 0
      %vm528 = vcmask 1043456
      %v530 = vsel %vm528, %v276, 0
      %532 = vmatprep.subr.bf16.mxu0 0
      %533 = vmatpush1.bf16.msra.mxu0 %v530
      %534 = vmatprep.subr.bf16.mxu0 0
      %535 = vmatpush1.bf16.msra.mxu0 0
      %536 = vmatprep.subr.bf16.mxu0 0
      %537 = vmatpush1.bf16.msra.mxu0 0
      %538 = vmatprep.subr.bf16.mxu0 0
      %539 = vmatpush1.bf16.msra.mxu0 0
      %540 = vmatprep.subr.bf16.mxu0 0
      %541 = vmatpush1.bf16.msra.mxu0 0
      %542 = vmatprep.subr.bf16.mxu0 0
      %543 = vmatpush1.bf16.msra.mxu0 0
      %544 = vmatprep.subr.bf16.mxu0 0
      %545 = vmatpush1.bf16.msra.mxu0 0
      %546 = vmatprep.subr.bf16.mxu0 0
      %547 = vmatpush1.bf16.msra.mxu0 0
      %548 = vmatprep.subr.bf16.mxu0 0
      %549 = vmatpush1.bf16.msra.mxu0 0
      %550 = vmatprep.subr.bf16.mxu0 0
      %551 = vmatpush1.bf16.msra.mxu0 0
      %552 = vmatprep.subr.bf16.mxu0 0
      %553 = vmatpush1.bf16.msra.mxu0 0
      %554 = vmatprep.subr.bf16.mxu0 0
      %555 = vmatpush1.bf16.msra.mxu0 0
      %556 = vmatprep.subr.bf16.mxu0 0
      %557 = vmatpush1.bf16.msra.mxu0 0
      %558 = vmatprep.subr.bf16.mxu0 0
      %559 = vmatpush1.bf16.msra.mxu0 0
      %560 = vmatprep.subr.bf16.mxu0 0
      %561 = vmatpush1.bf16.msra.mxu0 0
      %562 = vmatprep.subr.bf16.mxu0 0
      %563 = vmatpush1.bf16.msra.mxu0 0
      %564 = vmatprep.mubr.bf16.mxu0 0
      %565 = vmatmul.mubr.bf16.gmra.mrb[0].mxu0 %v526
      %v566 = vpop.f32.mrb[0].mxu0
      %v567 = vadd.f32 0.0, %v566
      %v568 = vpop.f32.mrb[0].mxu0
      %v569 = vpop.f32.mrb[0].mxu0
      %v570 = vpop.f32.mrb[0].mxu0
      %571 = vdwg.mxu0
      %v573 = vsel %vm281, %v522, 0
      %v576 = vsel %vm528, %v277, 0
      %578 = vmatprep.subr.bf16.mxu0 0
      %579 = vmatpush1.bf16.msra.mxu0 %v576
      %580 = vmatprep.subr.bf16.mxu0 0
      %581 = vmatpush1.bf16.msra.mxu0 0
      %582 = vmatprep.subr.bf16.mxu0 0
      %583 = vmatpush1.bf16.msra.mxu0 0
      %584 = vmatprep.subr.bf16.mxu0 0
      %585 = vmatpush1.bf16.msra.mxu0 0
      %586 = vmatprep.subr.bf16.mxu0 0
      %587 = vmatpush1.bf16.msra.mxu0 0
      %588 = vmatprep.subr.bf16.mxu0 0
      %589 = vmatpush1.bf16.msra.mxu0 0
      %590 = vmatprep.subr.bf16.mxu0 0
      %591 = vmatpush1.bf16.msra.mxu0 0
      %592 = vmatprep.subr.bf16.mxu0 0
      %593 = vmatpush1.bf16.msra.mxu0 0
      %594 = vmatprep.subr.bf16.mxu0 0
      %595 = vmatpush1.bf16.msra.mxu0 0
      %596 = vmatprep.subr.bf16.mxu0 0
      %597 = vmatpush1.bf16.msra.mxu0 0
      %598 = vmatprep.subr.bf16.mxu0 0
      %599 = vmatpush1.bf16.msra.mxu0 0
      %600 = vmatprep.subr.bf16.mxu0 0
      %601 = vmatpush1.bf16.msra.mxu0 0
      %602 = vmatprep.subr.bf16.mxu0 0
      %603 = vmatpush1.bf16.msra.mxu0 0
      %604 = vmatprep.subr.bf16.mxu0 0
      %605 = vmatpush1.bf16.msra.mxu0 0
      %606 = vmatprep.subr.bf16.mxu0 0
      %607 = vmatpush1.bf16.msra.mxu0 0
      %608 = vmatprep.subr.bf16.mxu0 0
      %609 = vmatpush1.bf16.msra.mxu0 0
      %610 = vmatprep.mubr.bf16.mxu0 0
      %611 = vmatmul.mubr.bf16.gmra.mrb[0].mxu0 %v573
      %v612 = vpop.f32.mrb[0].mxu0
      %v613 = vadd.f32 0.0, %v612
      %v614 = vpop.f32.mrb[0].mxu0
      %v615 = vpop.f32.mrb[0].mxu0
      %v616 = vpop.f32.mrb[0].mxu0
      %617 = vdwg.mxu0
      %v619 = vsel %vm281, %v523, 0
      %v622 = vsel %vm528, %v278, 0
      %624 = vmatprep.subr.bf16.mxu0 0
      %625 = vmatpush1.bf16.msra.mxu0 %v622
      %626 = vmatprep.subr.bf16.mxu0 0
      %627 = vmatpush1.bf16.msra.mxu0 0
      %628 = vmatprep.subr.bf16.mxu0 0
      %629 = vmatpush1.bf16.msra.mxu0 0
      %630 = vmatprep.subr.bf16.mxu0 0
      %631 = vmatpush1.bf16.msra.mxu0 0
      %632 = vmatprep.subr.bf16.mxu0 0
      %633 = vmatpush1.bf16.msra.mxu0 0
      %634 = vmatprep.subr.bf16.mxu0 0
      %635 = vmatpush1.bf16.msra.mxu0 0
      %636 = vmatprep.subr.bf16.mxu0 0
      %637 = vmatpush1.bf16.msra.mxu0 0
      %638 = vmatprep.subr.bf16.mxu0 0
      %639 = vmatpush1.bf16.msra.mxu0 0
      %640 = vmatprep.subr.bf16.mxu0 0
      %641 = vmatpush1.bf16.msra.mxu0 0
      %642 = vmatprep.subr.bf16.mxu0 0
      %643 = vmatpush1.bf16.msra.mxu0 0
      %644 = vmatprep.subr.bf16.mxu0 0
      %645 = vmatpush1.bf16.msra.mxu0 0
      %646 = vmatprep.subr.bf16.mxu0 0
      %647 = vmatpush1.bf16.msra.mxu0 0
      %648 = vmatprep.subr.bf16.mxu0 0
      %649 = vmatpush1.bf16.msra.mxu0 0
      %650 = vmatprep.subr.bf16.mxu0 0
      %651 = vmatpush1.bf16.msra.mxu0 0
      %652 = vmatprep.subr.bf16.mxu0 0
      %653 = vmatpush1.bf16.msra.mxu0 0
      %654 = vmatprep.subr.bf16.mxu0 0
      %655 = vmatpush1.bf16.msra.mxu0 0
      %656 = vmatprep.mubr.bf16.mxu0 0
      %657 = vmatmul.mubr.bf16.gmra.mrb[0].mxu0 %v619
      %v658 = vpop.f32.mrb[0].mxu0
      %v659 = vadd.f32 0.0, %v658
      %v660 = vpop.f32.mrb[0].mxu0
      %v661 = vpop.f32.mrb[0].mxu0
      %v662 = vpop.f32.mrb[0].mxu0
      %663 = vdwg.mxu0
      %v665 = vsel %vm281, %v524, 0
      %v668 = vsel %vm528, %v279, 0
      %670 = vmatprep.subr.bf16.mxu0 0
      %671 = vmatpush1.bf16.msra.mxu0 %v668
      %672 = vmatprep.subr.bf16.mxu0 0
      %673 = vmatpush1.bf16.msra.mxu0 0
      %674 = vmatprep.subr.bf16.mxu0 0
      %675 = vmatpush1.bf16.msra.mxu0 0
      %676 = vmatprep.subr.bf16.mxu0 0
      %677 = vmatpush1.bf16.msra.mxu0 0
      %678 = vmatprep.subr.bf16.mxu0 0
      %679 = vmatpush1.bf16.msra.mxu0 0
      %680 = vmatprep.subr.bf16.mxu0 0
      %681 = vmatpush1.bf16.msra.mxu0 0
      %682 = vmatprep.subr.bf16.mxu0 0
      %683 = vmatpush1.bf16.msra.mxu0 0
      %684 = vmatprep.subr.bf16.mxu0 0
      %685 = vmatpush1.bf16.msra.mxu0 0
      %686 = vmatprep.subr.bf16.mxu0 0
      %687 = vmatpush1.bf16.msra.mxu0 0
      %688 = vmatprep.subr.bf16.mxu0 0
      %689 = vmatpush1.bf16.msra.mxu0 0
      %690 = vmatprep.subr.bf16.mxu0 0
      %691 = vmatpush1.bf16.msra.mxu0 0
      %692 = vmatprep.subr.bf16.mxu0 0
      %693 = vmatpush1.bf16.msra.mxu0 0
      %694 = vmatprep.subr.bf16.mxu0 0
      %695 = vmatpush1.bf16.msra.mxu0 0
      %696 = vmatprep.subr.bf16.mxu0 0
      %697 = vmatpush1.bf16.msra.mxu0 0
      %698 = vmatprep.subr.bf16.mxu0 0
      %699 = vmatpush1.bf16.msra.mxu0 0
      %700 = vmatprep.subr.bf16.mxu0 0
      %701 = vmatpush1.bf16.msra.mxu0 0
      %702 = vmatprep.mubr.bf16.mxu0 0
      %703 = vmatmul.mubr.bf16.gmra.mrb[0].mxu0 %v665
      %v704 = vpop.f32.mrb[0].mxu0
      %v705 = vadd.f32 0.0, %v704
      %v706 = vpop.f32.mrb[0].mxu0
      %v707 = vpop.f32.mrb[0].mxu0
      %v708 = vpop.f32.mrb[0].mxu0
      %709 = vdwg.mxu0
      %710 = vst.msk [vmem:[%s254] sm:$0xff] %vm281, %v567
      %711 = vst.msk [vmem:[%s254 + $0x8] sm:$0xff] %vm281, %v613
      %712 = vst.msk [vmem:[%s254 + $0x10] sm:$0xff] %vm281, %v659
      %713 = vst.msk [vmem:[%s254 + $0x18] sm:$0xff] %vm281, %v705
      %p714 = scmp.lt.s32.totalorder %s15, 1
      %s715 = scalar_select %p714, %s15, 1
      %s716 = smul.addr %s715, 4
      %s717 = smul.addr %s716, 8
      %s718 = scalar_lea.vmem %s4, %s717
      // Predicated region
      $region37: #{decoder_forward.20} parent=35 // pred_check
        %p719 = pneg %p137
      $region38: #{decoder_forward.20} parent=35 // pred_check_branch
        %721 = sbr.rel (%p719) target = $region40
      $region39: #{decoder_forward.20} parent=35 // pred_region
        _
      $region40: #{decoder_forward.20} parent=35 // pred_fallthru
        _
    $region36: #{decoder_forward.20} parent=5 // pred_fallthru
      _
    %p722 = scmp.le.s32.totalorder 2, %s10
    // Predicated region
    $region41: #{decoder_forward.20} parent=5 // pred_check
      %p723 = pneg %p722
    $region42: #{decoder_forward.20} parent=5 // pred_check_branch
      %725 = sbr.rel (%p723) target = $region44
    $region43: #{decoder_forward.20} parent=5 // pred_region
      %s726 = ssub.s32 %s10, 2
      // Predicated region
      $region45: #{decoder_forward.20} parent=43 // pred_check
        %p727 = pneg %p143
      $region46: #{decoder_forward.20} parent=43 // pred_check_branch
        %729 = sbr.rel (%p727) target = $region48
      $region47: #{decoder_forward.20} parent=43 // pred_region
        %p730 = scmp.lt.s32.totalorder %s16, 1
        %s731 = scalar_select %p730, %s16, 1
        %s732 = smul.addr %s731, 4
        %s733 = smul.addr %s732, 8
        %s734 = scalar_lea.vmem %s4, %s733
      $region48: #{decoder_forward.20} parent=43 // pred_fallthru
        _
    $region44: #{decoder_forward.20} parent=5 // pred_fallthru
      _
  $region6: #{decoder_forward.20} parent=0 // loop_footer
    %s14 = sadd.s32 1, %s10
  $region7: #{decoder_forward.20} parent=0 // loop_footer_branch
    %9 = sbr.rel target = $region3
  $region8: #{decoder_forward.20} parent=0 // loop_exit
    _

// kernel: decoder_forward.22
$region0: #{decoder_forward.22}
  #allocation0 [shape = 'u32[]', space=smem, size = 0x4, offset = 0x4, fixed_abs, tag = 'smem constant byte address 0x4 - core index']
  #allocation1 [shape = 'u32[144,128]{1,0:T(1,128)}', space=vmem, size = 0x12000, scoped, tag = 'internal scratch']
  %s0 = inlined_call_operand.vmem [shape: f32[16,32], index: 0, kind: input, shape index: {}]
  %s1 = inlined_call_operand.vmem [shape: f32[32,32], index: 1, kind: input, shape index: {}]
  %s2 = inlined_call_operand.vmem [shape: f32[1,32], index: 2, kind: input, shape index: {}]
  %s3 = inlined_call_operand.vmem [shape: f32[16,32], index: 3, kind: output, shape index: {}]
  %s4 = sld [smem:[#allocation0]]
  $region22: #{decoder_forward.22} parent=0
    _
  %s6 = ssub.s32 1, %s4
  %s7 = scalar_select 0, %s6, %s4
  // Predicated region
  $region2: #{decoder_forward.22} parent=0 // pred_check
    _
  $region3: #{decoder_forward.22} parent=0 // pred_check_branch
    %9 = sbr.rel (0) target = $region5
  $region4: #{decoder_forward.22} parent=0 // pred_region
    _
  $region5: #{decoder_forward.22} parent=0 // pred_fallthru
    _
  // Predicated region
  $region6: #{decoder_forward.22} parent=0 // pred_check
    _
  $region7: #{decoder_forward.22} parent=0 // pred_check_branch
    %11 = sbr.rel (0) target = $region9
  $region8: #{decoder_forward.22} parent=0 // pred_region
    _
  $region9: #{decoder_forward.22} parent=0 // pred_fallthru
    _
  // Predicated region
  $region10: #{decoder_forward.22} parent=0 // pred_check
    _
  $region11: #{decoder_forward.22} parent=0 // pred_check_branch
    %13 = sbr.rel (0) target = $region13
  $region12: #{decoder_forward.22} parent=0 // pred_region
    _
  $region13: #{decoder_forward.22} parent=0 // pred_fallthru
    _
  %v15 = vld [vmem:[%s0] sm:$0xff]
  %v16 = vld [vmem:[%s0 + $0x8] sm:$0xff]
  %v17 = vpack.c.bf16 %v16, %v15
  %v18 = vld [vmem:[%s1] sm:$0xff]
  %v19 = vld [vmem:[%s1 + $0x8] sm:$0xff]
  %v20 = vld [vmem:[%s1 + $0x10] sm:$0xff]
  %v21 = vld [vmem:[%s1 + $0x18] sm:$0xff]
  %v22 = vpack.c.bf16 %v19, %v18
  %v23 = vpack.c.bf16 %v21, %v20
  %v24 = vld [vmem:[%s2] sm:$0x1]
  %v26 = vlaneseq
  %v27 = vshrl.u32 %v26, 7
  %v28 = vsub.s32 0, %v27
  %v29 = vrot.slane %v24, %v28
  %vm31 = vcmask 261120
  %v33 = vsel %vm31, %v17, 0
  %35 = vmatprep.subr.bf16.mxu0 0
  %36 = vmatpush1.bf16.msra.mxu0 %v22
  %37 = vmatprep.subr.bf16.mxu0 0
  %38 = vmatpush1.bf16.msra.mxu0 %v23
  %39 = vmatprep.subr.bf16.mxu0 0
  %40 = vmatpush1.bf16.msra.mxu0 0
  %41 = vmatprep.subr.bf16.mxu0 0
  %42 = vmatpush1.bf16.msra.mxu0 0
  %43 = vmatprep.subr.bf16.mxu0 0
  %44 = vmatpush1.bf16.msra.mxu0 0
  %45 = vmatprep.subr.bf16.mxu0 0
  %46 = vmatpush1.bf16.msra.mxu0 0
  %47 = vmatprep.subr.bf16.mxu0 0
  %48 = vmatpush1.bf16.msra.mxu0 0
  %49 = vmatprep.subr.bf16.mxu0 0
  %50 = vmatpush1.bf16.msra.mxu0 0
  %51 = vmatprep.subr.bf16.mxu0 0
  %52 = vmatpush1.bf16.msra.mxu0 0
  %53 = vmatprep.subr.bf16.mxu0 0
  %54 = vmatpush1.bf16.msra.mxu0 0
  %55 = vmatprep.subr.bf16.mxu0 0
  %56 = vmatpush1.bf16.msra.mxu0 0
  %57 = vmatprep.subr.bf16.mxu0 0
  %58 = vmatpush1.bf16.msra.mxu0 0
  %59 = vmatprep.subr.bf16.mxu0 0
  %60 = vmatpush1.bf16.msra.mxu0 0
  %61 = vmatprep.subr.bf16.mxu0 0
  %62 = vmatpush1.bf16.msra.mxu0 0
  %63 = vmatprep.subr.bf16.mxu0 0
  %64 = vmatpush1.bf16.msra.mxu0 0
  %65 = vmatprep.subr.bf16.mxu0 0
  %66 = vmatpush1.bf16.msra.mxu0 0
  %67 = vmatprep.mubr.bf16.mxu0 0
  %68 = vmatmul.mubr.bf16.gmra.mrb[0].mxu0 %v33
  %v69 = vpop.f32.mrb[0].mxu0
  %v70 = vadd.f32 %v29, %v69
  %v71 = vpop.f32.mrb[0].mxu0
  %v72 = vpop.f32.mrb[0].mxu0
  %v73 = vadd.f32 %v29, %v72
  %v74 = vpop.f32.mrb[0].mxu0
  %75 = vdwg.mxu0
  %76 = vst.msk [vmem:[%s3] sm:$0xff] %vm31, %v70
  %77 = vst.msk [vmem:[%s3 + $0x8] sm:$0xff] %vm31, %v73
  // Predicated region
  $region14: #{decoder_forward.22} parent=0 // pred_check
    _
  $region15: #{decoder_forward.22} parent=0 // pred_check_branch
    %79 = sbr.rel (0) target = $region17
  $region16: #{decoder_forward.22} parent=0 // pred_region
    _
  $region17: #{decoder_forward.22} parent=0 // pred_fallthru
    _
  // Predicated region
  $region18: #{decoder_forward.22} parent=0 // pred_check
    _
  $region19: #{decoder_forward.22} parent=0 // pred_check_branch
    %81 = sbr.rel (0) target = $region21
  $region20: #{decoder_forward.22} parent=0 // pred_region
    _
  $region21: #{decoder_forward.22} parent=0 // pred_fallthru
    _

// kernel: decoder_forward.21
$region0: #{decoder_forward.21}
  #allocation0 [shape = 'u32[]', space=smem, size = 0x4, offset = 0x4, fixed_abs, tag = 'smem constant byte address 0x4 - core index']
  #allocation1 [shape = 'u32[144,128]{1,0:T(1,128)}', space=vmem, size = 0x12000, scoped, tag = 'internal scratch']
  %s0 = inlined_call_operand.vmem [shape: f32[16,32], index: 0, kind: input, shape index: {}]
  %s1 = inlined_call_operand.vmem [shape: f32[32,32], index: 1, kind: input, shape index: {}]
  %s2 = inlined_call_operand.vmem [shape: f32[1,32], index: 2, kind: input, shape index: {}]
  %s3 = inlined_call_operand.vmem [shape: f32[16,32], index: 3, kind: input, shape index: {}]
  %s4 = inlined_call_operand.vmem [shape: f32[1,32], index: 4, kind: input, shape index: {}]
  %s5 = inlined_call_operand.vmem [shape: f32[1,32], index: 5, kind: input, shape index: {}]
  %s6 = inlined_call_operand.vmem [shape: f32[16,32], index: 6, kind: output, shape index: {}]
  %s7 = sld [smem:[#allocation0]]
  $region34: #{decoder_forward.21} parent=0
    _
  %s9 = ssub.s32 1, %s7
  %s10 = scalar_select 0, %s9, %s7
  // Predicated region
  $region2: #{decoder_forward.21} parent=0 // pred_check
    _
  $region3: #{decoder_forward.21} parent=0 // pred_check_branch
    %12 = sbr.rel (0) target = $region5
  $region4: #{decoder_forward.21} parent=0 // pred_region
    _
  $region5: #{decoder_forward.21} parent=0 // pred_fallthru
    _
  // Predicated region
  $region6: #{decoder_forward.21} parent=0 // pred_check
    _
  $region7: #{decoder_forward.21} parent=0 // pred_check_branch
    %14 = sbr.rel (0) target = $region9
  $region8: #{decoder_forward.21} parent=0 // pred_region
    _
  $region9: #{decoder_forward.21} parent=0 // pred_fallthru
    _
  // Predicated region
  $region10: #{decoder_forward.21} parent=0 // pred_check
    _
  $region11: #{decoder_forward.21} parent=0 // pred_check_branch
    %16 = sbr.rel (0) target = $region13
  $region12: #{decoder_forward.21} parent=0 // pred_region
    _
  $region13: #{decoder_forward.21} parent=0 // pred_fallthru
    _
  // Predicated region
  $region14: #{decoder_forward.21} parent=0 // pred_check
    _
  $region15: #{decoder_forward.21} parent=0 // pred_check_branch
    %18 = sbr.rel (0) target = $region17
  $region16: #{decoder_forward.21} parent=0 // pred_region
    _
  $region17: #{decoder_forward.21} parent=0 // pred_fallthru
    _
  // Predicated region
  $region18: #{decoder_forward.21} parent=0 // pred_check
    _
  $region19: #{decoder_forward.21} parent=0 // pred_check_branch
    %20 = sbr.rel (0) target = $region21
  $region20: #{decoder_forward.21} parent=0 // pred_region
    _
  $region21: #{decoder_forward.21} parent=0 // pred_fallthru
    _
  // Predicated region
  $region22: #{decoder_forward.21} parent=0 // pred_check
    _
  $region23: #{decoder_forward.21} parent=0 // pred_check_branch
    %22 = sbr.rel (0) target = $region25
  $region24: #{decoder_forward.21} parent=0 // pred_region
    _
  $region25: #{decoder_forward.21} parent=0 // pred_fallthru
    _
  %v24 = vld [vmem:[%s0] sm:$0xff]
  %v25 = vld [vmem:[%s0 + $0x8] sm:$0xff]
  %v26 = vpack.c.bf16 %v25, %v24
  %v27 = vld [vmem:[%s1] sm:$0xff]
  %v28 = vld [vmem:[%s1 + $0x8] sm:$0xff]
  %v29 = vld [vmem:[%s1 + $0x10] sm:$0xff]
  %v30 = vld [vmem:[%s1 + $0x18] sm:$0xff]
  %v31 = vpack.c.bf16 %v28, %v27
  %v32 = vpack.c.bf16 %v30, %v29
  %v33 = vld [vmem:[%s2] sm:$0x1]
  %v35 = vlaneseq
  %v36 = vshrl.u32 %v35, 7
  %v37 = vsub.s32 0, %v36
  %v38 = vrot.slane %v33, %v37
  %vm40 = vcmask 261120
  %v42 = vsel %vm40, %v26, 0
  %44 = vmatprep.subr.bf16.mxu0 0
  %45 = vmatpush1.bf16.msra.mxu0 %v31
  %46 = vmatprep.subr.bf16.mxu0 0
  %47 = vmatpush1.bf16.msra.mxu0 %v32
  %48 = vmatprep.subr.bf16.mxu0 0
  %49 = vmatpush1.bf16.msra.mxu0 0
  %50 = vmatprep.subr.bf16.mxu0 0
  %51 = vmatpush1.bf16.msra.mxu0 0
  %52 = vmatprep.subr.bf16.mxu0 0
  %53 = vmatpush1.bf16.msra.mxu0 0
  %54 = vmatprep.subr.bf16.mxu0 0
  %55 = vmatpush1.bf16.msra.mxu0 0
  %56 = vmatprep.subr.bf16.mxu0 0
  %57 = vmatpush1.bf16.msra.mxu0 0
  %58 = vmatprep.subr.bf16.mxu0 0
  %59 = vmatpush1.bf16.msra.mxu0 0
  %60 = vmatprep.subr.bf16.mxu0 0
  %61 = vmatpush1.bf16.msra.mxu0 0
  %62 = vmatprep.subr.bf16.mxu0 0
  %63 = vmatpush1.bf16.msra.mxu0 0
  %64 = vmatprep.subr.bf16.mxu0 0
  %65 = vmatpush1.bf16.msra.mxu0 0
  %66 = vmatprep.subr.bf16.mxu0 0
  %67 = vmatpush1.bf16.msra.mxu0 0
  %68 = vmatprep.subr.bf16.mxu0 0
  %69 = vmatpush1.bf16.msra.mxu0 0
  %70 = vmatprep.subr.bf16.mxu0 0
  %71 = vmatpush1.bf16.msra.mxu0 0
  %72 = vmatprep.subr.bf16.mxu0 0
  %73 = vmatpush1.bf16.msra.mxu0 0
  %74 = vmatprep.subr.bf16.mxu0 0
  %75 = vmatpush1.bf16.msra.mxu0 0
  %76 = vmatprep.mubr.bf16.mxu0 0
  %77 = vmatmul.mubr.bf16.gmra.mrb[0].mxu0 %v42
  %v78 = vpop.f32.mrb[0].mxu0
  %v79 = vadd.f32 %v38, %v78
  %v80 = vpop.f32.mrb[0].mxu0
  %v81 = vpop.f32.mrb[0].mxu0
  %v82 = vadd.f32 %v38, %v81
  %v83 = vpop.f32.mrb[0].mxu0
  %84 = vdwg.mxu0
  %v85 = vld [vmem:[%s3] sm:$0xff]
  %v86 = vld [vmem:[%s3 + $0x8] sm:$0xff]
  %v87 = vadd.f32 %v79, %v85
  %v88 = vadd.f32 %v82, %v86
  %v89 = vsel %vm40, %v87, 0.0
  %90 = vadd.xlane.f32.xlu0 %v89
  %v91 = vpop.xlane.xlu0 %90
  %v92 = vsel %vm40, %v88, 0.0
  %93 = vadd.xlane.f32.xlu0 %v92
  %v94 = vpop.xlane.xlu0 %93
  %v95 = vrcp.pop 32.0
  %v96 = vmul.f32 %v91, %v95
  %v97 = vmul.f32 %v94, %v95
  %v98 = vsub.f32 %v87, %v96
  %v99 = vsub.f32 %v88, %v97
  %v100 = vmul.f32 %v98, %v98
  %v101 = vmul.f32 %v99, %v99
  %v102 = vsel %vm40, %v100, 0.0
  %103 = vadd.xlane.f32.xlu0 %v102
  %v104 = vpop.xlane.xlu0 %103
  %v105 = vsel %vm40, %v101, 0.0
  %106 = vadd.xlane.f32.xlu0 %v105
  %v107 = vpop.xlane.xlu0 %106
  %v108 = vmul.f32 %v104, %v95
  %v109 = vmul.f32 %v107, %v95
  %v110 = vadd.f32 %v108, 1e-05
  %v111 = vadd.f32 %v109, 1e-05
  %v112 = vrsqrt.pop %v110
  %v113 = vrsqrt.pop %v111
  %v114 = vmul.f32 %v98, %v112
  %v115 = vmul.f32 %v99, %v113
  %v116 = vld [vmem:[%s4] sm:$0x1]
  %v118 = vlaneseq
  %v119 = vshrl.u32 %v118, 7
  %v120 = vsub.s32 0, %v119
  %v121 = vrot.slane %v116, %v120
  %v123 = vmul.f32 %v114, %v121
  %v124 = vmul.f32 %v115, %v121
  %v125 = vld [vmem:[%s5] sm:$0x1]
  %v127 = vlaneseq
  %v128 = vshrl.u32 %v127, 7
  %v129 = vsub.s32 0, %v128
  %v130 = vrot.slane %v125, %v129
  %v132 = vadd.f32 %v123, %v130
  %v133 = vadd.f32 %v124, %v130
  %134 = vst.msk [vmem:[%s6] sm:$0xff] %vm40, %v132
  %135 = vst.msk [vmem:[%s6 + $0x8] sm:$0xff] %vm40, %v133
  // Predicated region
  $region26: #{decoder_forward.21} parent=0 // pred_check
    _
  $region27: #{decoder_forward.21} parent=0 // pred_check_branch
    %137 = sbr.rel (0) target = $region29
  $region28: #{decoder_forward.21} parent=0 // pred_region
    _
  $region29: #{decoder_forward.21} parent=0 // pred_fallthru
    _
  // Predicated region
  $region30: #{decoder_forward.21} parent=0 // pred_check
    _
  $region31: #{decoder_forward.21} parent=0 // pred_check_branch
    %139 = sbr.rel (0) target = $region33
  $region32: #{decoder_forward.21} parent=0 // pred_region
    _
  $region33: #{decoder_forward.21} parent=0 // pred_fallthru
    _

// kernel: decoder_forward.23
$region0: #{decoder_forward.23}
  #allocation0 [shape = 'u32[]', space=smem, size = 0x4, offset = 0x4, fixed_abs, tag = 'smem constant byte address 0x4 - core index']
  #allocation1 [shape = 'u32[144,128]{1,0:T(1,128)}', space=vmem, size = 0x12000, scoped, tag = 'internal scratch']
  %s0 = inlined_call_operand.vmem [shape: f32[20,32], index: 0, kind: input, shape index: {}]
  %s1 = inlined_call_operand.vmem [shape: f32[32,64], index: 1, kind: input, shape index: {}]
  %s2 = inlined_call_operand.vmem [shape: f32[1,64], index: 2, kind: input, shape index: {}]
  %s3 = inlined_call_operand.vmem [shape: f32[20,64], index: 3, kind: output, shape index: {}]
  %s4 = sld [smem:[#allocation0]]
  $region22: #{decoder_forward.23} parent=0
    _
  %s6 = ssub.s32 1, %s4
  %s7 = scalar_select 0, %s6, %s4
  // Predicated region
  $region2: #{decoder_forward.23} parent=0 // pred_check
    _
  $region3: #{decoder_forward.23} parent=0 // pred_check_branch
    %9 = sbr.rel (0) target = $region5
  $region4: #{decoder_forward.23} parent=0 // pred_region
    _
  $region5: #{decoder_forward.23} parent=0 // pred_fallthru
    _
  // Predicated region
  $region6: #{decoder_forward.23} parent=0 // pred_check
    _
  $region7: #{decoder_forward.23} parent=0 // pred_check_branch
    %11 = sbr.rel (0) target = $region9
  $region8: #{decoder_forward.23} parent=0 // pred_region
    _
  $region9: #{decoder_forward.23} parent=0 // pred_fallthru
    _
  // Predicated region
  $region10: #{decoder_forward.23} parent=0 // pred_check
    _
  $region11: #{decoder_forward.23} parent=0 // pred_check_branch
    %13 = sbr.rel (0) target = $region13
  $region12: #{decoder_forward.23} parent=0 // pred_region
    _
  $region13: #{decoder_forward.23} parent=0 // pred_fallthru
    _
  %v15 = vld [vmem:[%s0] sm:$0xff]
  %v16 = vld [vmem:[%s0 + $0x8] sm:$0xff]
  %v17 = vld [vmem:[%s0 + $0x10] sm:$0xf]
  %v18 = vpack.c.bf16 %v16, %v15
  %v19 = vpack.c.bf16 %v17, %v17
  %v20 = vld [vmem:[%s1] sm:$0xff]
  %v21 = vld [vmem:[%s1 + $0x8] sm:$0xff]
  %v22 = vld [vmem:[%s1 + $0x10] sm:$0xff]
  %v23 = vld [vmem:[%s1 + $0x18] sm:$0xff]
  %v24 = vpack.c.bf16 %v21, %v20
  %v25 = vpack.c.bf16 %v23, %v22
  %v26 = vld [vmem:[%s2] sm:$0x1]
  %v28 = vlaneseq
  %v29 = vshrl.u32 %v28, 7
  %v30 = vsub.s32 0, %v29
  %v31 = vrot.slane %v26, %v30
  %vm33 = vcmask 261120
  %v35 = vsel %vm33, %v18, 0
  %v38 = vsel %vm33, %v19, 0
  %40 = vmatprep.subr.bf16.mxu0 0
  %41 = vmatpush1.bf16.msra.mxu0 %v24
  %42 = vmatprep.subr.bf16.mxu0 0
  %43 = vmatpush1.bf16.msra.mxu0 %v25
  %44 = vmatprep.subr.bf16.mxu0 0
  %45 = vmatpush1.bf16.msra.mxu0 0
  %46 = vmatprep.subr.bf16.mxu0 0
  %47 = vmatpush1.bf16.msra.mxu0 0
  %48 = vmatprep.subr.bf16.mxu0 0
  %49 = vmatpush1.bf16.msra.mxu0 0
  %50 = vmatprep.subr.bf16.mxu0 0
  %51 = vmatpush1.bf16.msra.mxu0 0
  %52 = vmatprep.subr.bf16.mxu0 0
  %53 = vmatpush1.bf16.msra.mxu0 0
  %54 = vmatprep.subr.bf16.mxu0 0
  %55 = vmatpush1.bf16.msra.mxu0 0
  %56 = vmatprep.subr.bf16.mxu0 0
  %57 = vmatpush1.bf16.msra.mxu0 0
  %58 = vmatprep.subr.bf16.mxu0 0
  %59 = vmatpush1.bf16.msra.mxu0 0
  %60 = vmatprep.subr.bf16.mxu0 0
  %61 = vmatpush1.bf16.msra.mxu0 0
  %62 = vmatprep.subr.bf16.mxu0 0
  %63 = vmatpush1.bf16.msra.mxu0 0
  %64 = vmatprep.subr.bf16.mxu0 0
  %65 = vmatpush1.bf16.msra.mxu0 0
  %66 = vmatprep.subr.bf16.mxu0 0
  %67 = vmatpush1.bf16.msra.mxu0 0
  %68 = vmatprep.subr.bf16.mxu0 0
  %69 = vmatpush1.bf16.msra.mxu0 0
  %70 = vmatprep.subr.bf16.mxu0 0
  %71 = vmatpush1.bf16.msra.mxu0 0
  %72 = vmatprep.mubr.bf16.mxu0 0
  %73 = vmatmul.mubr.bf16.gmra.mrb[0].mxu0 %v35
  %v74 = vpop.f32.mrb[0].mxu0
  %v75 = vadd.f32 %v31, %v74
  %v76 = vpop.f32.mrb[0].mxu0
  %v77 = vpop.f32.mrb[0].mxu0
  %v78 = vadd.f32 %v31, %v77
  %v79 = vpop.f32.mrb[0].mxu0
  %80 = vmatprep.mubr.bf16.mxu0 0
  %81 = vmatmul.mubr.bf16.gmra.mrb[0].mxu0 %v38
  %v82 = vpop.f32.mrb[0].mxu0
  %v83 = vadd.f32 %v31, %v82
  %v84 = vpop.f32.mrb[0].mxu0
  %v85 = vpop.f32.mrb[0].mxu0
  %v86 = vpop.f32.mrb[0].mxu0
  %87 = vdwg.mxu0
  %vm88 = vcmask 523264
  %89 = vst.msk [vmem:[%s3] sm:$0xff] %vm88, %v75
  %90 = vst.msk [vmem:[%s3 + $0x8] sm:$0xff] %vm88, %v78
  %vm91 = vcmask 519168
  %92 = vst.msk [vmem:[%s3 + $0x10] sm:$0xf] %vm91, %v83
  // Predicated region
  $region14: #{decoder_forward.23} parent=0 // pred_check
    _
  $region15: #{decoder_forward.23} parent=0 // pred_check_branch
    %94 = sbr.rel (0) target = $region17
  $region16: #{decoder_forward.23} parent=0 // pred_region
    _
  $region17: #{decoder_forward.23} parent=0 // pred_fallthru
    _
  // Predicated region
  $region18: #{decoder_forward.23} parent=0 // pred_check
    _
  $region19: #{decoder_forward.23} parent=0 // pred_check_branch
    %96 = sbr.rel (0) target = $region21
  $region20: #{decoder_forward.23} parent=0 // pred_region
    _
  $region21: #{decoder_forward.23} parent=0 // pred_fallthru
    _

// kernel: decoder_forward.24
$region0: #{decoder_forward.24}
  #allocation0 [shape = 'u32[]', space=smem, size = 0x4, offset = 0x4, fixed_abs, tag = 'smem constant byte address 0x4 - core index']
  #allocation1 [shape = 'u32[144,128]{1,0:T(1,128)}', space=vmem, size = 0x12000, scoped, tag = 'internal scratch']
  %s0 = inlined_call_operand.vmem [shape: f32[2,4,8,8], index: 0, kind: input, shape index: {}]
  %s1 = inlined_call_operand.vmem [shape: f32[2,4,10,8], index: 1, kind: input, shape index: {}]
  %s2 = inlined_call_operand.vmem [shape: f32[2,4,10,8], index: 2, kind: input, shape index: {}]
  %s3 = inlined_call_operand.vmem [shape: f32[2,1,10], index: 3, kind: input, shape index: {}]
  %s4 = inlined_call_operand.vmem [shape: f32[2,4,8,8], index: 4, kind: output, shape index: {}]
  %s5 = sld [smem:[#allocation0]]
  $region49: #{decoder_forward.24} parent=0
    _
  %s7 = ssub.s32 1, %s5
  %s8 = scalar_select 0, %s7, %s5
  loop: start=0, step=1, limit=4
  $region2: #{decoder_forward.24} parent=0 // loop_pre_header
    _
  $region3: #{decoder_forward.24} parent=0 // loop_header
    %s10 = sphi 0, %s14
    %p11 = scmp.ge.s32.totalorder %s10, 4
    %s20 = sphi 0, %s22
    %s23 = sphi 0, %s20
    %s24 = sphi 0, %s23
    %s40 = sphi 0, %s24
    %s46 = sphi 0, %s48
    %s49 = sphi 0, %s46
    %s50 = sphi 0, %s49
    %s66 = sphi 0, %s50
    %s72 = sphi 0, %s74
    %s75 = sphi 0, %s72
    %s76 = sphi 0, %s75
    %s92 = sphi 0, %s76
    %s98 = sphi 0, %s100
    %s101 = sphi 0, %s98
    %s102 = sphi 0, %s101
    %s118 = sphi 0, %s102
    %s124 = sphi 0, %s126
    %s127 = sphi 0, %s124
    %s128 = sphi 0, %s127
    %s144 = sphi 0, %s128
  $region4: #{decoder_forward.24} parent=0 // loop_header_branch
    %13 = sbr.rel (%p11) target = $region8
  $region5: #{decoder_forward.24} parent=0 // loop_body
    %s15 = ssub.s32 %s10, 1
    %s16 = ssub.s32 %s10, 2
    %s17 = sadd.s32 %s10, 1
    %s18 = ssub.s32 %s10, %s17
    %p19 = scmp.eq.s32.totalorder %s18, 0
    %s21 = sadd.s32 %s20, 1
    %s22 = scalar_select %p19, %s20, %s21
    %p25 = pneg %p19
    %p26 = scmp.eq.s32.totalorder %s10, 1
    %p27 = por %p25, %p26
    %p28 = scmp.ne.s32.totalorder %s20, %s23
    %p29 = scmp.eq.s32.totalorder %s10, 0
    %p30 = por %p28, %p29
    %p31 = scmp.ne.s32.totalorder %s20, %s23
    %p32 = scmp.eq.s32.totalorder %s15, 1
    %p33 = por %p31, %p32
    %p34 = scmp.ne.s32.totalorder %s23, %s24
    %p35 = scmp.eq.s32.totalorder %s15, 0
    %p36 = por %p34, %p35
    %p37 = scmp.ne.s32.totalorder %s23, %s24
    %p38 = scmp.eq.s32.totalorder %s16, 1
    %p39 = por %p37, %p38
    %p41 = scmp.ne.s32.totalorder %s24, %s40
    %p42 = scmp.eq.s32.totalorder %s16, 0
    %p43 = por %p41, %p42
    %s44 = ssub.s32 %s10, %s17
    %p45 = scmp.eq.s32.totalorder %s44, 0
    %s47 = sadd.s32 %s46, 1
    %s48 = scalar_select %p45, %s46, %s47
    %p51 = pneg %p45
    %p52 = scmp.eq.s32.totalorder %s10, 1
    %p53 = por %p51, %p52
    %p54 = scmp.ne.s32.totalorder %s46, %s49
    %p55 = scmp.eq.s32.totalorder %s10, 0
    %p56 = por %p54, %p55
    %p57 = scmp.ne.s32.totalorder %s46, %s49
    %p58 = scmp.eq.s32.totalorder %s15, 1
    %p59 = por %p57, %p58
    %p60 = scmp.ne.s32.totalorder %s49, %s50
    %p61 = scmp.eq.s32.totalorder %s15, 0
    %p62 = por %p60, %p61
    %p63 = scmp.ne.s32.totalorder %s49, %s50
    %p64 = scmp.eq.s32.totalorder %s16, 1
    %p65 = por %p63, %p64
    %p67 = scmp.ne.s32.totalorder %s50, %s66
    %p68 = scmp.eq.s32.totalorder %s16, 0
    %p69 = por %p67, %p68
    %s70 = ssub.s32 %s10, %s17
    %p71 = scmp.eq.s32.totalorder %s70, 0
    %s73 = sadd.s32 %s72, 1
    %s74 = scalar_select %p71, %s72, %s73
    %p77 = pneg %p71
    %p78 = scmp.eq.s32.totalorder %s10, 1
    %p79 = por %p77, %p78
    %p80 = scmp.ne.s32.totalorder %s72, %s75
    %p81 = scmp.eq.s32.totalorder %s10, 0
    %p82 = por %p80, %p81
    %p83 = scmp.ne.s32.totalorder %s72, %s75
    %p84 = scmp.eq.s32.totalorder %s15, 1
    %p85 = por %p83, %p84
    %p86 = scmp.ne.s32.totalorder %s75, %s76
    %p87 = scmp.eq.s32.totalorder %s15, 0
    %p88 = por %p86, %p87
    %p89 = scmp.ne.s32.totalorder %s75, %s76
    %p90 = scmp.eq.s32.totalorder %s16, 1
    %p91 = por %p89, %p90
    %p93 = scmp.ne.s32.totalorder %s76, %s92
    %p94 = scmp.eq.s32.totalorder %s16, 0
    %p95 = por %p93, %p94
    %s96 = ssub.s32 %s10, %s17
    %p97 = scmp.eq.s32.totalorder %s96, 0
    %s99 = sadd.s32 %s98, 1
    %s100 = scalar_select %p97, %s98, %s99
    %p103 = pneg %p97
    %p104 = scmp.eq.s32.totalorder %s10, 1
    %p105 = por %p103, %p104
    %p106 = scmp.ne.s32.totalorder %s98, %s101
    %p107 = scmp.eq.s32.totalorder %s10, 0
    %p108 = por %p106, %p107
    %p109 = scmp.ne.s32.totalorder %s98, %s101
    %p110 = scmp.eq.s32.totalorder %s15, 1
    %p111 = por %p109, %p110
    %p112 = scmp.ne.s32.totalorder %s101, %s102
    %p113 = scmp.eq.s32.totalorder %s15, 0
    %p114 = por %p112, %p113
    %p115 = scmp.ne.s32.totalorder %s101, %s102
    %p116 = scmp.eq.s32.totalorder %s16, 1
    %p117 = por %p115, %p116
    %p119 = scmp.ne.s32.totalorder %s102, %s118
    %p120 = scmp.eq.s32.totalorder %s16, 0
    %p121 = por %p119, %p120
    %s122 = ssub.s32 %s10, %s17
    %p123 = scmp.eq.s32.totalorder %s122, 0
    %s125 = sadd.s32 %s124, 1
    %s126 = scalar_select %p123, %s124, %s125
    %p129 = pneg %p123
    %p130 = scmp.eq.s32.totalorder %s10, 1
    %p131 = por %p129, %p130
    %p132 = scmp.ne.s32.totalorder %s124, %s127
    %p133 = scmp.eq.s32.totalorder %s10, 0
    %p134 = por %p132, %p133
    %p135 = scmp.ne.s32.totalorder %s124, %s127
    %p136 = scmp.eq.s32.totalorder %s15, 1
    %p137 = por %p135, %p136
    %p138 = scmp.ne.s32.totalorder %s127, %s128
    %p139 = scmp.eq.s32.totalorder %s15, 0
    %p140 = por %p138, %p139
    %p141 = scmp.ne.s32.totalorder %s127, %s128
    %p142 = scmp.eq.s32.totalorder %s16, 1
    %p143 = por %p141, %p142
    %p145 = scmp.ne.s32.totalorder %s128, %s144
    %p146 = scmp.eq.s32.totalorder %s16, 0
    %p147 = por %p145, %p146
    %p148 = scmp.le.s32.totalorder 1, %s10
    %p149 = scmp.lt.s32.totalorder %s10, 3
    %p150 = pnand %p148, %p149
    %p151 = pneg %p150
    // Predicated region
    $region9: #{decoder_forward.24} parent=5 // pred_check
      _
    $region10: #{decoder_forward.24} parent=5 // pred_check_branch
      %153 = sbr.rel (%p150) target = $region12
    $region11: #{decoder_forward.24} parent=5 // pred_region
      %s154 = ssub.s32 %s10, 1
    $region12: #{decoder_forward.24} parent=5 // pred_fallthru
      _
    %p155 = scmp.lt.s32.totalorder %s10, 2
    // Predicated region
    $region13: #{decoder_forward.24} parent=5 // pred_check
      %p156 = pneg %p155
    $region14: #{decoder_forward.24} parent=5 // pred_check_branch
      %158 = sbr.rel (%p156) target = $region16
    $region15: #{decoder_forward.24} parent=5 // pred_region
      // Predicated region
      $region17: #{decoder_forward.24} parent=15 // pred_check
        %p159 = pneg %p30
      $region18: #{decoder_forward.24} parent=15 // pred_check_branch
        %161 = sbr.rel (%p159) target = $region20
      $region19: #{decoder_forward.24} parent=15 // pred_region
        %p162 = scmp.lt.s32.totalorder %s10, 1
        %s163 = scalar_select %p162, %s10, 1
        %s164 = smul.addr %s163, 4
        %s165 = smul.addr %s164, 8
        %s166 = scalar_lea.vmem %s0, %s165
      $region20: #{decoder_forward.24} parent=15 // pred_fallthru
        _
      // Predicated region
      $region21: #{decoder_forward.24} parent=15 // pred_check
        %p167 = pneg %p56
      $region22: #{decoder_forward.24} parent=15 // pred_check_branch
        %169 = sbr.rel (%p167) target = $region24
      $region23: #{decoder_forward.24} parent=15 // pred_region
        %p170 = scmp.lt.s32.totalorder %s10, 1
        %s171 = scalar_select %p170, %s10, 1
        %s172 = smul.addr %s171, 8
        %s173 = smul.addr %s172, 8
        %s174 = scalar_lea.vmem %s1, %s173
      $region24: #{decoder_forward.24} parent=15 // pred_fallthru
        _
      // Predicated region
      $region25: #{decoder_forward.24} parent=15 // pred_check
        %p175 = pneg %p82
      $region26: #{decoder_forward.24} parent=15 // pred_check_branch
        %177 = sbr.rel (%p175) target = $region28
      $region27: #{decoder_forward.24} parent=15 // pred_region
        %p178 = scmp.lt.s32.totalorder %s10, 1
        %s179 = scalar_select %p178, %s10, 1
        %s180 = smul.addr %s179, 8
        %s181 = smul.addr %s180, 8
        %s182 = scalar_lea.vmem %s2, %s181
      $region28: #{decoder_forward.24} parent=15 // pred_fallthru
        _
      // Predicated region
      $region29: #{decoder_forward.24} parent=15 // pred_check
        %p183 = pneg %p108
      $region30: #{decoder_forward.24} parent=15 // pred_check_branch
        %185 = sbr.rel (%p183) target = $region32
      $region31: #{decoder_forward.24} parent=15 // pred_region
        %p186 = scmp.lt.s32.totalorder %s10, 1
        %s187 = scalar_select %p186, %s10, 1
        %s188 = scalar_lea.vmem %s3, %s187
      $region32: #{decoder_forward.24} parent=15 // pred_fallthru
        _
    $region16: #{decoder_forward.24} parent=5 // pred_fallthru
      _
    %p189 = scmp.le.s32.totalorder 1, %s10
    %p190 = scmp.lt.s32.totalorder %s10, 3
    %p191 = pnand %p189, %p190
    %p192 = pneg %p191
    // Predicated region
    $region33: #{decoder_forward.24} parent=5 // pred_check
      _
    $region34: #{decoder_forward.24} parent=5 // pred_check_branch
      %194 = sbr.rel (%p191) target = $region36
    $region35: #{decoder_forward.24} parent=5 // pred_region
      %s195 = ssub.s32 %s10, 1
      %p196 = scmp.lt.s32.totalorder %s15, 1
      %s197 = scalar_select %p196, %s15, 1
      %s198 = smul.addr %s197, 4
      %s199 = smul.addr %s198, 8
      %s200 = scalar_lea.vmem %s0, %s199
      %p201 = pneg %p36
      %p202 = pneg %p33
      %p203 = scmp.lt.s32.totalorder %s15, 1
      %s204 = scalar_select %p203, %s15, 1
      %s205 = smul.addr %s204, 8
      %s206 = smul.addr %s205, 8
      %s207 = scalar_lea.vmem %s1, %s206
      %p208 = pneg %p62
      %p209 = pneg %p59
      %p210 = scmp.lt.s32.totalorder %s15, 1
      %s211 = scalar_select %p210, %s15, 1
      %s212 = smul.addr %s211, 8
      %s213 = smul.addr %s212, 8
      %s214 = scalar_lea.vmem %s2, %s213
      %p215 = pneg %p88
      %p216 = pneg %p85
      %p217 = scmp.lt.s32.totalorder %s15, 1
      %s218 = scalar_select %p217, %s15, 1
      %s219 = scalar_lea.vmem %s3, %s218
      %p220 = pneg %p114
      %p221 = pneg %p111
      %p222 = pneg %p140
      %p223 = pneg %p137
      %p224 = scmp.lt.s32.totalorder %s15, 1
      %s225 = scalar_select %p224, %s15, 1
      %s226 = smul.addr %s225, 4
      %s227 = smul.addr %s226, 8
      %s228 = scalar_lea.vmem %s4, %s227
      %p229 = scmp.lt.s32.totalorder %s15, 1
      %s230 = scalar_select %p229, %s15, 1
      %s231 = smul.addr %s230, 4
      %s232 = smul.addr %s231, 8
      %s233 = scalar_lea.vmem %s0, %s232
      %p234 = scmp.lt.s32.totalorder %s15, 1
      %s235 = scalar_select %p234, %s15, 1
      %s236 = smul.addr %s235, 8
      %s237 = smul.addr %s236, 8
      %s238 = scalar_lea.vmem %s1, %s237
      %p239 = scmp.lt.s32.totalorder %s15, 1
      %s240 = scalar_select %p239, %s15, 1
      %s241 = smul.addr %s240, 8
      %s242 = smul.addr %s241, 8
      %s243 = scalar_lea.vmem %s2, %s242
      %p244 = scmp.lt.s32.totalorder %s15, 1
      %s245 = scalar_select %p244, %s15, 1
      %s246 = scalar_lea.vmem %s3, %s245
      %p247 = scmp.lt.s32.totalorder %s15, 1
      %s248 = scalar_select %p247, %s15, 1
      %s249 = smul.addr %s248, 4
      %s250 = smul.addr %s249, 8
      %s251 = scalar_lea.vmem %s4, %s250
      %v253 = vld [vmem:[%s233] sm:$0xff]
      %v254 = vld [vmem:[%s233 + $0x8] sm:$0xff]
      %v255 = vld [vmem:[%s233 + $0x10] sm:$0xff]
      %v256 = vld [vmem:[%s233 + $0x18] sm:$0xff]
      %v257 = vpack.c.bf16 %v253, %v253
      %v258 = vpack.c.bf16 %v254, %v254
      %v259 = vpack.c.bf16 %v255, %v255
      %v260 = vpack.c.bf16 %v256, %v256
      %v261 = vld [vmem:[%s238] sm:$0xff]
      %v262 = vld [vmem:[%s238 + $0x8] sm:$0x3]
      %v263 = vld [vmem:[%s238 + $0x10] sm:$0xff]
      %v264 = vld [vmem:[%s238 + $0x18] sm:$0x3]
      %v265 = vld [vmem:[%s238 + $0x20] sm:$0xff]
      %v266 = vld [vmem:[%s238 + $0x28] sm:$0x3]
      %v267 = vld [vmem:[%s238 + $0x30] sm:$0xff]
      %v268 = vld [vmem:[%s238 + $0x38] sm:$0x3]
      %v269 = vpack.c.bf16 %v262, %v261
      %v270 = vpack.c.bf16 %v264, %v263
      %v271 = vpack.c.bf16 %v266, %v265
      %v272 = vpack.c.bf16 %v268, %v267
      %v273 = vld [vmem:[%s243] sm:$0xff]
      %v274 = vld [vmem:[%s243 + $0x8] sm:$0x3]
      %v275 = vld [vmem:[%s243 + $0x10] sm:$0xff]
      %v276 = vld [vmem:[%s243 + $0x18] sm:$0x3]
      %v277 = vld [vmem:[%s243 + $0x20] sm:$0xff]
      %v278 = vld [vmem:[%s243 + $0x28] sm:$0x3]
      %v279 = vld [vmem:[%s243 + $0x30] sm:$0xff]
      %v280 = vld [vmem:[%s243 + $0x38] sm:$0x3]
      %v281 = vpack.c.bf16 %v274, %v273
      %v282 = vpack.c.bf16 %v276, %v275
      %v283 = vpack.c.bf16 %v278, %v277
      %v284 = vpack.c.bf16 %v280, %v279
      %v285 = vld [vmem:[%s246] sm:$0x1]
      %vm286 = vcmask 64512
      %v288 = vsel %vm286, %v257, 0
      %v291 = vsel %vm286, %v269, 0
      %293 = vmatprep.subr.bf16.mxu0 0
      %294 = vmatpush1.bf16.xpose.msra.mxu0 %v291
      %295 = vmatprep.subr.bf16.mxu0 0
      %296 = vmatpush1.bf16.xpose.msra.mxu0 0
      %297 = vmatprep.subr.bf16.mxu0 0
      %298 = vmatpush1.bf16.xpose.msra.mxu0 0
      %299 = vmatprep.subr.bf16.mxu0 0
      %300 = vmatpush1.bf16.xpose.msra.mxu0 0
      %301 = vmatprep.subr.bf16.mxu0 0
      %302 = vmatpush1.bf16.xpose.msra.mxu0 0
      %303 = vmatprep.subr.bf16.mxu0 0
      %304 = vmatpush1.bf16.xpose.msra.mxu0 0
      %305 = vmatprep.subr.bf16.mxu0 0
      %306 = vmatpush1.bf16.xpose.msra.mxu0 0
      %307 = vmatprep.subr.bf16.mxu0 0
      %308 = vmatpush1.bf16.xpose.msra.mxu0 0
      %309 = vmatprep.subr.bf16.mxu0 0
      %310 = vmatpush1.bf16.xpose.msra.mxu0 0
      %311 = vmatprep.subr.bf16.mxu0 0
      %312 = vmatpush1.bf16.xpose.msra.mxu0 0
      %313 = vmatprep.subr.bf16.mxu0 0
      %314 = vmatpush1.bf16.xpose.msra.mxu0 0
      %315 = vmatprep.subr.bf16.mxu0 0
      %316 = vmatpush1.bf16.xpose.msra.mxu0 0
      %317 = vmatprep.subr.bf16.mxu0 0
      %318 = vmatpush1.bf16.xpose.msra.mxu0 0
      %319 = vmatprep.subr.bf16.mxu0 0
      %320 = vmatpush1.bf16.xpose.msra.mxu0 0
      %321 = vmatprep.subr.bf16.mxu0 0
      %322 = vmatpush1.bf16.xpose.msra.mxu0 0
      %323 = vmatprep.subr.bf16.mxu0 0
      %324 = vmatpush1.bf16.xpose.msra.mxu0 0
      %325 = vmatprep.mubr.bf16.mxu0 0
      %326 = vmatmul.mubr.bf16.gmra.mrb[0].mxu0 %v288
      %v327 = vpop.f32.mrb[0].mxu0
      %v328 = vadd.f32 0.0, %v327
      %v329 = vpop.f32.mrb[0].mxu0
      %v330 = vpop.f32.mrb[0].mxu0
      %v331 = vpop.f32.mrb[0].mxu0
      %332 = vdwg.mxu0
      %v334 = vsel %vm286, %v258, 0
      %v337 = vsel %vm286, %v270, 0
      %339 = vmatprep.subr.bf16.mxu0 0
      %340 = vmatpush1.bf16.xpose.msra.mxu0 %v337
      %341 = vmatprep.subr.bf16.mxu0 0
      %342 = vmatpush1.bf16.xpose.msra.mxu0 0
      %343 = vmatprep.subr.bf16.mxu0 0
      %344 = vmatpush1.bf16.xpose.msra.mxu0 0
      %345 = vmatprep.subr.bf16.mxu0 0
      %346 = vmatpush1.bf16.xpose.msra.mxu0 0
      %347 = vmatprep.subr.bf16.mxu0 0
      %348 = vmatpush1.bf16.xpose.msra.mxu0 0
      %349 = vmatprep.subr.bf16.mxu0 0
      %350 = vmatpush1.bf16.xpose.msra.mxu0 0
      %351 = vmatprep.subr.bf16.mxu0 0
      %352 = vmatpush1.bf16.xpose.msra.mxu0 0
      %353 = vmatprep.subr.bf16.mxu0 0
      %354 = vmatpush1.bf16.xpose.msra.mxu0 0
      %355 = vmatprep.subr.bf16.mxu0 0
      %356 = vmatpush1.bf16.xpose.msra.mxu0 0
      %357 = vmatprep.subr.bf16.mxu0 0
      %358 = vmatpush1.bf16.xpose.msra.mxu0 0
      %359 = vmatprep.subr.bf16.mxu0 0
      %360 = vmatpush1.bf16.xpose.msra.mxu0 0
      %361 = vmatprep.subr.bf16.mxu0 0
      %362 = vmatpush1.bf16.xpose.msra.mxu0 0
      %363 = vmatprep.subr.bf16.mxu0 0
      %364 = vmatpush1.bf16.xpose.msra.mxu0 0
      %365 = vmatprep.subr.bf16.mxu0 0
      %366 = vmatpush1.bf16.xpose.msra.mxu0 0
      %367 = vmatprep.subr.bf16.mxu0 0
      %368 = vmatpush1.bf16.xpose.msra.mxu0 0
      %369 = vmatprep.subr.bf16.mxu0 0
      %370 = vmatpush1.bf16.xpose.msra.mxu0 0
      %371 = vmatprep.mubr.bf16.mxu0 0
      %372 = vmatmul.mubr.bf16.gmra.mrb[0].mxu0 %v334
      %v373 = vpop.f32.mrb[0].mxu0
      %v374 = vadd.f32 0.0, %v373
      %v375 = vpop.f32.mrb[0].mxu0
      %v376 = vpop.f32.mrb[0].mxu0
      %v377 = vpop.f32.mrb[0].mxu0
      %378 = vdwg.mxu0
      %v380 = vsel %vm286, %v259, 0
      %v383 = vsel %vm286, %v271, 0
      %385 = vmatprep.subr.bf16.mxu0 0
      %386 = vmatpush1.bf16.xpose.msra.mxu0 %v383
      %387 = vmatprep.subr.bf16.mxu0 0
      %388 = vmatpush1.bf16.xpose.msra.mxu0 0
      %389 = vmatprep.subr.bf16.mxu0 0
      %390 = vmatpush1.bf16.xpose.msra.mxu0 0
      %391 = vmatprep.subr.bf16.mxu0 0
      %392 = vmatpush1.bf16.xpose.msra.mxu0 0
      %393 = vmatprep.subr.bf16.mxu0 0
      %394 = vmatpush1.bf16.xpose.msra.mxu0 0
      %395 = vmatprep.subr.bf16.mxu0 0
      %396 = vmatpush1.bf16.xpose.msra.mxu0 0
      %397 = vmatprep.subr.bf16.mxu0 0
      %398 = vmatpush1.bf16.xpose.msra.mxu0 0
      %399 = vmatprep.subr.bf16.mxu0 0
      %400 = vmatpush1.bf16.xpose.msra.mxu0 0
      %401 = vmatprep.subr.bf16.mxu0 0
      %402 = vmatpush1.bf16.xpose.msra.mxu0 0
      %403 = vmatprep.subr.bf16.mxu0 0
      %404 = vmatpush1.bf16.xpose.msra.mxu0 0
      %405 = vmatprep.subr.bf16.mxu0 0
      %406 = vmatpush1.bf16.xpose.msra.mxu0 0
      %407 = vmatprep.subr.bf16.mxu0 0
      %408 = vmatpush1.bf16.xpose.msra.mxu0 0
      %409 = vmatprep.subr.bf16.mxu0 0
      %410 = vmatpush1.bf16.xpose.msra.mxu0 0
      %411 = vmatprep.subr.bf16.mxu0 0
      %412 = vmatpush1.bf16.xpose.msra.mxu0 0
      %413 = vmatprep.subr.bf16.mxu0 0
      %414 = vmatpush1.bf16.xpose.msra.mxu0 0
      %415 = vmatprep.subr.bf16.mxu0 0
      %416 = vmatpush1.bf16.xpose.msra.mxu0 0
      %417 = vmatprep.mubr.bf16.mxu0 0
      %418 = vmatmul.mubr.bf16.gmra.mrb[0].mxu0 %v380
      %v419 = vpop.f32.mrb[0].mxu0
      %v420 = vadd.f32 0.0, %v419
      %v421 = vpop.f32.mrb[0].mxu0
      %v422 = vpop.f32.mrb[0].mxu0
      %v423 = vpop.f32.mrb[0].mxu0
      %424 = vdwg.mxu0
      %v426 = vsel %vm286, %v260, 0
      %v429 = vsel %vm286, %v272, 0
      %431 = vmatprep.subr.bf16.mxu0 0
      %432 = vmatpush1.bf16.xpose.msra.mxu0 %v429
      %433 = vmatprep.subr.bf16.mxu0 0
      %434 = vmatpush1.bf16.xpose.msra.mxu0 0
      %435 = vmatprep.subr.bf16.mxu0 0
      %436 = vmatpush1.bf16.xpose.msra.mxu0 0
      %437 = vmatprep.subr.bf16.mxu0 0
      %438 = vmatpush1.bf16.xpose.msra.mxu0 0
      %439 = vmatprep.subr.bf16.mxu0 0
      %440 = vmatpush1.bf16.xpose.msra.mxu0 0
      %441 = vmatprep.subr.bf16.mxu0 0
      %442 = vmatpush1.bf16.xpose.msra.mxu0 0
      %443 = vmatprep.subr.bf16.mxu0 0
      %444 = vmatpush1.bf16.xpose.msra.mxu0 0
      %445 = vmatprep.subr.bf16.mxu0 0
      %446 = vmatpush1.bf16.xpose.msra.mxu0 0
      %447 = vmatprep.subr.bf16.mxu0 0
      %448 = vmatpush1.bf16.xpose.msra.mxu0 0
      %449 = vmatprep.subr.bf16.mxu0 0
      %450 = vmatpush1.bf16.xpose.msra.mxu0 0
      %451 = vmatprep.subr.bf16.mxu0 0
      %452 = vmatpush1.bf16.xpose.msra.mxu0 0
      %453 = vmatprep.subr.bf16.mxu0 0
      %454 = vmatpush1.bf16.xpose.msra.mxu0 0
      %455 = vmatprep.subr.bf16.mxu0 0
      %456 = vmatpush1.bf16.xpose.msra.mxu0 0
      %457 = vmatprep.subr.bf16.mxu0 0
      %458 = vmatpush1.bf16.xpose.msra.mxu0 0
      %459 = vmatprep.subr.bf16.mxu0 0
      %460 = vmatpush1.bf16.xpose.msra.mxu0 0
      %461 = vmatprep.subr.bf16.mxu0 0
      %462 = vmatpush1.bf16.xpose.msra.mxu0 0
      %463 = vmatprep.mubr.bf16.mxu0 0
      %464 = vmatmul.mubr.bf16.gmra.mrb[0].mxu0 %v426
      %v465 = vpop.f32.mrb[0].mxu0
      %v466 = vadd.f32 0.0, %v465
      %v467 = vpop.f32.mrb[0].mxu0
      %v468 = vpop.f32.mrb[0].mxu0
      %v469 = vpop.f32.mrb[0].mxu0
      %470 = vdwg.mxu0
      %v471 = vmul.f32 %v328, 0.35355338
      %v472 = vmul.f32 %v374, 0.35355338
      %v473 = vmul.f32 %v420, 0.35355338
      %v474 = vmul.f32 %v466, 0.35355338
      %vm475 = vcmp.lt.f32.partialorder %v285, 0.5
      %v476 = vsel %vm475, 1, 0
      %v477 = vlaneseq
      %v478 = vshrl.u32 %v477, 7
      %v479 = vsub.s32 0, %v478
      %v480 = vrot.slane %v476, %v479
      %vm481 = vcmp.eq.s32.totalorder %v480, 1
      %v482 = vsel %vm481, -1e+10, %v471
      %v483 = vsel %vm481, -1e+10, %v472
      %v484 = vsel %vm481, -1e+10, %v473
      %v485 = vsel %vm481, -1e+10, %v474
      %vm486 = vcmask 80896
      %v487 = vsel %vm486, %v482, -inf
      %488 = vmax.xlane.f32.xlu0 %v487
      %v489 = vpop.xlane.xlu0 %488
      %v490 = vsel %vm486, %v483, -inf
      %491 = vmax.xlane.f32.xlu0 %v490
      %v492 = vpop.xlane.xlu0 %491
      %v493 = vsel %vm486, %v484, -inf
      %494 = vmax.xlane.f32.xlu0 %v493
      %v495 = vpop.xlane.xlu0 %494
      %v496 = vsel %vm486, %v485, -inf
      %497 = vmax.xlane.f32.xlu0 %v496
      %v498 = vpop.xlane.xlu0 %497
      %v499 = vsub.f32 %v482, %v489
      %v500 = vsub.f32 %v483, %v492
      %v501 = vsub.f32 %v484, %v495
      %v502 = vsub.f32 %v485, %v498
      %v503 = vmul.f32 %v499, 1.442695
      %v504 = vpow.pop %v503
      %v505 = vmul.f32 %v500, 1.442695
      %v506 = vpow.pop %v505
      %v507 = vmul.f32 %v501, 1.442695
      %v508 = vpow.pop %v507
      %v509 = vmul.f32 %v502, 1.442695
      %v510 = vpow.pop %v509
      %v511 = vsel %vm486, %v504, 0.0
      %512 = vadd.xlane.f32.xlu0 %v511
      %v513 = vpop.xlane.xlu0 %512
      %v514 = vsel %vm486, %v506, 0.0
      %515 = vadd.xlane.f32.xlu0 %v514
      %v516 = vpop.xlane.xlu0 %515
      %v517 = vsel %vm486, %v508, 0.0
      %518 = vadd.xlane.f32.xlu0 %v517
      %v519 = vpop.xlane.xlu0 %518
      %v520 = vsel %vm486, %v510, 0.0
      %521 = vadd.xlane.f32.xlu0 %v520
      %v522 = vpop.xlane.xlu0 %521
      %v523 = vrcp.pop %v513
      %v524 = vrcp.pop %v516
      %v525 = vrcp.pop %v519
      %v526 = vrcp.pop %v522
      %v527 = vmul.f32 %v504, %v523
      %v528 = vmul.f32 %v506, %v524
      %v529 = vmul.f32 %v508, %v525
      %v530 = vmul.f32 %v510, %v526
      %v531 = vpack.c.bf16 %v527, %v527
      %v532 = vpack.c.bf16 %v528, %v528
      %v533 = vpack.c.bf16 %v529, %v529
      %v534 = vpack.c.bf16 %v530, %v530
      %v536 = vsel %vm486, %v531, 0
      %vm538 = vcmask 1044480
      %v540 = vsel %vm538, %v281, 0
      %542 = vmatprep.subr.bf16.mxu0 0
      %543 = vmatpush1.bf16.msra.mxu0 %v540
      %544 = vmatprep.subr.bf16.mxu0 0
      %545 = vmatpush1.bf16.msra.mxu0 0
      %546 = vmatprep.subr.bf16.mxu0 0
      %547 = vmatpush1.bf16.msra.mxu0 0
      %548 = vmatprep.subr.bf16.mxu0 0
      %549 = vmatpush1.bf16.msra.mxu0 0
      %550 = vmatprep.subr.bf16.mxu0 0
      %551 = vmatpush1.bf16.msra.mxu0 0
      %552 = vmatprep.subr.bf16.mxu0 0
      %553 = vmatpush1.bf16.msra.mxu0 0
      %554 = vmatprep.subr.bf16.mxu0 0
      %555 = vmatpush1.bf16.msra.mxu0 0
      %556 = vmatprep.subr.bf16.mxu0 0
      %557 = vmatpush1.bf16.msra.mxu0 0
      %558 = vmatprep.subr.bf16.mxu0 0
      %559 = vmatpush1.bf16.msra.mxu0 0
      %560 = vmatprep.subr.bf16.mxu0 0
      %561 = vmatpush1.bf16.msra.mxu0 0
      %562 = vmatprep.subr.bf16.mxu0 0
      %563 = vmatpush1.bf16.msra.mxu0 0
      %564 = vmatprep.subr.bf16.mxu0 0
      %565 = vmatpush1.bf16.msra.mxu0 0
      %566 = vmatprep.subr.bf16.mxu0 0
      %567 = vmatpush1.bf16.msra.mxu0 0
      %568 = vmatprep.subr.bf16.mxu0 0
      %569 = vmatpush1.bf16.msra.mxu0 0
      %570 = vmatprep.subr.bf16.mxu0 0
      %571 = vmatpush1.bf16.msra.mxu0 0
      %572 = vmatprep.subr.bf16.mxu0 0
      %573 = vmatpush1.bf16.msra.mxu0 0
      %574 = vmatprep.mubr.bf16.mxu0 0
      %575 = vmatmul.mubr.bf16.gmra.mrb[0].mxu0 %v536
      %v576 = vpop.f32.mrb[0].mxu0
      %v577 = vadd.f32 0.0, %v576
      %v578 = vpop.f32.mrb[0].mxu0
      %v579 = vpop.f32.mrb[0].mxu0
      %v580 = vpop.f32.mrb[0].mxu0
      %581 = vdwg.mxu0
      %v583 = vsel %vm486, %v532, 0
      %v586 = vsel %vm538, %v282, 0
      %588 = vmatprep.subr.bf16.mxu0 0
      %589 = vmatpush1.bf16.msra.mxu0 %v586
      %590 = vmatprep.subr.bf16.mxu0 0
      %591 = vmatpush1.bf16.msra.mxu0 0
      %592 = vmatprep.subr.bf16.mxu0 0
      %593 = vmatpush1.bf16.msra.mxu0 0
      %594 = vmatprep.subr.bf16.mxu0 0
      %595 = vmatpush1.bf16.msra.mxu0 0
      %596 = vmatprep.subr.bf16.mxu0 0
      %597 = vmatpush1.bf16.msra.mxu0 0
      %598 = vmatprep.subr.bf16.mxu0 0
      %599 = vmatpush1.bf16.msra.mxu0 0
      %600 = vmatprep.subr.bf16.mxu0 0
      %601 = vmatpush1.bf16.msra.mxu0 0
      %602 = vmatprep.subr.bf16.mxu0 0
      %603 = vmatpush1.bf16.msra.mxu0 0
      %604 = vmatprep.subr.bf16.mxu0 0
      %605 = vmatpush1.bf16.msra.mxu0 0
      %606 = vmatprep.subr.bf16.mxu0 0
      %607 = vmatpush1.bf16.msra.mxu0 0
      %608 = vmatprep.subr.bf16.mxu0 0
      %609 = vmatpush1.bf16.msra.mxu0 0
      %610 = vmatprep.subr.bf16.mxu0 0
      %611 = vmatpush1.bf16.msra.mxu0 0
      %612 = vmatprep.subr.bf16.mxu0 0
      %613 = vmatpush1.bf16.msra.mxu0 0
      %614 = vmatprep.subr.bf16.mxu0 0
      %615 = vmatpush1.bf16.msra.mxu0 0
      %616 = vmatprep.subr.bf16.mxu0 0
      %617 = vmatpush1.bf16.msra.mxu0 0
      %618 = vmatprep.subr.bf16.mxu0 0
      %619 = vmatpush1.bf16.msra.mxu0 0
      %620 = vmatprep.mubr.bf16.mxu0 0
      %621 = vmatmul.mubr.bf16.gmra.mrb[0].mxu0 %v583
      %v622 = vpop.f32.mrb[0].mxu0
      %v623 = vadd.f32 0.0, %v622
      %v624 = vpop.f32.mrb[0].mxu0
      %v625 = vpop.f32.mrb[0].mxu0
      %v626 = vpop.f32.mrb[0].mxu0
      %627 = vdwg.mxu0
      %v629 = vsel %vm486, %v533, 0
      %v632 = vsel %vm538, %v283, 0
      %634 = vmatprep.subr.bf16.mxu0 0
      %635 = vmatpush1.bf16.msra.mxu0 %v632
      %636 = vmatprep.subr.bf16.mxu0 0
      %637 = vmatpush1.bf16.msra.mxu0 0
      %638 = vmatprep.subr.bf16.mxu0 0
      %639 = vmatpush1.bf16.msra.mxu0 0
      %640 = vmatprep.subr.bf16.mxu0 0
      %641 = vmatpush1.bf16.msra.mxu0 0
      %642 = vmatprep.subr.bf16.mxu0 0
      %643 = vmatpush1.bf16.msra.mxu0 0
      %644 = vmatprep.subr.bf16.mxu0 0
      %645 = vmatpush1.bf16.msra.mxu0 0
      %646 = vmatprep.subr.bf16.mxu0 0
      %647 = vmatpush1.bf16.msra.mxu0 0
      %648 = vmatprep.subr.bf16.mxu0 0
      %649 = vmatpush1.bf16.msra.mxu0 0
      %650 = vmatprep.subr.bf16.mxu0 0
      %651 = vmatpush1.bf16.msra.mxu0 0
      %652 = vmatprep.subr.bf16.mxu0 0
      %653 = vmatpush1.bf16.msra.mxu0 0
      %654 = vmatprep.subr.bf16.mxu0 0
      %655 = vmatpush1.bf16.msra.mxu0 0
      %656 = vmatprep.subr.bf16.mxu0 0
      %657 = vmatpush1.bf16.msra.mxu0 0
      %658 = vmatprep.subr.bf16.mxu0 0
      %659 = vmatpush1.bf16.msra.mxu0 0
      %660 = vmatprep.subr.bf16.mxu0 0
      %661 = vmatpush1.bf16.msra.mxu0 0
      %662 = vmatprep.subr.bf16.mxu0 0
      %663 = vmatpush1.bf16.msra.mxu0 0
      %664 = vmatprep.subr.bf16.mxu0 0
      %665 = vmatpush1.bf16.msra.mxu0 0
      %666 = vmatprep.mubr.bf16.mxu0 0
      %667 = vmatmul.mubr.bf16.gmra.mrb[0].mxu0 %v629
      %v668 = vpop.f32.mrb[0].mxu0
      %v669 = vadd.f32 0.0, %v668
      %v670 = vpop.f32.mrb[0].mxu0
      %v671 = vpop.f32.mrb[0].mxu0
      %v672 = vpop.f32.mrb[0].mxu0
      %673 = vdwg.mxu0
      %v675 = vsel %vm486, %v534, 0
      %v678 = vsel %vm538, %v284, 0
      %680 = vmatprep.subr.bf16.mxu0 0
      %681 = vmatpush1.bf16.msra.mxu0 %v678
      %682 = vmatprep.subr.bf16.mxu0 0
      %683 = vmatpush1.bf16.msra.mxu0 0
      %684 = vmatprep.subr.bf16.mxu0 0
      %685 = vmatpush1.bf16.msra.mxu0 0
      %686 = vmatprep.subr.bf16.mxu0 0
      %687 = vmatpush1.bf16.msra.mxu0 0
      %688 = vmatprep.subr.bf16.mxu0 0
      %689 = vmatpush1.bf16.msra.mxu0 0
      %690 = vmatprep.subr.bf16.mxu0 0
      %691 = vmatpush1.bf16.msra.mxu0 0
      %692 = vmatprep.subr.bf16.mxu0 0
      %693 = vmatpush1.bf16.msra.mxu0 0
      %694 = vmatprep.subr.bf16.mxu0 0
      %695 = vmatpush1.bf16.msra.mxu0 0
      %696 = vmatprep.subr.bf16.mxu0 0
      %697 = vmatpush1.bf16.msra.mxu0 0
      %698 = vmatprep.subr.bf16.mxu0 0
      %699 = vmatpush1.bf16.msra.mxu0 0
      %700 = vmatprep.subr.bf16.mxu0 0
      %701 = vmatpush1.bf16.msra.mxu0 0
      %702 = vmatprep.subr.bf16.mxu0 0
      %703 = vmatpush1.bf16.msra.mxu0 0
      %704 = vmatprep.subr.bf16.mxu0 0
      %705 = vmatpush1.bf16.msra.mxu0 0
      %706 = vmatprep.subr.bf16.mxu0 0
      %707 = vmatpush1.bf16.msra.mxu0 0
      %708 = vmatprep.subr.bf16.mxu0 0
      %709 = vmatpush1.bf16.msra.mxu0 0
      %710 = vmatprep.subr.bf16.mxu0 0
      %711 = vmatpush1.bf16.msra.mxu0 0
      %712 = vmatprep.mubr.bf16.mxu0 0
      %713 = vmatmul.mubr.bf16.gmra.mrb[0].mxu0 %v675
      %v714 = vpop.f32.mrb[0].mxu0
      %v715 = vadd.f32 0.0, %v714
      %v716 = vpop.f32.mrb[0].mxu0
      %v717 = vpop.f32.mrb[0].mxu0
      %v718 = vpop.f32.mrb[0].mxu0
      %719 = vdwg.mxu0
      %720 = vst.msk [vmem:[%s251] sm:$0xff] %vm286, %v577
      %721 = vst.msk [vmem:[%s251 + $0x8] sm:$0xff] %vm286, %v623
      %722 = vst.msk [vmem:[%s251 + $0x10] sm:$0xff] %vm286, %v669
      %723 = vst.msk [vmem:[%s251 + $0x18] sm:$0xff] %vm286, %v715
      %p724 = scmp.lt.s32.totalorder %s15, 1
      %s725 = scalar_select %p724, %s15, 1
      %s726 = smul.addr %s725, 4
      %s727 = smul.addr %s726, 8
      %s728 = scalar_lea.vmem %s4, %s727
      // Predicated region
      $region37: #{decoder_forward.24} parent=35 // pred_check
        %p729 = pneg %p137
      $region38: #{decoder_forward.24} parent=35 // pred_check_branch
        %731 = sbr.rel (%p729) target = $region40
      $region39: #{decoder_forward.24} parent=35 // pred_region
        _
      $region40: #{decoder_forward.24} parent=35 // pred_fallthru
        _
    $region36: #{decoder_forward.24} parent=5 // pred_fallthru
      _
    %p732 = scmp.le.s32.totalorder 2, %s10
    // Predicated region
    $region41: #{decoder_forward.24} parent=5 // pred_check
      %p733 = pneg %p732
    $region42: #{decoder_forward.24} parent=5 // pred_check_branch
      %735 = sbr.rel (%p733) target = $region44
    $region43: #{decoder_forward.24} parent=5 // pred_region
      %s736 = ssub.s32 %s10, 2
      // Predicated region
      $region45: #{decoder_forward.24} parent=43 // pred_check
        %p737 = pneg %p143
      $region46: #{decoder_forward.24} parent=43 // pred_check_branch
        %739 = sbr.rel (%p737) target = $region48
      $region47: #{decoder_forward.24} parent=43 // pred_region
        %p740 = scmp.lt.s32.totalorder %s16, 1
        %s741 = scalar_select %p740, %s16, 1
        %s742 = smul.addr %s741, 4
        %s743 = smul.addr %s742, 8
        %s744 = scalar_lea.vmem %s4, %s743
      $region48: #{decoder_forward.24} parent=43 // pred_fallthru
        _
    $region44: #{decoder_forward.24} parent=5 // pred_fallthru
      _
  $region6: #{decoder_forward.24} parent=0 // loop_footer
    %s14 = sadd.s32 1, %s10
  $region7: #{decoder_forward.24} parent=0 // loop_footer_branch
    %9 = sbr.rel target = $region3
  $region8: #{decoder_forward.24} parent=0 // loop_exit
    _

// kernel: decoder_forward.35
$region0: #{decoder_forward.35}
  #allocation0 [shape = 'u32[]', space=smem, size = 0x4, offset = 0x4, fixed_abs, tag = 'smem constant byte address 0x4 - core index']
  #allocation1 [shape = 'u32[144,128]{1,0:T(1,128)}', space=vmem, size = 0x12000, scoped, tag = 'internal scratch']
  %s0 = inlined_call_operand.vmem [shape: f32[16,32], index: 0, kind: input, shape index: {}]
  %s1 = inlined_call_operand.vmem [shape: f32[32,50], index: 1, kind: input, shape index: {}]
  %s2 = inlined_call_operand.vmem [shape: f32[1,50], index: 2, kind: input, shape index: {}]
  %s3 = inlined_call_operand.hbm [shape: f32[16,50], index: 3, kind: output, shape index: {}]
  %s4 = sld [smem:[#allocation0]]
  $region22: #{decoder_forward.35} parent=0
    _
  %s6 = ssub.s32 1, %s4
  %s7 = scalar_select 0, %s6, %s4
  $region1: #{decoder_forward.35} parent=0
    #allocation2 [shape = 'u8[8192]{0}', space=vmem, size = 0x2000, scoped, tag = 'output window, operand 0, single buffered']
    #allocation3 [shape = 's32[1]{0}', space=sflag, size = 0x4, scoped, tag = 'scoped memory for decoder_forward.35']
    %8 = vsyncpa [#allocation3], 0
    // Predicated region
    $region2: #{decoder_forward.35} parent=1 // pred_check
      _
    $region3: #{decoder_forward.35} parent=1 // pred_check_branch
      %10 = sbr.rel (0) target = $region5
    $region4: #{decoder_forward.35} parent=1 // pred_region
      _
    $region5: #{decoder_forward.35} parent=1 // pred_fallthru
      _
    // Predicated region
    $region6: #{decoder_forward.35} parent=1 // pred_check
      _
    $region7: #{decoder_forward.35} parent=1 // pred_check_branch
      %12 = sbr.rel (0) target = $region9
    $region8: #{decoder_forward.35} parent=1 // pred_region
      _
    $region9: #{decoder_forward.35} parent=1 // pred_fallthru
      _
    // Predicated region
    $region10: #{decoder_forward.35} parent=1 // pred_check
      _
    $region11: #{decoder_forward.35} parent=1 // pred_check_branch
      %14 = sbr.rel (0) target = $region13
    $region12: #{decoder_forward.35} parent=1 // pred_region
      _
    $region13: #{decoder_forward.35} parent=1 // pred_fallthru
      _
    %v16 = vld [vmem:[%s0] sm:$0xff]
    %v17 = vld [vmem:[%s0 + $0x8] sm:$0xff]
    %v18 = vpack.c.bf16 %v17, %v16
    %v19 = vld [vmem:[%s1] sm:$0xff]
    %v20 = vld [vmem:[%s1 + $0x8] sm:$0xff]
    %v21 = vld [vmem:[%s1 + $0x10] sm:$0xff]
    %v22 = vld [vmem:[%s1 + $0x18] sm:$0xff]
    %v23 = vpack.c.bf16 %v20, %v19
    %v24 = vpack.c.bf16 %v22, %v21
    %v25 = vld [vmem:[%s2] sm:$0x1]
    %v27 = vlaneseq
    %v28 = vshrl.u32 %v27, 7
    %v29 = vsub.s32 0, %v28
    %v30 = vrot.slane %v25, %v29
    %vm32 = vcmask 261120
    %v34 = vsel %vm32, %v18, 0
    %36 = vmatprep.subr.bf16.mxu0 0
    %37 = vmatpush1.bf16.msra.mxu0 %v23
    %38 = vmatprep.subr.bf16.mxu0 0
    %39 = vmatpush1.bf16.msra.mxu0 %v24
    %40 = vmatprep.subr.bf16.mxu0 0
    %41 = vmatpush1.bf16.msra.mxu0 0
    %42 = vmatprep.subr.bf16.mxu0 0
    %43 = vmatpush1.bf16.msra.mxu0 0
    %44 = vmatprep.subr.bf16.mxu0 0
    %45 = vmatpush1.bf16.msra.mxu0 0
    %46 = vmatprep.subr.bf16.mxu0 0
    %47 = vmatpush1.bf16.msra.mxu0 0
    %48 = vmatprep.subr.bf16.mxu0 0
    %49 = vmatpush1.bf16.msra.mxu0 0
    %50 = vmatprep.subr.bf16.mxu0 0
    %51 = vmatpush1.bf16.msra.mxu0 0
    %52 = vmatprep.subr.bf16.mxu0 0
    %53 = vmatpush1.bf16.msra.mxu0 0
    %54 = vmatprep.subr.bf16.mxu0 0
    %55 = vmatpush1.bf16.msra.mxu0 0
    %56 = vmatprep.subr.bf16.mxu0 0
    %57 = vmatpush1.bf16.msra.mxu0 0
    %58 = vmatprep.subr.bf16.mxu0 0
    %59 = vmatpush1.bf16.msra.mxu0 0
    %60 = vmatprep.subr.bf16.mxu0 0
    %61 = vmatpush1.bf16.msra.mxu0 0
    %62 = vmatprep.subr.bf16.mxu0 0
    %63 = vmatpush1.bf16.msra.mxu0 0
    %64 = vmatprep.subr.bf16.mxu0 0
    %65 = vmatpush1.bf16.msra.mxu0 0
    %66 = vmatprep.subr.bf16.mxu0 0
    %67 = vmatpush1.bf16.msra.mxu0 0
    %68 = vmatprep.mubr.bf16.mxu0 0
    %69 = vmatmul.mubr.bf16.gmra.mrb[0].mxu0 %v34
    %v70 = vpop.f32.mrb[0].mxu0
    %v71 = vadd.f32 %v30, %v70
    %v72 = vpop.f32.mrb[0].mxu0
    %v73 = vpop.f32.mrb[0].mxu0
    %v74 = vadd.f32 %v30, %v73
    %v75 = vpop.f32.mrb[0].mxu0
    %76 = vdwg.mxu0
    %vm77 = vcmask 408576
    %v78 = vsel %vm77, %v71, -inf
    %79 = vmax.xlane.f32.xlu0 %v78
    %v80 = vpop.xlane.xlu0 %79
    %v81 = vsel %vm77, %v74, -inf
    %82 = vmax.xlane.f32.xlu0 %v81
    %v83 = vpop.xlane.xlu0 %82
    %v84 = vsub.f32 %v71, %v80
    %v85 = vsub.f32 %v74, %v83
    %v86 = vmul.f32 %v84, 1.442695
    %v87 = vpow.pop %v86
    %v88 = vmul.f32 %v85, 1.442695
    %v89 = vpow.pop %v88
    %v90 = vsel %vm77, %v87, 0.0
    %91 = vadd.xlane.f32.xlu0 %v90
    %v92 = vpop.xlane.xlu0 %91
    %v93 = vsel %vm77, %v89, 0.0
    %94 = vadd.xlane.f32.xlu0 %v93
    %v95 = vpop.xlane.xlu0 %94
    %v96 = vlog2.pop %v92
    %v97 = vmul.f32 %v96, 0.6931472
    %v98 = vlog2.pop %v95
    %v99 = vmul.f32 %v98, 0.6931472
    %v100 = vsub.f32 %v84, %v97
    %v101 = vsub.f32 %v85, %v99
    %102 = vst.msk [vmem:[#allocation2] sm:$0xff] %vm77, %v100
    %103 = vst.msk [vmem:[#allocation2 + $0x8] sm:$0xff] %vm77, %v101
    // Predicated region
    $region14: #{decoder_forward.35} parent=1 // pred_check
      _
    $region15: #{decoder_forward.35} parent=1 // pred_check_branch
      %105 = sbr.rel (0) target = $region17
    $region16: #{decoder_forward.35} parent=1 // pred_region
      %s107 = ssub.s32 256, 256
      %108 = vsyncadd [#allocation3], %s107
      %s109 = sshll.u32 [#allocation2], 4
      %s110 = int_to_ptr.vmem [resolvable:$true] %s109
      %115 = dma.vmem_to_hbm [thread:$0]  %s110, 256, %s3, [#allocation3], 128, 128, 8
    $region17: #{decoder_forward.35} parent=1 // pred_fallthru
      _
    // Predicated region
    $region18: #{decoder_forward.35} parent=1 // pred_check
      _
    $region19: #{decoder_forward.35} parent=1 // pred_check_branch
      %117 = sbr.rel (0) target = $region21
    $region20: #{decoder_forward.35} parent=1 // pred_region
      %118 = dma.done [#allocation3], 256
    $region21: #{decoder_forward.35} parent=1 // pred_fallthru
      _
    %119 = vsyncpa [#allocation3], 1

// kernel: decoder_forward.26
$region0: #{decoder_forward.26}
  #allocation0 [shape = 'u32[]', space=smem, size = 0x4, offset = 0x4, fixed_abs, tag = 'smem constant byte address 0x4 - core index']
  #allocation1 [shape = 'u32[144,128]{1,0:T(1,128)}', space=vmem, size = 0x12000, scoped, tag = 'internal scratch']
  %s0 = inlined_call_operand.vmem [shape: f32[16,32], index: 0, kind: input, shape index: {}]
  %s1 = inlined_call_operand.vmem [shape: f32[32,64], index: 1, kind: input, shape index: {}]
  %s2 = inlined_call_operand.vmem [shape: f32[1,64], index: 2, kind: input, shape index: {}]
  %s3 = inlined_call_operand.vmem [shape: f32[64,32], index: 3, kind: input, shape index: {}]
  %s4 = inlined_call_operand.vmem [shape: f32[1,32], index: 4, kind: input, shape index: {}]
  %s5 = inlined_call_operand.vmem [shape: f32[1,32], index: 5, kind: input, shape index: {}]
  %s6 = inlined_call_operand.vmem [shape: f32[1,32], index: 6, kind: input, shape index: {}]
  %s7 = inlined_call_operand.vmem [shape: f32[16,32], index: 7, kind: output, shape index: {}]
  %s8 = sld [smem:[#allocation0]]
  $region38: #{decoder_forward.26} parent=0
    _
  %s10 = ssub.s32 1, %s8
  %s11 = scalar_select 0, %s10, %s8
  // Predicated region
  $region2: #{decoder_forward.26} parent=0 // pred_check
    _
  $region3: #{decoder_forward.26} parent=0 // pred_check_branch
    %13 = sbr.rel (0) target = $region5
  $region4: #{decoder_forward.26} parent=0 // pred_region
    _
  $region5: #{decoder_forward.26} parent=0 // pred_fallthru
    _
  // Predicated region
  $region6: #{decoder_forward.26} parent=0 // pred_check
    _
  $region7: #{decoder_forward.26} parent=0 // pred_check_branch
    %15 = sbr.rel (0) target = $region9
  $region8: #{decoder_forward.26} parent=0 // pred_region
    _
  $region9: #{decoder_forward.26} parent=0 // pred_fallthru
    _
  // Predicated region
  $region10: #{decoder_forward.26} parent=0 // pred_check
    _
  $region11: #{decoder_forward.26} parent=0 // pred_check_branch
    %17 = sbr.rel (0) target = $region13
  $region12: #{decoder_forward.26} parent=0 // pred_region
    _
  $region13: #{decoder_forward.26} parent=0 // pred_fallthru
    _
  // Predicated region
  $region14: #{decoder_forward.26} parent=0 // pred_check
    _
  $region15: #{decoder_forward.26} parent=0 // pred_check_branch
    %19 = sbr.rel (0) target = $region17
  $region16: #{decoder_forward.26} parent=0 // pred_region
    _
  $region17: #{decoder_forward.26} parent=0 // pred_fallthru
    _
  // Predicated region
  $region18: #{decoder_forward.26} parent=0 // pred_check
    _
  $region19: #{decoder_forward.26} parent=0 // pred_check_branch
    %21 = sbr.rel (0) target = $region21
  $region20: #{decoder_forward.26} parent=0 // pred_region
    _
  $region21: #{decoder_forward.26} parent=0 // pred_fallthru
    _
  // Predicated region
  $region22: #{decoder_forward.26} parent=0 // pred_check
    _
  $region23: #{decoder_forward.26} parent=0 // pred_check_branch
    %23 = sbr.rel (0) target = $region25
  $region24: #{decoder_forward.26} parent=0 // pred_region
    _
  $region25: #{decoder_forward.26} parent=0 // pred_fallthru
    _
  // Predicated region
  $region26: #{decoder_forward.26} parent=0 // pred_check
    _
  $region27: #{decoder_forward.26} parent=0 // pred_check_branch
    %25 = sbr.rel (0) target = $region29
  $region28: #{decoder_forward.26} parent=0 // pred_region
    _
  $region29: #{decoder_forward.26} parent=0 // pred_fallthru
    _
  %v27 = vld [vmem:[%s0] sm:$0xff]
  %v28 = vld [vmem:[%s0 + $0x8] sm:$0xff]
  %v29 = vpack.c.bf16 %v28, %v27
  %v30 = vld [vmem:[%s1] sm:$0xff]
  %v31 = vld [vmem:[%s1 + $0x8] sm:$0xff]
  %v32 = vld [vmem:[%s1 + $0x10] sm:$0xff]
  %v33 = vld [vmem:[%s1 + $0x18] sm:$0xff]
  %v34 = vpack.c.bf16 %v31, %v30
  %v35 = vpack.c.bf16 %v33, %v32
  %v36 = vld [vmem:[%s2] sm:$0x1]
  %v38 = vlaneseq
  %v39 = vshrl.u32 %v38, 7
  %v40 = vsub.s32 0, %v39
  %v41 = vrot.slane %v36, %v40
  %vm43 = vcmask 261120
  %v45 = vsel %vm43, %v29, 0
  %47 = vmatprep.subr.bf16.mxu0 0
  %48 = vmatpush1.bf16.msra.mxu0 %v34
  %49 = vmatprep.subr.bf16.mxu0 0
  %50 = vmatpush1.bf16.msra.mxu0 %v35
  %51 = vmatprep.subr.bf16.mxu0 0
  %52 = vmatpush1.bf16.msra.mxu0 0
  %53 = vmatprep.subr.bf16.mxu0 0
  %54 = vmatpush1.bf16.msra.mxu0 0
  %55 = vmatprep.subr.bf16.mxu0 0
  %56 = vmatpush1.bf16.msra.mxu0 0
  %57 = vmatprep.subr.bf16.mxu0 0
  %58 = vmatpush1.bf16.msra.mxu0 0
  %59 = vmatprep.subr.bf16.mxu0 0
  %60 = vmatpush1.bf16.msra.mxu0 0
  %61 = vmatprep.subr.bf16.mxu0 0
  %62 = vmatpush1.bf16.msra.mxu0 0
  %63 = vmatprep.subr.bf16.mxu0 0
  %64 = vmatpush1.bf16.msra.mxu0 0
  %65 = vmatprep.subr.bf16.mxu0 0
  %66 = vmatpush1.bf16.msra.mxu0 0
  %67 = vmatprep.subr.bf16.mxu0 0
  %68 = vmatpush1.bf16.msra.mxu0 0
  %69 = vmatprep.subr.bf16.mxu0 0
  %70 = vmatpush1.bf16.msra.mxu0 0
  %71 = vmatprep.subr.bf16.mxu0 0
  %72 = vmatpush1.bf16.msra.mxu0 0
  %73 = vmatprep.subr.bf16.mxu0 0
  %74 = vmatpush1.bf16.msra.mxu0 0
  %75 = vmatprep.subr.bf16.mxu0 0
  %76 = vmatpush1.bf16.msra.mxu0 0
  %77 = vmatprep.subr.bf16.mxu0 0
  %78 = vmatpush1.bf16.msra.mxu0 0
  %79 = vmatprep.mubr.bf16.mxu0 0
  %80 = vmatmul.mubr.bf16.gmra.mrb[0].mxu0 %v45
  %v81 = vpop.f32.mrb[0].mxu0
  %v82 = vadd.f32 %v41, %v81
  %v83 = vpop.f32.mrb[0].mxu0
  %v84 = vpop.f32.mrb[0].mxu0
  %v85 = vadd.f32 %v41, %v84
  %v86 = vpop.f32.mrb[0].mxu0
  %87 = vdwg.mxu0
  %v88 = vmax.f32 %v82, 0.0
  %v89 = vmax.f32 %v85, 0.0
  %v90 = vpack.c.bf16 %v89, %v88
  %v91 = vld [vmem:[%s3] sm:$0xff]
  %v92 = vld [vmem:[%s3 + $0x8] sm:$0xff]
  %v93 = vld [vmem:[%s3 + $0x10] sm:$0xff]
  %v94 = vld [vmem:[%s3 + $0x18] sm:$0xff]
  %v95 = vld [vmem:[%s3 + $0x20] sm:$0xff]
  %v96 = vld [vmem:[%s3 + $0x28] sm:$0xff]
  %v97 = vld [vmem:[%s3 + $0x30] sm:$0xff]
  %v98 = vld [vmem:[%s3 + $0x38] sm:$0xff]
  %v99 = vpack.c.bf16 %v92, %v91
  %v100 = vpack.c.bf16 %v94, %v93
  %v101 = vpack.c.bf16 %v96, %v95
  %v102 = vpack.c.bf16 %v98, %v97
  %v103 = vld [vmem:[%s4] sm:$0x1]
  %v105 = vlaneseq
  %v106 = vshrl.u32 %v105, 7
  %v107 = vsub.s32 0, %v106
  %v108 = vrot.slane %v103, %v107
  %vm110 = vcmask 523264
  %v112 = vsel %vm110, %v90, 0
  %114 = vmatprep.subr.bf16.mxu0 0
  %115 = vmatpush1.bf16.msra.mxu0 %v99
  %116 = vmatprep.subr.bf16.mxu0 0
  %117 = vmatpush1.bf16.msra.mxu0 %v100
  %118 = vmatprep.subr.bf16.mxu0 0
  %119 = vmatpush1.bf16.msra.mxu0 %v101
  %120 = vmatprep.subr.bf16.mxu0 0
  %121 = vmatpush1.bf16.msra.mxu0 %v102
  %122 = vmatprep.subr.bf16.mxu0 0
  %123 = vmatpush1.bf16.msra.mxu0 0
  %124 = vmatprep.subr.bf16.mxu0 0
  %125 = vmatpush1.bf16.msra.mxu0 0
  %126 = vmatprep.subr.bf16.mxu0 0
  %127 = vmatpush1.bf16.msra.mxu0 0
  %128 = vmatprep.subr.bf16.mxu0 0
  %129 = vmatpush1.bf16.msra.mxu0 0
  %130 = vmatprep.subr.bf16.mxu0 0
  %131 = vmatpush1.bf16.msra.mxu0 0
  %132 = vmatprep.subr.bf16.mxu0 0
  %133 = vmatpush1.bf16.msra.mxu0 0
  %134 = vmatprep.subr.bf16.mxu0 0
  %135 = vmatpush1.bf16.msra.mxu0 0
  %136 = vmatprep.subr.bf16.mxu0 0
  %137 = vmatpush1.bf16.msra.mxu0 0
  %138 = vmatprep.subr.bf16.mxu0 0
  %139 = vmatpush1.bf16.msra.mxu0 0
  %140 = vmatprep.subr.bf16.mxu0 0
  %141 = vmatpush1.bf16.msra.mxu0 0
  %142 = vmatprep.subr.bf16.mxu0 0
  %143 = vmatpush1.bf16.msra.mxu0 0
  %144 = vmatprep.subr.bf16.mxu0 0
  %145 = vmatpush1.bf16.msra.mxu0 0
  %146 = vmatprep.mubr.bf16.mxu0 0
  %147 = vmatmul.mubr.bf16.gmra.mrb[0].mxu0 %v112
  %v148 = vpop.f32.mrb[0].mxu0
  %v149 = vadd.f32 %v108, %v148
  %v150 = vpop.f32.mrb[0].mxu0
  %v151 = vpop.f32.mrb[0].mxu0
  %v152 = vadd.f32 %v108, %v151
  %v153 = vpop.f32.mrb[0].mxu0
  %154 = vdwg.mxu0
  %v155 = vadd.f32 %v149, %v27
  %v156 = vadd.f32 %v152, %v28
  %v157 = vsel %vm43, %v155, 0.0
  %158 = vadd.xlane.f32.xlu0 %v157
  %v159 = vpop.xlane.xlu0 %158
  %v160 = vsel %vm43, %v156, 0.0
  %161 = vadd.xlane.f32.xlu0 %v160
  %v162 = vpop.xlane.xlu0 %161
  %v163 = vrcp.pop 32.0
  %v164 = vmul.f32 %v159, %v163
  %v165 = vmul.f32 %v162, %v163
  %v166 = vsub.f32 %v155, %v164
  %v167 = vsub.f32 %v156, %v165
  %v168 = vmul.f32 %v166, %v166
  %v169 = vmul.f32 %v167, %v167
  %v170 = vsel %vm43, %v168, 0.0
  %171 = vadd.xlane.f32.xlu0 %v170
  %v172 = vpop.xlane.xlu0 %171
  %v173 = vsel %vm43, %v169, 0.0
  %174 = vadd.xlane.f32.xlu0 %v173
  %v175 = vpop.xlane.xlu0 %174
  %v176 = vmul.f32 %v172, %v163
  %v177 = vmul.f32 %v175, %v163
  %v178 = vadd.f32 %v176, 1e-05
  %v179 = vadd.f32 %v177, 1e-05
  %v180 = vrsqrt.pop %v178
  %v181 = vrsqrt.pop %v179
  %v182 = vmul.f32 %v166, %v180
  %v183 = vmul.f32 %v167, %v181
  %v184 = vld [vmem:[%s5] sm:$0x1]
  %v186 = vlaneseq
  %v187 = vshrl.u32 %v186, 7
  %v188 = vsub.s32 0, %v187
  %v189 = vrot.slane %v184, %v188
  %v191 = vmul.f32 %v182, %v189
  %v192 = vmul.f32 %v183, %v189
  %v193 = vld [vmem:[%s6] sm:$0x1]
  %v195 = vlaneseq
  %v196 = vshrl.u32 %v195, 7
  %v197 = vsub.s32 0, %v196
  %v198 = vrot.slane %v193, %v197
  %v200 = vadd.f32 %v191, %v198
  %v201 = vadd.f32 %v192, %v198
  %202 = vst.msk [vmem:[%s7] sm:$0xff] %vm43, %v200
  %203 = vst.msk [vmem:[%s7 + $0x8] sm:$0xff] %vm43, %v201
  // Predicated region
  $region30: #{decoder_forward.26} parent=0 // pred_check
    _
  $region31: #{decoder_forward.26} parent=0 // pred_check_branch
    %205 = sbr.rel (0) target = $region33
  $region32: #{decoder_forward.26} parent=0 // pred_region
    _
  $region33: #{decoder_forward.26} parent=0 // pred_fallthru
    _
  // Predicated region
  $region34: #{decoder_forward.26} parent=0 // pred_check
    _
  $region35: #{decoder_forward.26} parent=0 // pred_check_branch
    %207 = sbr.rel (0) target = $region37
  $region36: #{decoder_forward.26} parent=0 // pred_region
    _
  $region37: #{decoder_forward.26} parent=0 // pred_fallthru
    _

// kernel: decoder_forward.32
$region0: #{decoder_forward.32}
  #allocation0 [shape = 'u32[]', space=smem, size = 0x4, offset = 0x4, fixed_abs, tag = 'smem constant byte address 0x4 - core index']
  #allocation1 [shape = 'u32[144,128]{1,0:T(1,128)}', space=vmem, size = 0x12000, scoped, tag = 'internal scratch']
  %s0 = inlined_call_operand.vmem [shape: f32[2,4,8,8], index: 0, kind: input, shape index: {}]
  %s1 = inlined_call_operand.vmem [shape: f32[2,4,10,8], index: 1, kind: input, shape index: {}]
  %s2 = inlined_call_operand.vmem [shape: f32[2,4,10,8], index: 2, kind: input, shape index: {}]
  %s3 = inlined_call_operand.vmem [shape: f32[2,1,10], index: 3, kind: input, shape index: {}]
  %s4 = inlined_call_operand.vmem [shape: f32[2,4,8,8], index: 4, kind: output, shape index: {0}]
  %s5 = inlined_call_operand.hbm [shape: f32[2,4,8,10], index: 5, kind: output, shape index: {1}]
  %6 = xla_tuple %s4, %s5
  %s7 = sld [smem:[#allocation0]]
  $region57: #{decoder_forward.32} parent=0
    _
  %s9 = ssub.s32 1, %s7
  %s10 = scalar_select 0, %s9, %s7
  $region1: #{decoder_forward.32} parent=0
    #allocation2 [shape = 'u8[32768]{0}', space=vmem, size = 0x8000, scoped, tag = 'output window, operand 1']
    #allocation3 [shape = 's32[2]{0}', space=sflag, size = 0x8, scoped, tag = 'scoped memory for decoder_forward.32']
    %11 = vsyncpa [#allocation3], 0
    %s12 = scalar_lea.sflag [#allocation3], 1
    %13 = vsyncpa %s12, 0
    loop: start=0, step=1, limit=4
    $region2: #{decoder_forward.32} parent=1 // loop_pre_header
      _
    $region3: #{decoder_forward.32} parent=1 // loop_header
      %s15 = sphi 0, %s19
      %p16 = scmp.ge.s32.totalorder %s15, 4
      %s25 = sphi 0, %s27
      %s28 = sphi 0, %s25
      %s29 = sphi 0, %s28
      %s45 = sphi 0, %s29
      %s51 = sphi 0, %s53
      %s54 = sphi 0, %s51
      %s55 = sphi 0, %s54
      %s71 = sphi 0, %s55
      %s77 = sphi 0, %s79
      %s80 = sphi 0, %s77
      %s81 = sphi 0, %s80
      %s97 = sphi 0, %s81
      %s103 = sphi 0, %s105
      %s106 = sphi 0, %s103
      %s107 = sphi 0, %s106
      %s123 = sphi 0, %s107
      %s129 = sphi 0, %s131
      %s132 = sphi 0, %s129
      %s133 = sphi 0, %s132
      %s149 = sphi 0, %s133
      %s155 = sphi 0, %s157
      %s158 = sphi 0, %s155
      %s159 = sphi 0, %s158
      %s175 = sphi 0, %s159
    $region4: #{decoder_forward.32} parent=1 // loop_header_branch
      %18 = sbr.rel (%p16) target = $region8
    $region5: #{decoder_forward.32} parent=1 // loop_body
      %s20 = ssub.s32 %s15, 1
      %s21 = ssub.s32 %s15, 2
      %s22 = sadd.s32 %s15, 1
      %s23 = ssub.s32 %s15, %s22
      %p24 = scmp.eq.s32.totalorder %s23, 0
      %s26 = sadd.s32 %s25, 1
      %s27 = scalar_select %p24, %s25, %s26
      %p30 = pneg %p24
      %p31 = scmp.eq.s32.totalorder %s15, 1
      %p32 = por %p30, %p31
      %p33 = scmp.ne.s32.totalorder %s25, %s28
      %p34 = scmp.eq.s32.totalorder %s15, 0
      %p35 = por %p33, %p34
      %p36 = scmp.ne.s32.totalorder %s25, %s28
      %p37 = scmp.eq.s32.totalorder %s20, 1
      %p38 = por %p36, %p37
      %p39 = scmp.ne.s32.totalorder %s28, %s29
      %p40 = scmp.eq.s32.totalorder %s20, 0
      %p41 = por %p39, %p40
      %p42 = scmp.ne.s32.totalorder %s28, %s29
      %p43 = scmp.eq.s32.totalorder %s21, 1
      %p44 = por %p42, %p43
      %p46 = scmp.ne.s32.totalorder %s29, %s45
      %p47 = scmp.eq.s32.totalorder %s21, 0
      %p48 = por %p46, %p47
      %s49 = ssub.s32 %s15, %s22
      %p50 = scmp.eq.s32.totalorder %s49, 0
      %s52 = sadd.s32 %s51, 1
      %s53 = scalar_select %p50, %s51, %s52
      %p56 = pneg %p50
      %p57 = scmp.eq.s32.totalorder %s15, 1
      %p58 = por %p56, %p57
      %p59 = scmp.ne.s32.totalorder %s51, %s54
      %p60 = scmp.eq.s32.totalorder %s15, 0
      %p61 = por %p59, %p60
      %p62 = scmp.ne.s32.totalorder %s51, %s54
      %p63 = scmp.eq.s32.totalorder %s20, 1
      %p64 = por %p62, %p63
      %p65 = scmp.ne.s32.totalorder %s54, %s55
      %p66 = scmp.eq.s32.totalorder %s20, 0
      %p67 = por %p65, %p66
      %p68 = scmp.ne.s32.totalorder %s54, %s55
      %p69 = scmp.eq.s32.totalorder %s21, 1
      %p70 = por %p68, %p69
      %p72 = scmp.ne.s32.totalorder %s55, %s71
      %p73 = scmp.eq.s32.totalorder %s21, 0
      %p74 = por %p72, %p73
      %s75 = ssub.s32 %s15, %s22
      %p76 = scmp.eq.s32.totalorder %s75, 0
      %s78 = sadd.s32 %s77, 1
      %s79 = scalar_select %p76, %s77, %s78
      %p82 = pneg %p76
      %p83 = scmp.eq.s32.totalorder %s15, 1
      %p84 = por %p82, %p83
      %p85 = scmp.ne.s32.totalorder %s77, %s80
      %p86 = scmp.eq.s32.totalorder %s15, 0
      %p87 = por %p85, %p86
      %p88 = scmp.ne.s32.totalorder %s77, %s80
      %p89 = scmp.eq.s32.totalorder %s20, 1
      %p90 = por %p88, %p89
      %p91 = scmp.ne.s32.totalorder %s80, %s81
      %p92 = scmp.eq.s32.totalorder %s20, 0
      %p93 = por %p91, %p92
      %p94 = scmp.ne.s32.totalorder %s80, %s81
      %p95 = scmp.eq.s32.totalorder %s21, 1
      %p96 = por %p94, %p95
      %p98 = scmp.ne.s32.totalorder %s81, %s97
      %p99 = scmp.eq.s32.totalorder %s21, 0
      %p100 = por %p98, %p99
      %s101 = ssub.s32 %s15, %s22
      %p102 = scmp.eq.s32.totalorder %s101, 0
      %s104 = sadd.s32 %s103, 1
      %s105 = scalar_select %p102, %s103, %s104
      %p108 = pneg %p102
      %p109 = scmp.eq.s32.totalorder %s15, 1
      %p110 = por %p108, %p109
      %p111 = scmp.ne.s32.totalorder %s103, %s106
      %p112 = scmp.eq.s32.totalorder %s15, 0
      %p113 = por %p111, %p112
      %p114 = scmp.ne.s32.totalorder %s103, %s106
      %p115 = scmp.eq.s32.totalorder %s20, 1
      %p116 = por %p114, %p115
      %p117 = scmp.ne.s32.totalorder %s106, %s107
      %p118 = scmp.eq.s32.totalorder %s20, 0
      %p119 = por %p117, %p118
      %p120 = scmp.ne.s32.totalorder %s106, %s107
      %p121 = scmp.eq.s32.totalorder %s21, 1
      %p122 = por %p120, %p121
      %p124 = scmp.ne.s32.totalorder %s107, %s123
      %p125 = scmp.eq.s32.totalorder %s21, 0
      %p126 = por %p124, %p125
      %s127 = ssub.s32 %s15, %s22
      %p128 = scmp.eq.s32.totalorder %s127, 0
      %s130 = sadd.s32 %s129, 1
      %s131 = scalar_select %p128, %s129, %s130
      %p134 = pneg %p128
      %p135 = scmp.eq.s32.totalorder %s15, 1
      %p136 = por %p134, %p135
      %p137 = scmp.ne.s32.totalorder %s129, %s132
      %p138 = scmp.eq.s32.totalorder %s15, 0
      %p139 = por %p137, %p138
      %p140 = scmp.ne.s32.totalorder %s129, %s132
      %p141 = scmp.eq.s32.totalorder %s20, 1
      %p142 = por %p140, %p141
      %p143 = scmp.ne.s32.totalorder %s132, %s133
      %p144 = scmp.eq.s32.totalorder %s20, 0
      %p145 = por %p143, %p144
      %p146 = scmp.ne.s32.totalorder %s132, %s133
      %p147 = scmp.eq.s32.totalorder %s21, 1
      %p148 = por %p146, %p147
      %p150 = scmp.ne.s32.totalorder %s133, %s149
      %p151 = scmp.eq.s32.totalorder %s21, 0
      %p152 = por %p150, %p151
      %s153 = ssub.s32 %s15, %s22
      %p154 = scmp.eq.s32.totalorder %s153, 0
      %s156 = sadd.s32 %s155, 1
      %s157 = scalar_select %p154, %s155, %s156
      %p160 = pneg %p154
      %p161 = scmp.eq.s32.totalorder %s15, 1
      %p162 = por %p160, %p161
      %p163 = scmp.ne.s32.totalorder %s155, %s158
      %p164 = scmp.eq.s32.totalorder %s15, 0
      %p165 = por %p163, %p164
      %p166 = scmp.ne.s32.totalorder %s155, %s158
      %p167 = scmp.eq.s32.totalorder %s20, 1
      %p168 = por %p166, %p167
      %p169 = scmp.ne.s32.totalorder %s158, %s159
      %p170 = scmp.eq.s32.totalorder %s20, 0
      %p171 = por %p169, %p170
      %p172 = scmp.ne.s32.totalorder %s158, %s159
      %p173 = scmp.eq.s32.totalorder %s21, 1
      %p174 = por %p172, %p173
      %p176 = scmp.ne.s32.totalorder %s159, %s175
      %p177 = scmp.eq.s32.totalorder %s21, 0
      %p178 = por %p176, %p177
      %p179 = scmp.le.s32.totalorder 1, %s15
      %p180 = scmp.lt.s32.totalorder %s15, 3
      %p181 = pnand %p179, %p180
      %p182 = pneg %p181
      // Predicated region
      $region9: #{decoder_forward.32} parent=5 // pred_check
        _
      $region10: #{decoder_forward.32} parent=5 // pred_check_branch
        %184 = sbr.rel (%p181) target = $region12
      $region11: #{decoder_forward.32} parent=5 // pred_region
        %s185 = ssub.s32 %s15, 1
      $region12: #{decoder_forward.32} parent=5 // pred_fallthru
        _
      %p186 = scmp.lt.s32.totalorder %s15, 2
      // Predicated region
      $region13: #{decoder_forward.32} parent=5 // pred_check
        %p187 = pneg %p186
      $region14: #{decoder_forward.32} parent=5 // pred_check_branch
        %189 = sbr.rel (%p187) target = $region16
      $region15: #{decoder_forward.32} parent=5 // pred_region
        // Predicated region
        $region17: #{decoder_forward.32} parent=15 // pred_check
          %p190 = pneg %p35
        $region18: #{decoder_forward.32} parent=15 // pred_check_branch
          %192 = sbr.rel (%p190) target = $region20
        $region19: #{decoder_forward.32} parent=15 // pred_region
          %p193 = scmp.lt.s32.totalorder %s15, 1
          %s194 = scalar_select %p193, %s15, 1
          %s195 = smul.addr %s194, 4
          %s196 = smul.addr %s195, 8
          %s197 = scalar_lea.vmem %s0, %s196
        $region20: #{decoder_forward.32} parent=15 // pred_fallthru
          _
        // Predicated region
        $region21: #{decoder_forward.32} parent=15 // pred_check
          %p198 = pneg %p61
        $region22: #{decoder_forward.32} parent=15 // pred_check_branch
          %200 = sbr.rel (%p198) target = $region24
        $region23: #{decoder_forward.32} parent=15 // pred_region
          %p201 = scmp.lt.s32.totalorder %s15, 1
          %s202 = scalar_select %p201, %s15, 1
          %s203 = smul.addr %s202, 8
          %s204 = smul.addr %s203, 8
          %s205 = scalar_lea.vmem %s1, %s204
        $region24: #{decoder_forward.32} parent=15 // pred_fallthru
          _
        // Predicated region
        $region25: #{decoder_forward.32} parent=15 // pred_check
          %p206 = pneg %p87
        $region26: #{decoder_forward.32} parent=15 // pred_check_branch
          %208 = sbr.rel (%p206) target = $region28
        $region27: #{decoder_forward.32} parent=15 // pred_region
          %p209 = scmp.lt.s32.totalorder %s15, 1
          %s210 = scalar_select %p209, %s15, 1
          %s211 = smul.addr %s210, 8
          %s212 = smul.addr %s211, 8
          %s213 = scalar_lea.vmem %s2, %s212
        $region28: #{decoder_forward.32} parent=15 // pred_fallthru
          _
        // Predicated region
        $region29: #{decoder_forward.32} parent=15 // pred_check
          %p214 = pneg %p113
        $region30: #{decoder_forward.32} parent=15 // pred_check_branch
          %216 = sbr.rel (%p214) target = $region32
        $region31: #{decoder_forward.32} parent=15 // pred_region
          %p217 = scmp.lt.s32.totalorder %s15, 1
          %s218 = scalar_select %p217, %s15, 1
          %s219 = scalar_lea.vmem %s3, %s218
        $region32: #{decoder_forward.32} parent=15 // pred_fallthru
          _
      $region16: #{decoder_forward.32} parent=5 // pred_fallthru
        _
      %p220 = scmp.le.s32.totalorder 1, %s15
      %p221 = scmp.lt.s32.totalorder %s15, 3
      %p222 = pnand %p220, %p221
      %p223 = pneg %p222
      // Predicated region
      $region33: #{decoder_forward.32} parent=5 // pred_check
        _
      $region34: #{decoder_forward.32} parent=5 // pred_check_branch
        %225 = sbr.rel (%p222) target = $region36
      $region35: #{decoder_forward.32} parent=5 // pred_region
        %s226 = ssub.s32 %s15, 1
        %p227 = scmp.lt.s32.totalorder %s20, 1
        %s228 = scalar_select %p227, %s20, 1
        %s229 = smul.addr %s228, 4
        %s230 = smul.addr %s229, 8
        %s231 = scalar_lea.vmem %s0, %s230
        %p232 = pneg %p41
        %p233 = pneg %p38
        %p234 = scmp.lt.s32.totalorder %s20, 1
        %s235 = scalar_select %p234, %s20, 1
        %s236 = smul.addr %s235, 8
        %s237 = smul.addr %s236, 8
        %s238 = scalar_lea.vmem %s1, %s237
        %p239 = pneg %p67
        %p240 = pneg %p64
        %p241 = scmp.lt.s32.totalorder %s20, 1
        %s242 = scalar_select %p241, %s20, 1
        %s243 = smul.addr %s242, 8
        %s244 = smul.addr %s243, 8
        %s245 = scalar_lea.vmem %s2, %s244
        %p246 = pneg %p93
        %p247 = pneg %p90
        %p248 = scmp.lt.s32.totalorder %s20, 1
        %s249 = scalar_select %p248, %s20, 1
        %s250 = scalar_lea.vmem %s3, %s249
        %p251 = pneg %p119
        %p252 = pneg %p116
        %p253 = pneg %p145
        %p254 = pneg %p142
        %p255 = scmp.lt.s32.totalorder %s20, 1
        %s256 = scalar_select %p255, %s20, 1
        %s257 = smul.addr %s256, 4
        %s258 = smul.addr %s257, 8
        %s259 = scalar_lea.vmem %s4, %s258
        %p260 = pneg %p171
        %p261 = pneg %p168
        %s262 = sand.u32 %s158, 1
        %s263 = scalar_lea.sflag [#allocation3], %s262
        %s264 = sand.u32 %s158, 1
        %s265 = smul.addr %s264, 32
        %s266 = scalar_lea.vmem [#allocation2], %s265
        %p267 = scmp.lt.s32.totalorder %s20, 1
        %s268 = scalar_select %p267, %s20, 1
        %s269 = smul.addr %s268, 4
        %s270 = smul.addr %s269, 8
        %s271 = scalar_lea.vmem %s0, %s270
        %p272 = scmp.lt.s32.totalorder %s20, 1
        %s273 = scalar_select %p272, %s20, 1
        %s274 = smul.addr %s273, 8
        %s275 = smul.addr %s274, 8
        %s276 = scalar_lea.vmem %s1, %s275
        %p277 = scmp.lt.s32.totalorder %s20, 1
        %s278 = scalar_select %p277, %s20, 1
        %s279 = smul.addr %s278, 8
        %s280 = smul.addr %s279, 8
        %s281 = scalar_lea.vmem %s2, %s280
        %p282 = scmp.lt.s32.totalorder %s20, 1
        %s283 = scalar_select %p282, %s20, 1
        %s284 = scalar_lea.vmem %s3, %s283
        %p285 = scmp.lt.s32.totalorder %s20, 1
        %s286 = scalar_select %p285, %s20, 1
        %s287 = smul.addr %s286, 4
        %s288 = smul.addr %s287, 8
        %s289 = scalar_lea.vmem %s4, %s288
        %v291 = vld [vmem:[%s271] sm:$0xff]
        %v292 = vld [vmem:[%s271 + $0x8] sm:$0xff]
        %v293 = vld [vmem:[%s271 + $0x10] sm:$0xff]
        %v294 = vld [vmem:[%s271 + $0x18] sm:$0xff]
        %v295 = vpack.c.bf16 %v291, %v291
        %v296 = vpack.c.bf16 %v292, %v292
        %v297 = vpack.c.bf16 %v293, %v293
        %v298 = vpack.c.bf16 %v294, %v294
        %v299 = vld [vmem:[%s276] sm:$0xff]
        %v300 = vld [vmem:[%s276 + $0x8] sm:$0x3]
        %v301 = vld [vmem:[%s276 + $0x10] sm:$0xff]
        %v302 = vld [vmem:[%s276 + $0x18] sm:$0x3]
        %v303 = vld [vmem:[%s276 + $0x20] sm:$0xff]
        %v304 = vld [vmem:[%s276 + $0x28] sm:$0x3]
        %v305 = vld [vmem:[%s276 + $0x30] sm:$0xff]
        %v306 = vld [vmem:[%s276 + $0x38] sm:$0x3]
        %v307 = vpack.c.bf16 %v300, %v299
        %v308 = vpack.c.bf16 %v302, %v301
        %v309 = vpack.c.bf16 %v304, %v303
        %v310 = vpack.c.bf16 %v306, %v305
        %v311 = vld [vmem:[%s281] sm:$0xff]
        %v312 = vld [vmem:[%s281 + $0x8] sm:$0x3]
        %v313 = vld [vmem:[%s281 + $0x10] sm:$0xff]
        %v314 = vld [vmem:[%s281 + $0x18] sm:$0x3]
        %v315 = vld [vmem:[%s281 + $0x20] sm:$0xff]
        %v316 = vld [vmem:[%s281 + $0x28] sm:$0x3]
        %v317 = vld [vmem:[%s281 + $0x30] sm:$0xff]
        %v318 = vld [vmem:[%s281 + $0x38] sm:$0x3]
        %v319 = vpack.c.bf16 %v312, %v311
        %v320 = vpack.c.bf16 %v314, %v313
        %v321 = vpack.c.bf16 %v316, %v315
        %v322 = vpack.c.bf16 %v318, %v317
        %v323 = vld [vmem:[%s284] sm:$0x1]
        %vm324 = vcmask 64512
        %v326 = vsel %vm324, %v295, 0
        %v329 = vsel %vm324, %v307, 0
        %331 = vmatprep.subr.bf16.mxu0 0
        %332 = vmatpush1.bf16.xpose.msra.mxu0 %v329
        %333 = vmatprep.subr.bf16.mxu0 0
        %334 = vmatpush1.bf16.xpose.msra.mxu0 0
        %335 = vmatprep.subr.bf16.mxu0 0
        %336 = vmatpush1.bf16.xpose.msra.mxu0 0
        %337 = vmatprep.subr.bf16.mxu0 0
        %338 = vmatpush1.bf16.xpose.msra.mxu0 0
        %339 = vmatprep.subr.bf16.mxu0 0
        %340 = vmatpush1.bf16.xpose.msra.mxu0 0
        %341 = vmatprep.subr.bf16.mxu0 0
        %342 = vmatpush1.bf16.xpose.msra.mxu0 0
        %343 = vmatprep.subr.bf16.mxu0 0
        %344 = vmatpush1.bf16.xpose.msra.mxu0 0
        %345 = vmatprep.subr.bf16.mxu0 0
        %346 = vmatpush1.bf16.xpose.msra.mxu0 0
        %347 = vmatprep.subr.bf16.mxu0 0
        %348 = vmatpush1.bf16.xpose.msra.mxu0 0
        %349 = vmatprep.subr.bf16.mxu0 0
        %350 = vmatpush1.bf16.xpose.msra.mxu0 0
        %351 = vmatprep.subr.bf16.mxu0 0
        %352 = vmatpush1.bf16.xpose.msra.mxu0 0
        %353 = vmatprep.subr.bf16.mxu0 0
        %354 = vmatpush1.bf16.xpose.msra.mxu0 0
        %355 = vmatprep.subr.bf16.mxu0 0
        %356 = vmatpush1.bf16.xpose.msra.mxu0 0
        %357 = vmatprep.subr.bf16.mxu0 0
        %358 = vmatpush1.bf16.xpose.msra.mxu0 0
        %359 = vmatprep.subr.bf16.mxu0 0
        %360 = vmatpush1.bf16.xpose.msra.mxu0 0
        %361 = vmatprep.subr.bf16.mxu0 0
        %362 = vmatpush1.bf16.xpose.msra.mxu0 0
        %363 = vmatprep.mubr.bf16.mxu0 0
        %364 = vmatmul.mubr.bf16.gmra.mrb[0].mxu0 %v326
        %v365 = vpop.f32.mrb[0].mxu0
        %v366 = vadd.f32 0.0, %v365
        %v367 = vpop.f32.mrb[0].mxu0
        %v368 = vpop.f32.mrb[0].mxu0
        %v369 = vpop.f32.mrb[0].mxu0
        %370 = vdwg.mxu0
        %v372 = vsel %vm324, %v296, 0
        %v375 = vsel %vm324, %v308, 0
        %377 = vmatprep.subr.bf16.mxu0 0
        %378 = vmatpush1.bf16.xpose.msra.mxu0 %v375
        %379 = vmatprep.subr.bf16.mxu0 0
        %380 = vmatpush1.bf16.xpose.msra.mxu0 0
        %381 = vmatprep.subr.bf16.mxu0 0
        %382 = vmatpush1.bf16.xpose.msra.mxu0 0
        %383 = vmatprep.subr.bf16.mxu0 0
        %384 = vmatpush1.bf16.xpose.msra.mxu0 0
        %385 = vmatprep.subr.bf16.mxu0 0
        %386 = vmatpush1.bf16.xpose.msra.mxu0 0
        %387 = vmatprep.subr.bf16.mxu0 0
        %388 = vmatpush1.bf16.xpose.msra.mxu0 0
        %389 = vmatprep.subr.bf16.mxu0 0
        %390 = vmatpush1.bf16.xpose.msra.mxu0 0
        %391 = vmatprep.subr.bf16.mxu0 0
        %392 = vmatpush1.bf16.xpose.msra.mxu0 0
        %393 = vmatprep.subr.bf16.mxu0 0
        %394 = vmatpush1.bf16.xpose.msra.mxu0 0
        %395 = vmatprep.subr.bf16.mxu0 0
        %396 = vmatpush1.bf16.xpose.msra.mxu0 0
        %397 = vmatprep.subr.bf16.mxu0 0
        %398 = vmatpush1.bf16.xpose.msra.mxu0 0
        %399 = vmatprep.subr.bf16.mxu0 0
        %400 = vmatpush1.bf16.xpose.msra.mxu0 0
        %401 = vmatprep.subr.bf16.mxu0 0
        %402 = vmatpush1.bf16.xpose.msra.mxu0 0
        %403 = vmatprep.subr.bf16.mxu0 0
        %404 = vmatpush1.bf16.xpose.msra.mxu0 0
        %405 = vmatprep.subr.bf16.mxu0 0
        %406 = vmatpush1.bf16.xpose.msra.mxu0 0
        %407 = vmatprep.subr.bf16.mxu0 0
        %408 = vmatpush1.bf16.xpose.msra.mxu0 0
        %409 = vmatprep.mubr.bf16.mxu0 0
        %410 = vmatmul.mubr.bf16.gmra.mrb[0].mxu0 %v372
        %v411 = vpop.f32.mrb[0].mxu0
        %v412 = vadd.f32 0.0, %v411
        %v413 = vpop.f32.mrb[0].mxu0
        %v414 = vpop.f32.mrb[0].mxu0
        %v415 = vpop.f32.mrb[0].mxu0
        %416 = vdwg.mxu0
        %v418 = vsel %vm324, %v297, 0
        %v421 = vsel %vm324, %v309, 0
        %423 = vmatprep.subr.bf16.mxu0 0
        %424 = vmatpush1.bf16.xpose.msra.mxu0 %v421
        %425 = vmatprep.subr.bf16.mxu0 0
        %426 = vmatpush1.bf16.xpose.msra.mxu0 0
        %427 = vmatprep.subr.bf16.mxu0 0
        %428 = vmatpush1.bf16.xpose.msra.mxu0 0
        %429 = vmatprep.subr.bf16.mxu0 0
        %430 = vmatpush1.bf16.xpose.msra.mxu0 0
        %431 = vmatprep.subr.bf16.mxu0 0
        %432 = vmatpush1.bf16.xpose.msra.mxu0 0
        %433 = vmatprep.subr.bf16.mxu0 0
        %434 = vmatpush1.bf16.xpose.msra.mxu0 0
        %435 = vmatprep.subr.bf16.mxu0 0
        %436 = vmatpush1.bf16.xpose.msra.mxu0 0
        %437 = vmatprep.subr.bf16.mxu0 0
        %438 = vmatpush1.bf16.xpose.msra.mxu0 0
        %439 = vmatprep.subr.bf16.mxu0 0
        %440 = vmatpush1.bf16.xpose.msra.mxu0 0
        %441 = vmatprep.subr.bf16.mxu0 0
        %442 = vmatpush1.bf16.xpose.msra.mxu0 0
        %443 = vmatprep.subr.bf16.mxu0 0
        %444 = vmatpush1.bf16.xpose.msra.mxu0 0
        %445 = vmatprep.subr.bf16.mxu0 0
        %446 = vmatpush1.bf16.xpose.msra.mxu0 0
        %447 = vmatprep.subr.bf16.mxu0 0
        %448 = vmatpush1.bf16.xpose.msra.mxu0 0
        %449 = vmatprep.subr.bf16.mxu0 0
        %450 = vmatpush1.bf16.xpose.msra.mxu0 0
        %451 = vmatprep.subr.bf16.mxu0 0
        %452 = vmatpush1.bf16.xpose.msra.mxu0 0
        %453 = vmatprep.subr.bf16.mxu0 0
        %454 = vmatpush1.bf16.xpose.msra.mxu0 0
        %455 = vmatprep.mubr.bf16.mxu0 0
        %456 = vmatmul.mubr.bf16.gmra.mrb[0].mxu0 %v418
        %v457 = vpop.f32.mrb[0].mxu0
        %v458 = vadd.f32 0.0, %v457
        %v459 = vpop.f32.mrb[0].mxu0
        %v460 = vpop.f32.mrb[0].mxu0
        %v461 = vpop.f32.mrb[0].mxu0
        %462 = vdwg.mxu0
        %v464 = vsel %vm324, %v298, 0
        %v467 = vsel %vm324, %v310, 0
        %469 = vmatprep.subr.bf16.mxu0 0
        %470 = vmatpush1.bf16.xpose.msra.mxu0 %v467
        %471 = vmatprep.subr.bf16.mxu0 0
        %472 = vmatpush1.bf16.xpose.msra.mxu0 0
        %473 = vmatprep.subr.bf16.mxu0 0
        %474 = vmatpush1.bf16.xpose.msra.mxu0 0
        %475 = vmatprep.subr.bf16.mxu0 0
        %476 = vmatpush1.bf16.xpose.msra.mxu0 0
        %477 = vmatprep.subr.bf16.mxu0 0
        %478 = vmatpush1.bf16.xpose.msra.mxu0 0
        %479 = vmatprep.subr.bf16.mxu0 0
        %480 = vmatpush1.bf16.xpose.msra.mxu0 0
        %481 = vmatprep.subr.bf16.mxu0 0
        %482 = vmatpush1.bf16.xpose.msra.mxu0 0
        %483 = vmatprep.subr.bf16.mxu0 0
        %484 = vmatpush1.bf16.xpose.msra.mxu0 0
        %485 = vmatprep.subr.bf16.mxu0 0
        %486 = vmatpush1.bf16.xpose.msra.mxu0 0
        %487 = vmatprep.subr.bf16.mxu0 0
        %488 = vmatpush1.bf16.xpose.msra.mxu0 0
        %489 = vmatprep.subr.bf16.mxu0 0
        %490 = vmatpush1.bf16.xpose.msra.mxu0 0
        %491 = vmatprep.subr.bf16.mxu0 0
        %492 = vmatpush1.bf16.xpose.msra.mxu0 0
        %493 = vmatprep.subr.bf16.mxu0 0
        %494 = vmatpush1.bf16.xpose.msra.mxu0 0
        %495 = vmatprep.subr.bf16.mxu0 0
        %496 = vmatpush1.bf16.xpose.msra.mxu0 0
        %497 = vmatprep.subr.bf16.mxu0 0
        %498 = vmatpush1.bf16.xpose.msra.mxu0 0
        %499 = vmatprep.subr.bf16.mxu0 0
        %500 = vmatpush1.bf16.xpose.msra.mxu0 0
        %501 = vmatprep.mubr.bf16.mxu0 0
        %502 = vmatmul.mubr.bf16.gmra.mrb[0].mxu0 %v464
        %v503 = vpop.f32.mrb[0].mxu0
        %v504 = vadd.f32 0.0, %v503
        %v505 = vpop.f32.mrb[0].mxu0
        %v506 = vpop.f32.mrb[0].mxu0
        %v507 = vpop.f32.mrb[0].mxu0
        %508 = vdwg.mxu0
        %v509 = vmul.f32 %v366, 0.35355338
        %v510 = vmul.f32 %v412, 0.35355338
        %v511 = vmul.f32 %v458, 0.35355338
        %v512 = vmul.f32 %v504, 0.35355338
        %vm513 = vcmp.lt.f32.partialorder %v323, 0.5
        %v514 = vsel %vm513, 1, 0
        %v515 = vlaneseq
        %v516 = vshrl.u32 %v515, 7
        %v517 = vsub.s32 0, %v516
        %v518 = vrot.slane %v514, %v517
        %vm519 = vcmp.eq.s32.totalorder %v518, 1
        %v520 = vsel %vm519, -1e+10, %v509
        %v521 = vsel %vm519, -1e+10, %v510
        %v522 = vsel %vm519, -1e+10, %v511
        %v523 = vsel %vm519, -1e+10, %v512
        %vm524 = vcmask 80896
        %v525 = vsel %vm524, %v520, -inf
        %526 = vmax.xlane.f32.xlu0 %v525
        %v527 = vpop.xlane.xlu0 %526
        %v528 = vsel %vm524, %v521, -inf
        %529 = vmax.xlane.f32.xlu0 %v528
        %v530 = vpop.xlane.xlu0 %529
        %v531 = vsel %vm524, %v522, -inf
        %532 = vmax.xlane.f32.xlu0 %v531
        %v533 = vpop.xlane.xlu0 %532
        %v534 = vsel %vm524, %v523, -inf
        %535 = vmax.xlane.f32.xlu0 %v534
        %v536 = vpop.xlane.xlu0 %535
        %v537 = vsub.f32 %v520, %v527
        %v538 = vsub.f32 %v521, %v530
        %v539 = vsub.f32 %v522, %v533
        %v540 = vsub.f32 %v523, %v536
        %v541 = vmul.f32 %v537, 1.442695
        %v542 = vpow.pop %v541
        %v543 = vmul.f32 %v538, 1.442695
        %v544 = vpow.pop %v543
        %v545 = vmul.f32 %v539, 1.442695
        %v546 = vpow.pop %v545
        %v547 = vmul.f32 %v540, 1.442695
        %v548 = vpow.pop %v547
        %v549 = vsel %vm524, %v542, 0.0
        %550 = vadd.xlane.f32.xlu0 %v549
        %v551 = vpop.xlane.xlu0 %550
        %v552 = vsel %vm524, %v544, 0.0
        %553 = vadd.xlane.f32.xlu0 %v552
        %v554 = vpop.xlane.xlu0 %553
        %v555 = vsel %vm524, %v546, 0.0
        %556 = vadd.xlane.f32.xlu0 %v555
        %v557 = vpop.xlane.xlu0 %556
        %v558 = vsel %vm524, %v548, 0.0
        %559 = vadd.xlane.f32.xlu0 %v558
        %v560 = vpop.xlane.xlu0 %559
        %v561 = vrcp.pop %v551
        %v562 = vmul.f32 %v542, %v561
        %v563 = vrcp.pop %v554
        %v564 = vmul.f32 %v544, %v563
        %v565 = vrcp.pop %v557
        %v566 = vmul.f32 %v546, %v565
        %v567 = vrcp.pop %v560
        %v568 = vmul.f32 %v548, %v567
        %v569 = vpack.c.bf16 %v562, %v562
        %v570 = vpack.c.bf16 %v564, %v564
        %v571 = vpack.c.bf16 %v566, %v566
        %v572 = vpack.c.bf16 %v568, %v568
        %v574 = vsel %vm524, %v569, 0
        %vm576 = vcmask 1044480
        %v578 = vsel %vm576, %v319, 0
        %580 = vmatprep.subr.bf16.mxu0 0
        %581 = vmatpush1.bf16.msra.mxu0 %v578
        %582 = vmatprep.subr.bf16.mxu0 0
        %583 = vmatpush1.bf16.msra.mxu0 0
        %584 = vmatprep.subr.bf16.mxu0 0
        %585 = vmatpush1.bf16.msra.mxu0 0
        %586 = vmatprep.subr.bf16.mxu0 0
        %587 = vmatpush1.bf16.msra.mxu0 0
        %588 = vmatprep.subr.bf16.mxu0 0
        %589 = vmatpush1.bf16.msra.mxu0 0
        %590 = vmatprep.subr.bf16.mxu0 0
        %591 = vmatpush1.bf16.msra.mxu0 0
        %592 = vmatprep.subr.bf16.mxu0 0
        %593 = vmatpush1.bf16.msra.mxu0 0
        %594 = vmatprep.subr.bf16.mxu0 0
        %595 = vmatpush1.bf16.msra.mxu0 0
        %596 = vmatprep.subr.bf16.mxu0 0
        %597 = vmatpush1.bf16.msra.mxu0 0
        %598 = vmatprep.subr.bf16.mxu0 0
        %599 = vmatpush1.bf16.msra.mxu0 0
        %600 = vmatprep.subr.bf16.mxu0 0
        %601 = vmatpush1.bf16.msra.mxu0 0
        %602 = vmatprep.subr.bf16.mxu0 0
        %603 = vmatpush1.bf16.msra.mxu0 0
        %604 = vmatprep.subr.bf16.mxu0 0
        %605 = vmatpush1.bf16.msra.mxu0 0
        %606 = vmatprep.subr.bf16.mxu0 0
        %607 = vmatpush1.bf16.msra.mxu0 0
        %608 = vmatprep.subr.bf16.mxu0 0
        %609 = vmatpush1.bf16.msra.mxu0 0
        %610 = vmatprep.subr.bf16.mxu0 0
        %611 = vmatpush1.bf16.msra.mxu0 0
        %612 = vmatprep.mubr.bf16.mxu0 0
        %613 = vmatmul.mubr.bf16.gmra.mrb[0].mxu0 %v574
        %v614 = vpop.f32.mrb[0].mxu0
        %v615 = vadd.f32 0.0, %v614
        %v616 = vpop.f32.mrb[0].mxu0
        %v617 = vpop.f32.mrb[0].mxu0
        %v618 = vpop.f32.mrb[0].mxu0
        %619 = vdwg.mxu0
        %v621 = vsel %vm524, %v570, 0
        %v624 = vsel %vm576, %v320, 0
        %626 = vmatprep.subr.bf16.mxu0 0
        %627 = vmatpush1.bf16.msra.mxu0 %v624
        %628 = vmatprep.subr.bf16.mxu0 0
        %629 = vmatpush1.bf16.msra.mxu0 0
        %630 = vmatprep.subr.bf16.mxu0 0
        %631 = vmatpush1.bf16.msra.mxu0 0
        %632 = vmatprep.subr.bf16.mxu0 0
        %633 = vmatpush1.bf16.msra.mxu0 0
        %634 = vmatprep.subr.bf16.mxu0 0
        %635 = vmatpush1.bf16.msra.mxu0 0
        %636 = vmatprep.subr.bf16.mxu0 0
        %637 = vmatpush1.bf16.msra.mxu0 0
        %638 = vmatprep.subr.bf16.mxu0 0
        %639 = vmatpush1.bf16.msra.mxu0 0
        %640 = vmatprep.subr.bf16.mxu0 0
        %641 = vmatpush1.bf16.msra.mxu0 0
        %642 = vmatprep.subr.bf16.mxu0 0
        %643 = vmatpush1.bf16.msra.mxu0 0
        %644 = vmatprep.subr.bf16.mxu0 0
        %645 = vmatpush1.bf16.msra.mxu0 0
        %646 = vmatprep.subr.bf16.mxu0 0
        %647 = vmatpush1.bf16.msra.mxu0 0
        %648 = vmatprep.subr.bf16.mxu0 0
        %649 = vmatpush1.bf16.msra.mxu0 0
        %650 = vmatprep.subr.bf16.mxu0 0
        %651 = vmatpush1.bf16.msra.mxu0 0
        %652 = vmatprep.subr.bf16.mxu0 0
        %653 = vmatpush1.bf16.msra.mxu0 0
        %654 = vmatprep.subr.bf16.mxu0 0
        %655 = vmatpush1.bf16.msra.mxu0 0
        %656 = vmatprep.subr.bf16.mxu0 0
        %657 = vmatpush1.bf16.msra.mxu0 0
        %658 = vmatprep.mubr.bf16.mxu0 0
        %659 = vmatmul.mubr.bf16.gmra.mrb[0].mxu0 %v621
        %v660 = vpop.f32.mrb[0].mxu0
        %v661 = vadd.f32 0.0, %v660
        %v662 = vpop.f32.mrb[0].mxu0
        %v663 = vpop.f32.mrb[0].mxu0
        %v664 = vpop.f32.mrb[0].mxu0
        %665 = vdwg.mxu0
        %v667 = vsel %vm524, %v571, 0
        %v670 = vsel %vm576, %v321, 0
        %672 = vmatprep.subr.bf16.mxu0 0
        %673 = vmatpush1.bf16.msra.mxu0 %v670
        %674 = vmatprep.subr.bf16.mxu0 0
        %675 = vmatpush1.bf16.msra.mxu0 0
        %676 = vmatprep.subr.bf16.mxu0 0
        %677 = vmatpush1.bf16.msra.mxu0 0
        %678 = vmatprep.subr.bf16.mxu0 0
        %679 = vmatpush1.bf16.msra.mxu0 0
        %680 = vmatprep.subr.bf16.mxu0 0
        %681 = vmatpush1.bf16.msra.mxu0 0
        %682 = vmatprep.subr.bf16.mxu0 0
        %683 = vmatpush1.bf16.msra.mxu0 0
        %684 = vmatprep.subr.bf16.mxu0 0
        %685 = vmatpush1.bf16.msra.mxu0 0
        %686 = vmatprep.subr.bf16.mxu0 0
        %687 = vmatpush1.bf16.msra.mxu0 0
        %688 = vmatprep.subr.bf16.mxu0 0
        %689 = vmatpush1.bf16.msra.mxu0 0
        %690 = vmatprep.subr.bf16.mxu0 0
        %691 = vmatpush1.bf16.msra.mxu0 0
        %692 = vmatprep.subr.bf16.mxu0 0
        %693 = vmatpush1.bf16.msra.mxu0 0
        %694 = vmatprep.subr.bf16.mxu0 0
        %695 = vmatpush1.bf16.msra.mxu0 0
        %696 = vmatprep.subr.bf16.mxu0 0
        %697 = vmatpush1.bf16.msra.mxu0 0
        %698 = vmatprep.subr.bf16.mxu0 0
        %699 = vmatpush1.bf16.msra.mxu0 0
        %700 = vmatprep.subr.bf16.mxu0 0
        %701 = vmatpush1.bf16.msra.mxu0 0
        %702 = vmatprep.subr.bf16.mxu0 0
        %703 = vmatpush1.bf16.msra.mxu0 0
        %704 = vmatprep.mubr.bf16.mxu0 0
        %705 = vmatmul.mubr.bf16.gmra.mrb[0].mxu0 %v667
        %v706 = vpop.f32.mrb[0].mxu0
        %v707 = vadd.f32 0.0, %v706
        %v708 = vpop.f32.mrb[0].mxu0
        %v709 = vpop.f32.mrb[0].mxu0
        %v710 = vpop.f32.mrb[0].mxu0
        %711 = vdwg.mxu0
        %v713 = vsel %vm524, %v572, 0
        %v716 = vsel %vm576, %v322, 0
        %718 = vmatprep.subr.bf16.mxu0 0
        %719 = vmatpush1.bf16.msra.mxu0 %v716
        %720 = vmatprep.subr.bf16.mxu0 0
        %721 = vmatpush1.bf16.msra.mxu0 0
        %722 = vmatprep.subr.bf16.mxu0 0
        %723 = vmatpush1.bf16.msra.mxu0 0
        %724 = vmatprep.subr.bf16.mxu0 0
        %725 = vmatpush1.bf16.msra.mxu0 0
        %726 = vmatprep.subr.bf16.mxu0 0
        %727 = vmatpush1.bf16.msra.mxu0 0
        %728 = vmatprep.subr.bf16.mxu0 0
        %729 = vmatpush1.bf16.msra.mxu0 0
        %730 = vmatprep.subr.bf16.mxu0 0
        %731 = vmatpush1.bf16.msra.mxu0 0
        %732 = vmatprep.subr.bf16.mxu0 0
        %733 = vmatpush1.bf16.msra.mxu0 0
        %734 = vmatprep.subr.bf16.mxu0 0
        %735 = vmatpush1.bf16.msra.mxu0 0
        %736 = vmatprep.subr.bf16.mxu0 0
        %737 = vmatpush1.bf16.msra.mxu0 0
        %738 = vmatprep.subr.bf16.mxu0 0
        %739 = vmatpush1.bf16.msra.mxu0 0
        %740 = vmatprep.subr.bf16.mxu0 0
        %741 = vmatpush1.bf16.msra.mxu0 0
        %742 = vmatprep.subr.bf16.mxu0 0
        %743 = vmatpush1.bf16.msra.mxu0 0
        %744 = vmatprep.subr.bf16.mxu0 0
        %745 = vmatpush1.bf16.msra.mxu0 0
        %746 = vmatprep.subr.bf16.mxu0 0
        %747 = vmatpush1.bf16.msra.mxu0 0
        %748 = vmatprep.subr.bf16.mxu0 0
        %749 = vmatpush1.bf16.msra.mxu0 0
        %750 = vmatprep.mubr.bf16.mxu0 0
        %751 = vmatmul.mubr.bf16.gmra.mrb[0].mxu0 %v713
        %v752 = vpop.f32.mrb[0].mxu0
        %v753 = vadd.f32 0.0, %v752
        %v754 = vpop.f32.mrb[0].mxu0
        %v755 = vpop.f32.mrb[0].mxu0
        %v756 = vpop.f32.mrb[0].mxu0
        %757 = vdwg.mxu0
        %758 = vst.msk [vmem:[%s289] sm:$0xff] %vm324, %v615
        %759 = vst.msk [vmem:[%s289 + $0x8] sm:$0xff] %vm324, %v661
        %760 = vst.msk [vmem:[%s289 + $0x10] sm:$0xff] %vm324, %v707
        %761 = vst.msk [vmem:[%s289 + $0x18] sm:$0xff] %vm324, %v753
        %762 = vst.msk [vmem:[%s266] sm:$0xff] %vm524, %v562
        %763 = vst.msk [vmem:[%s266 + $0x8] sm:$0xff] %vm524, %v564
        %764 = vst.msk [vmem:[%s266 + $0x10] sm:$0xff] %vm524, %v566
        %765 = vst.msk [vmem:[%s266 + $0x18] sm:$0xff] %vm524, %v568
        %p766 = scmp.lt.s32.totalorder %s20, 1
        %s767 = scalar_select %p766, %s20, 1
        %s768 = smul.addr %s767, 4
        %s769 = smul.addr %s768, 8
        %s770 = scalar_lea.vmem %s4, %s769
        %s771 = sand.u32 %s158, 1
        %s772 = scalar_lea.sflag [#allocation3], %s771
        %s773 = sand.u32 %s158, 1
        %s774 = smul.addr %s773, 32
        %s775 = scalar_lea.vmem [#allocation2], %s774
        // Predicated region
        $region37: #{decoder_forward.32} parent=35 // pred_check
          %p776 = pneg %p142
        $region38: #{decoder_forward.32} parent=35 // pred_check_branch
          %778 = sbr.rel (%p776) target = $region40
        $region39: #{decoder_forward.32} parent=35 // pred_region
          _
        $region40: #{decoder_forward.32} parent=35 // pred_fallthru
          _
        // Predicated region
        $region41: #{decoder_forward.32} parent=35 // pred_check
          %p779 = pneg %p168
        $region42: #{decoder_forward.32} parent=35 // pred_check_branch
          %781 = sbr.rel (%p779) target = $region44
        $region43: #{decoder_forward.32} parent=35 // pred_region
          %s783 = ssub.s32 512, 512
          %784 = vsyncadd %s772, %s783
          %s785 = smul.addr %s20, 4
          %s786 = smul.addr %s785, 128
          %s787 = scalar_lea.hbm %s5, %s786
          %s788 = sshll.u32 %s775, 4
          %s789 = int_to_ptr.vmem [resolvable:$true] %s788
          %794 = dma.vmem_to_hbm [thread:$0]  %s789, 512, %s787, %s772, 128, 128, 8
        $region44: #{decoder_forward.32} parent=35 // pred_fallthru
          _
      $region36: #{decoder_forward.32} parent=5 // pred_fallthru
        _
      %p795 = scmp.le.s32.totalorder 2, %s15
      // Predicated region
      $region45: #{decoder_forward.32} parent=5 // pred_check
        %p796 = pneg %p795
      $region46: #{decoder_forward.32} parent=5 // pred_check_branch
        %798 = sbr.rel (%p796) target = $region48
      $region47: #{decoder_forward.32} parent=5 // pred_region
        %s799 = ssub.s32 %s15, 2
        // Predicated region
        $region49: #{decoder_forward.32} parent=47 // pred_check
          %p800 = pneg %p148
        $region50: #{decoder_forward.32} parent=47 // pred_check_branch
          %802 = sbr.rel (%p800) target = $region52
        $region51: #{decoder_forward.32} parent=47 // pred_region
          %p803 = scmp.lt.s32.totalorder %s21, 1
          %s804 = scalar_select %p803, %s21, 1
          %s805 = smul.addr %s804, 4
          %s806 = smul.addr %s805, 8
          %s807 = scalar_lea.vmem %s4, %s806
        $region52: #{decoder_forward.32} parent=47 // pred_fallthru
          _
        // Predicated region
        $region53: #{decoder_forward.32} parent=47 // pred_check
          %p808 = pneg %p174
        $region54: #{decoder_forward.32} parent=47 // pred_check_branch
          %810 = sbr.rel (%p808) target = $region56
        $region55: #{decoder_forward.32} parent=47 // pred_region
          %s811 = sand.u32 %s159, 1
          %s812 = scalar_lea.sflag [#allocation3], %s811
          %s813 = sand.u32 %s159, 1
          %s814 = smul.addr %s813, 32
          %s815 = scalar_lea.vmem [#allocation2], %s814
          %816 = dma.done %s812, 512
        $region56: #{decoder_forward.32} parent=47 // pred_fallthru
          _
      $region48: #{decoder_forward.32} parent=5 // pred_fallthru
        _
    $region6: #{decoder_forward.32} parent=1 // loop_footer
      %s19 = sadd.s32 1, %s15
    $region7: #{decoder_forward.32} parent=1 // loop_footer_branch
      %14 = sbr.rel target = $region3
    $region8: #{decoder_forward.32} parent=1 // loop_exit
      _
    %817 = vsyncpa [#allocation3], 1
    %s818 = scalar_lea.sflag [#allocation3], 1
    %819 = vsyncpa %s818, 1

</llo_original>
